<compile_context>
chip_gen: v7x
topology: tpu7x:2x2x1
jax: 0.10.0
libtpu: 0.0.40
codegen_flags: <defaults>
</compile_context>

<pallas_src>
import functools

import jax
import jax.numpy as jnp
from jax import lax
from jax.experimental import pallas as pl
from jax.experimental.pallas import tpu as pltpu


def _round_up(x, m):
    return ((x + m - 1) // m) * m


# ----------------------------------------------------------------------------
# Pallas kernel: Bt images per step, deep-contraction conv + masked softmax +
# one MXU contraction for all expectations.
# ----------------------------------------------------------------------------
def _kp_kernel(f_ref, w_ref, b_ref, g_ref, rep_ref, out_ref, *,
               num_kp, inv_temperature, Wf, Sp, Sflat, Bt):
    K = num_kp
    Cpad = w_ref.shape[-1]
    SpB = (Bt - 1) * Sflat + Sp           # rows of acc actually consumed

    # ---- 7x7 VALID conv for all heads: 7 dy-shifted deep matmuls -----------
    # dx taps are lane-packed into the channel axis by the wrapper, so each
    # matmul contracts 7*Cf (padded to 256) channels; dy*Wf starts are
    # sublane-aligned (Wf % 8 == 0 here).
    acc = jnp.dot(f_ref[0:SpB, :], w_ref[0],
                  preferred_element_type=jnp.float32)
    for dy in range(1, 7):
        win = f_ref[dy * Wf: dy * Wf + SpB, :]
        acc = acc + jnp.dot(win, w_ref[dy],
                            preferred_element_type=jnp.float32)
    acc = acc + b_ref[...]                                    # (SpB, Cpad) f32

    g = g_ref[...]                                            # (Sp, Cpad) constants
    rep = rep_ref[...]                                        # (K, Cpad) 0/1 selector

    for b in range(Bt):                                       # static unroll
        a_b = acc[b * Sflat: b * Sflat + Sp, :]               # aligned static slice
        # temperature softmax over flat spatial; wrap rows carry -1e30 in g
        logits = a_b[:, :K] * inv_temperature + g[:, :K]      # (Sp, K) f32
        m = jnp.max(logits, axis=0, keepdims=True)            # (1, K)
        e = jnp.exp(logits - m)                               # masked rows -> exactly 0
        # One MXU contraction over the spatial axis yields, per keypoint row k:
        #   [pred | sum e*gx | sum e*gy | jac maps | hes maps | sum e (denom)]
        M = lax.dot_general(e, a_b + g,
                            dimension_numbers=(((0,), (0,)), ((), ())),
                            preferred_element_type=jnp.float32)   # (K, Cpad)
        red = jnp.sum(rep * M, axis=0, keepdims=True)         # (1, Cpad)
        out_ref[b] = red          # unnormalized; exact divide happens outside


# ----------------------------------------------------------------------------
# Glue: stand-in predictor, head packing, constant grid/mask/selector, split
# ----------------------------------------------------------------------------
def _predictor(x_nchw, params):
    """Stand-in feature predictor (NHWC output).

    TODO(synk): the Hourglass predictor (and AntiAliasInterpolation2d for
    scale_factor != 1) are defined outside the provided module; a single 3x3
    SAME conv + ReLU is used as a deterministic stand-in.
    """
    x = jnp.transpose(x_nchw, (0, 2, 3, 1))
    feat = lax.conv_general_dilated(
        x, params["pred_w"], window_strides=(1, 1), padding="SAME",
        dimension_numbers=("NHWC", "HWIO", "NHWC"),
        precision=lax.Precision.HIGHEST) + params["pred_b"]
    return jax.nn.relu(feat)


def _pack_heads(params, num_kp, cin_pack, c_pad):
    """Pack kp / jacobian / hessian 7x7 heads into one (7, 7*Cf_pad, c_pad) weight."""
    K = num_kp
    kp_w, kp_b = params["kp_w"], params["kp_b"]
    Cf = kp_w.shape[2]
    # PyTorch channel order for jac/hes is c = 4*k + comp; kernel wants
    # comp-major (comp*K + k) so each 2x2 component is a contiguous K-group.
    cm = 4 * (jnp.arange(4 * K) % K) + (jnp.arange(4 * K) // K)
    jw, jb = params["jac_w"][..., cm], params["jac_b"][cm]
    hw, hb = params["hes_w"][..., cm], params["hes_b"][cm]
    zw = jnp.zeros((7, 7, Cf, K), jnp.float32)
    zb = jnp.zeros((K,), jnp.float32)
    # column groups: [pred | val_x | val_y | jac0..3 | hes0..3 | denom]
    w_all = jnp.concatenate([kp_w, zw, zw, jw, hw, zw], axis=-1)   # (7,7,Cf,12K)
    b_all = jnp.concatenate([kp_b, zb, zb, jb, hb, zb], axis=0)    # (12K,)
    w_all = jnp.pad(w_all, ((0, 0), (0, 0), (0, 0), (0, c_pad - 12 * K)))
    b_all = jnp.pad(b_all, (0, c_pad - 12 * K))
    # (dy, dx, c, o) -> (dy, dx*Cf + c, o): matches the dx-lane-packed features
    w_all = w_all.reshape(7, 7 * Cf, c_pad)
    w_all = jnp.pad(w_all, ((0, 0), (0, cin_pack - 7 * Cf), (0, 0)))
    return w_all, b_all.reshape(1, c_pad)


def _make_gmul(Ho, Wo, Wf, Sp, num_kp, c_pad):
    """Constant per-row additives, group-aligned with the packed weights.

    Groups: [additive softmax mask | gx | gy | 0 (8 map groups) | 1 (denom)].
    """
    K = num_kp
    s = jnp.arange(Sp)
    ow = s % Wf
    oy = s // Wf
    valid = ow < Wo                                     # rows that wrap are invalid
    gx = 2.0 * ow.astype(jnp.float32) / max(Wo - 1, 1) - 1.0
    gy = 2.0 * oy.astype(jnp.float32) / max(Ho - 1, 1) - 1.0
    amask = jnp.where(valid, 0.0, -1e30).astype(jnp.float32)
    zero = jnp.zeros((Sp,), jnp.float32)
    one = jnp.ones((Sp,), jnp.float32)
    groups = jnp.stack([amask, gx, gy] + [zero] * 8 + [one], axis=1)  # (Sp, 12)
    gmul = jnp.repeat(groups, K, axis=1)                              # (Sp, 12K)
    return jnp.pad(gmul, ((0, 0), (0, c_pad - 12 * K)))


def _make_rep(num_kp, c_pad):
    """0/1 selector: rep[k, c] = 1 iff c < 12K and c % K == k (grid-invariant)."""
    K = num_kp
    col = jnp.arange(c_pad)
    rep = ((col[None, :] % K) == jnp.arange(K)[:, None]) & (col[None, :] < 12 * K)
    return rep.astype(jnp.float32)


def second_order_kp_forward(x_nchw, params, *, num_kp, temperature,
                            batch_tile=2, matmul_dtype=jnp.float32):
    feat = _predictor(x_nchw, params)                   # (B, Hf, Wf, Cf)
    B, Hf, Wf, Cf = feat.shape
    Ho, Wo = Hf - 6, Wf - 6                             # 7x7 conv, pad=0 (VALID)
    Sflat = Hf * Wf
    Sp = (Ho - 1) * Wf + Wo                             # flat extent incl. wrap rows
    K = num_kp
    c_pad = _round_up(12 * K, 128)
    cin_pack = _round_up(7 * Cf, 128)                   # dx-lane-packed channel depth

    # dx-im2col lane packing (layout plumbing, only a 7x copy of the small
    # feature map): packed[b, p, dx*Cf + c] = flat[b, p + dx, c]
    flat = feat.reshape(B, Sflat, Cf)
    packed = jnp.concatenate(
        [jnp.pad(flat[:, dx:, :], ((0, 0), (0, dx), (0, 0))) for dx in range(7)],
        axis=-1)
    packed = jnp.pad(packed, ((0, 0), (0, 0), (0, cin_pack - 7 * Cf)))

    Bt = max(1, min(batch_tile, B))
    B_pad = _round_up(B, Bt)
    if B_pad != B:
        packed = jnp.pad(packed, ((0, B_pad - B), (0, 0), (0, 0)))
    packed = packed.reshape(B_pad * Sflat, cin_pack).astype(matmul_dtype)

    w_all, b_all = _pack_heads(params, K, cin_pack, c_pad)
    w_all = w_all.astype(matmul_dtype)
    gmul = _make_gmul(Ho, Wo, Wf, Sp, K, c_pad)
    rep = _make_rep(K, c_pad)

    kernel = functools.partial(
        _kp_kernel, num_kp=K, inv_temperature=1.0 / temperature,
        Wf=Wf, Sp=Sp, Sflat=Sflat, Bt=Bt)

    slab = pl.pallas_call(
        kernel,
        out_shape=jax.ShapeDtypeStruct((B_pad, 1, c_pad), jnp.float32),
        grid_spec=pltpu.PrefetchScalarGridSpec(
            num_scalar_prefetch=0,
            grid=(B_pad // Bt,),
            in_specs=[
                pl.BlockSpec((Bt * Sflat, cin_pack), lambda i: (i, 0)),   # features
                pl.BlockSpec((7, cin_pack, c_pad), lambda i: (0, 0, 0)),  # packed weights
                pl.BlockSpec((1, c_pad), lambda i: (0, 0)),               # packed bias
                pl.BlockSpec((Sp, c_pad), lambda i: (0, 0)),              # grid/mask consts
                pl.BlockSpec((K, c_pad), lambda i: (0, 0)),               # 0/1 selector
            ],
            out_specs=pl.BlockSpec((Bt, 1, c_pad), lambda i: (i, 0, 0)),
        ),
        compiler_params=pltpu.CompilerParams(
            dimension_semantics=("parallel",),      # shard batch groups over TCs
            vmem_limit_bytes=32 * 1024 * 1024),
    )(packed, w_all, b_all, gmul, rep)

    # lane-dense-slab split + exact softmax normalization (layout plumbing)
    s = slab[:B, 0, :]                                  # (B, c_pad)
    den = s[:, 11 * K:12 * K]                           # softmax denominator
    value = jnp.stack([s[:, K:2 * K] / den, s[:, 2 * K:3 * K] / den], axis=-1)
    jacobian = jnp.transpose(
        s[:, 3 * K:7 * K].reshape(B, 4, K) / den[:, None, :],
        (0, 2, 1)).reshape(B, K, 2, 2)
    hessian = jnp.transpose(
        s[:, 7 * K:11 * K].reshape(B, 4, K) / den[:, None, :],
        (0, 2, 1)).reshape(B, K, 2, 2)
    return {"value": value, "jacobian": jacobian, "hessian": hessian}


def init_params(key, *, num_channels, out_filters, num_kp):
    """Deterministic parameter construction mirroring the module __init__."""
    k1, k2, k3 = jax.random.split(key, 3)
    Cf, K = out_filters, num_kp
    # stand-in predictor
    pred_w = 0.1 * jax.random.normal(k1, (3, 3, num_channels, Cf), jnp.float32)
    pred_b = jnp.zeros((Cf,), jnp.float32)
    # kp head (7x7 conv): deterministic random init
    kp_w = jax.random.normal(k2, (7, 7, Cf, K), jnp.float32) / jnp.sqrt(49.0 * Cf)
    kp_b = 0.01 * jax.random.normal(k3, (K,), jnp.float32)
    # jacobian / hessian heads (PyTorch channel order c = 4*k + comp):
    # zero weights, bias [1, 0, 0, 1] per keypoint, exactly as in the module
    jac_w = jnp.zeros((7, 7, Cf, 4 * K), jnp.float32)
    jac_b = jnp.tile(jnp.array([1.0, 0.0, 0.0, 1.0], jnp.float32), (K,))
    hes_w = jnp.zeros((7, 7, Cf, 4 * K), jnp.float32)
    hes_b = jnp.tile(jnp.array([1.0, 0.0, 0.0, 1.0], jnp.float32), (K,))
    return {"pred_w": pred_w, "pred_b": pred_b,
            "kp_w": kp_w, "kp_b": kp_b,
            "jac_w": jac_w, "jac_b": jac_b,
            "hes_w": hes_w, "hes_b": hes_b}


# ----------------------------------------------------------------------------
# Plain-JAX reference (sanity check of the Pallas portion)
# ----------------------------------------------------------------------------
def _reference(x_nchw, params, *, num_kp, temperature):
    feat = _predictor(x_nchw, params)
    B, Hf, Wf, _ = feat.shape
    Ho, Wo = Hf - 6, Wf - 6
    K = num_kp

    def conv7(w, b):
        return lax.conv_general_dilated(
            feat, w, window_strides=(1, 1), padding="VALID",
            dimension_numbers=("NHWC", "HWIO", "NHWC"),
            precision=lax.Precision.HIGHEST) + b

    pred = conv7(params["kp_w"], params["kp_b"]).reshape(B, -1, K)
    heat = jax.nn.softmax(pred / temperature, axis=1)                  # (B, S, K)
    ys, xs = jnp.meshgrid(jnp.arange(Ho), jnp.arange(Wo), indexing="ij")
    gx = (2.0 * xs / max(Wo - 1, 1) - 1.0).reshape(-1).astype(jnp.float32)
    gy = (2.0 * ys / max(Ho - 1, 1) - 1.0).reshape(-1).astype(jnp.float32)
    hp = lax.Precision.HIGHEST
    value = jnp.stack([jnp.einsum("bsk,s->bk", heat, gx, precision=hp),
                       jnp.einsum("bsk,s->bk", heat, gy, precision=hp)], axis=-1)
    jm = conv7(params["jac_w"], params["jac_b"]).reshape(B, -1, K, 4)
    hm = conv7(params["hes_w"], params["hes_b"]).reshape(B, -1, K, 4)
    jac = jnp.einsum("bsk,bskc->bkc", heat, jm, precision=hp).reshape(B, K, 2, 2)
    hes = jnp.einsum("bsk,bskc->bkc", heat, hm, precision=hp).reshape(B, K, 2, 2)
    return {"value": value, "jacobian": jac, "hessian": hes}


if __name__ == "__main__":
    B, C, H, W = 2, 4, 16, 16
    num_kp = 8
    out_filters = 32
    temperature = 0.1

    key = jax.random.PRNGKey(0)
    kx, kparam = jax.random.split(key)
    x = jax.random.normal(kx, (B, C, H, W), jnp.float32)
    params = init_params(kparam, num_channels=C, out_filters=out_filters,
                         num_kp=num_kp)

    fwd = jax.jit(functools.partial(second_order_kp_forward,
                                    num_kp=num_kp, temperature=temperature))
    out = fwd(x, params)
    jax.block_until_ready(out)

    ref = _reference(x, params, num_kp=num_kp, temperature=temperature)
    for name in ("value", "jacobian", "hessian"):
        # 1e-3 tolerance: f32 MXU accumulation order differs from the XLA
        # reference; normalization is now an exact divide in the wrapper.
        if not jnp.allclose(out[name], ref[name], atol=1e-3, rtol=1e-3):
            raise AssertionError(f"mismatch in {name}")

    print("KERNEL_OK")
</pallas_src>

<mosaic_0001>
module attributes {stable_mosaic.version = 11 : i64} {
  func.func @_kp_kernel(%arg0: i32, %arg1: memref<512x256xf32, #tpu.memory_space<vmem>>, %arg2: memref<7x256x128xf32, #tpu.memory_space<vmem>>, %arg3: memref<1x128xf32, #tpu.memory_space<vmem>>, %arg4: memref<154x128xf32, #tpu.memory_space<vmem>>, %arg5: memref<8x128xf32, #tpu.memory_space<vmem>>, %arg6: memref<2x1x128xf32, #tpu.memory_space<vmem>>) attributes {dimension_semantics = [#tpu.dimension_semantics<parallel>], iteration_bounds = array<i64: 1>, scalar_prefetch = 0 : i64, scratch_operands = 0 : i64, tpu.core_type = #tpu.core_type<tc>, window_params = [{transform_indices = @transform_0, window_bounds = array<i64: 512, 256>}, {pipeline_mode = #tpu.pipeline_mode<synchronous>, transform_indices = @transform_1, window_bounds = array<i64: 7, 256, 128>}, {pipeline_mode = #tpu.pipeline_mode<synchronous>, transform_indices = @transform_2, window_bounds = array<i64: 1, 128>}, {pipeline_mode = #tpu.pipeline_mode<synchronous>, transform_indices = @transform_3, window_bounds = array<i64: 154, 128>}, {pipeline_mode = #tpu.pipeline_mode<synchronous>, transform_indices = @transform_4, window_bounds = array<i64: 8, 128>}, {transform_indices = @transform_5, window_bounds = array<i64: 2, 1, 128>}]} {
    %c0 = arith.constant 0 : index
    %c0_0 = arith.constant 0 : index
    %0 = vector.load %arg1[%c0, %c0_0] : memref<512x256xf32, #tpu.memory_space<vmem>>, vector<410x256xf32>
    %c0_1 = arith.constant 0 : index
    %c0_2 = arith.constant 0 : index
    %c0_3 = arith.constant 0 : index
    %1 = vector.load %arg2[%c0_1, %c0_2, %c0_3] : memref<7x256x128xf32, #tpu.memory_space<vmem>>, vector<1x256x128xf32>
    %2 = vector.shape_cast %1 : vector<1x256x128xf32> to vector<256x128xf32>
    %cst = arith.constant dense<0.000000e+00> : vector<410x128xf32>
    %3 = tpu.matmul %0, %2, %cst {dimension_numbers = #tpu.dot_dimension_numbers<[1], [0], [0], [1], [0, 0, 1, 1], [], []>} : vector<410x256xf32>, vector<256x128xf32>, vector<410x128xf32> -> vector<410x128xf32>
    %c16 = arith.constant 16 : index
    %c0_4 = arith.constant 0 : index
    %4 = vector.load %arg1[%c16, %c0_4] : memref<512x256xf32, #tpu.memory_space<vmem>>, vector<410x256xf32>
    %c1 = arith.constant 1 : index
    %c0_5 = arith.constant 0 : index
    %c0_6 = arith.constant 0 : index
    %5 = vector.load %arg2[%c1, %c0_5, %c0_6] : memref<7x256x128xf32, #tpu.memory_space<vmem>>, vector<1x256x128xf32>
    %6 = vector.shape_cast %5 : vector<1x256x128xf32> to vector<256x128xf32>
    %cst_7 = arith.constant dense<0.000000e+00> : vector<410x128xf32>
    %7 = tpu.matmul %4, %6, %cst_7 {dimension_numbers = #tpu.dot_dimension_numbers<[1], [0], [0], [1], [0, 0, 1, 1], [], []>} : vector<410x256xf32>, vector<256x128xf32>, vector<410x128xf32> -> vector<410x128xf32>
    %8 = arith.addf %3, %7 : vector<410x128xf32>
    %c32 = arith.constant 32 : index
    %c0_8 = arith.constant 0 : index
    %9 = vector.load %arg1[%c32, %c0_8] : memref<512x256xf32, #tpu.memory_space<vmem>>, vector<410x256xf32>
    %c2 = arith.constant 2 : index
    %c0_9 = arith.constant 0 : index
    %c0_10 = arith.constant 0 : index
    %10 = vector.load %arg2[%c2, %c0_9, %c0_10] : memref<7x256x128xf32, #tpu.memory_space<vmem>>, vector<1x256x128xf32>
    %11 = vector.shape_cast %10 : vector<1x256x128xf32> to vector<256x128xf32>
    %cst_11 = arith.constant dense<0.000000e+00> : vector<410x128xf32>
    %12 = tpu.matmul %9, %11, %cst_11 {dimension_numbers = #tpu.dot_dimension_numbers<[1], [0], [0], [1], [0, 0, 1, 1], [], []>} : vector<410x256xf32>, vector<256x128xf32>, vector<410x128xf32> -> vector<410x128xf32>
    %13 = arith.addf %8, %12 : vector<410x128xf32>
    %c48 = arith.constant 48 : index
    %c0_12 = arith.constant 0 : index
    %14 = vector.load %arg1[%c48, %c0_12] : memref<512x256xf32, #tpu.memory_space<vmem>>, vector<410x256xf32>
    %c3 = arith.constant 3 : index
    %c0_13 = arith.constant 0 : index
    %c0_14 = arith.constant 0 : index
    %15 = vector.load %arg2[%c3, %c0_13, %c0_14] : memref<7x256x128xf32, #tpu.memory_space<vmem>>, vector<1x256x128xf32>
    %16 = vector.shape_cast %15 : vector<1x256x128xf32> to vector<256x128xf32>
    %cst_15 = arith.constant dense<0.000000e+00> : vector<410x128xf32>
    %17 = tpu.matmul %14, %16, %cst_15 {dimension_numbers = #tpu.dot_dimension_numbers<[1], [0], [0], [1], [0, 0, 1, 1], [], []>} : vector<410x256xf32>, vector<256x128xf32>, vector<410x128xf32> -> vector<410x128xf32>
    %18 = arith.addf %13, %17 : vector<410x128xf32>
    %c64 = arith.constant 64 : index
    %c0_16 = arith.constant 0 : index
    %19 = vector.load %arg1[%c64, %c0_16] : memref<512x256xf32, #tpu.memory_space<vmem>>, vector<410x256xf32>
    %c4 = arith.constant 4 : index
    %c0_17 = arith.constant 0 : index
    %c0_18 = arith.constant 0 : index
    %20 = vector.load %arg2[%c4, %c0_17, %c0_18] : memref<7x256x128xf32, #tpu.memory_space<vmem>>, vector<1x256x128xf32>
    %21 = vector.shape_cast %20 : vector<1x256x128xf32> to vector<256x128xf32>
    %cst_19 = arith.constant dense<0.000000e+00> : vector<410x128xf32>
    %22 = tpu.matmul %19, %21, %cst_19 {dimension_numbers = #tpu.dot_dimension_numbers<[1], [0], [0], [1], [0, 0, 1, 1], [], []>} : vector<410x256xf32>, vector<256x128xf32>, vector<410x128xf32> -> vector<410x128xf32>
    %23 = arith.addf %18, %22 : vector<410x128xf32>
    %c80 = arith.constant 80 : index
    %c0_20 = arith.constant 0 : index
    %24 = vector.load %arg1[%c80, %c0_20] : memref<512x256xf32, #tpu.memory_space<vmem>>, vector<410x256xf32>
    %c5 = arith.constant 5 : index
    %c0_21 = arith.constant 0 : index
    %c0_22 = arith.constant 0 : index
    %25 = vector.load %arg2[%c5, %c0_21, %c0_22] : memref<7x256x128xf32, #tpu.memory_space<vmem>>, vector<1x256x128xf32>
    %26 = vector.shape_cast %25 : vector<1x256x128xf32> to vector<256x128xf32>
    %cst_23 = arith.constant dense<0.000000e+00> : vector<410x128xf32>
    %27 = tpu.matmul %24, %26, %cst_23 {dimension_numbers = #tpu.dot_dimension_numbers<[1], [0], [0], [1], [0, 0, 1, 1], [], []>} : vector<410x256xf32>, vector<256x128xf32>, vector<410x128xf32> -> vector<410x128xf32>
    %28 = arith.addf %23, %27 : vector<410x128xf32>
    %c96 = arith.constant 96 : index
    %c0_24 = arith.constant 0 : index
    %29 = vector.load %arg1[%c96, %c0_24] : memref<512x256xf32, #tpu.memory_space<vmem>>, vector<410x256xf32>
    %c6 = arith.constant 6 : index
    %c0_25 = arith.constant 0 : index
    %c0_26 = arith.constant 0 : index
    %30 = vector.load %arg2[%c6, %c0_25, %c0_26] : memref<7x256x128xf32, #tpu.memory_space<vmem>>, vector<1x256x128xf32>
    %31 = vector.shape_cast %30 : vector<1x256x128xf32> to vector<256x128xf32>
    %cst_27 = arith.constant dense<0.000000e+00> : vector<410x128xf32>
    %32 = tpu.matmul %29, %31, %cst_27 {dimension_numbers = #tpu.dot_dimension_numbers<[1], [0], [0], [1], [0, 0, 1, 1], [], []>} : vector<410x256xf32>, vector<256x128xf32>, vector<410x128xf32> -> vector<410x128xf32>
    %33 = arith.addf %28, %32 : vector<410x128xf32>
    %c0_28 = arith.constant 0 : index
    %c0_29 = arith.constant 0 : index
    %34 = vector.load %arg3[%c0_28, %c0_29] : memref<1x128xf32, #tpu.memory_space<vmem>>, vector<1x128xf32>
    %35 = vector.broadcast %34 : vector<1x128xf32> to vector<410x128xf32>
    %36 = arith.addf %33, %35 : vector<410x128xf32>
    %c0_30 = arith.constant 0 : index
    %c0_31 = arith.constant 0 : index
    %37 = vector.load %arg4[%c0_30, %c0_31] : memref<154x128xf32, #tpu.memory_space<vmem>>, vector<154x128xf32>
    %c0_32 = arith.constant 0 : index
    %c0_33 = arith.constant 0 : index
    %38 = vector.load %arg5[%c0_32, %c0_33] : memref<8x128xf32, #tpu.memory_space<vmem>>, vector<8x128xf32>
    %39 = vector.extract_strided_slice %36 {offsets = [0, 0], sizes = [154, 128], strides = [1, 1]} : vector<410x128xf32> to vector<154x128xf32>
    %40 = vector.extract_strided_slice %39 {offsets = [0, 0], sizes = [154, 8], strides = [1, 1]} : vector<154x128xf32> to vector<154x8xf32>
    %cst_34 = arith.constant 1.000000e+01 : f32
    %41 = vector.broadcast %cst_34 : f32 to vector<154x8xf32>
    %42 = arith.mulf %40, %41 : vector<154x8xf32>
    %43 = vector.extract_strided_slice %37 {offsets = [0, 0], sizes = [154, 8], strides = [1, 1]} : vector<154x128xf32> to vector<154x8xf32>
    %44 = arith.addf %42, %43 : vector<154x8xf32>
    %cst_35 = arith.constant dense<0xFF800000> : vector<8xf32>
    %45 = vector.multi_reduction <maximumf>, %44, %cst_35 [0] : vector<154x8xf32> to vector<8xf32>
    %46 = vector.shape_cast %45 : vector<8xf32> to vector<1x8xf32>
    %47 = vector.broadcast %46 : vector<1x8xf32> to vector<154x8xf32>
    %48 = arith.subf %44, %47 : vector<154x8xf32>
    %49 = math.exp %48 : vector<154x8xf32>
    %50 = arith.addf %39, %37 : vector<154x128xf32>
    %cst_36 = arith.constant dense<0.000000e+00> : vector<8x128xf32>
    %51 = tpu.matmul %49, %50, %cst_36 {dimension_numbers = #tpu.dot_dimension_numbers<[0], [0], [1], [1], [0, 1, 1, 1], [], []>} : vector<154x8xf32>, vector<154x128xf32>, vector<8x128xf32> -> vector<8x128xf32>
    %52 = arith.mulf %38, %51 : vector<8x128xf32>
    %cst_37 = arith.constant dense<0.000000e+00> : vector<128xf32>
    %53 = vector.multi_reduction <add>, %52, %cst_37 [0] : vector<8x128xf32> to vector<128xf32>
    %54 = vector.shape_cast %53 : vector<128xf32> to vector<1x128xf32>
    %c0_38 = arith.constant 0 : index
    %c0_39 = arith.constant 0 : index
    %c0_40 = arith.constant 0 : index
    %55 = vector.load %arg6[%c0_38, %c0_39, %c0_40] : memref<2x1x128xf32, #tpu.memory_space<vmem>>, vector<1x1x128xf32>
    %56 = vector.shape_cast %55 : vector<1x1x128xf32> to vector<1x128xf32>
    %57 = vector.shape_cast %54 : vector<1x128xf32> to vector<1x1x128xf32>
    tpu.vector_store %arg6[%c0_38, %c0_39, %c0_40], %57 {strides = array<i32>} : memref<2x1x128xf32, #tpu.memory_space<vmem>>, vector<1x1x128xf32>,
    %58 = vector.extract_strided_slice %36 {offsets = [256, 0], sizes = [154, 128], strides = [1, 1]} : vector<410x128xf32> to vector<154x128xf32>
    %59 = vector.extract_strided_slice %58 {offsets = [0, 0], sizes = [154, 8], strides = [1, 1]} : vector<154x128xf32> to vector<154x8xf32>
    %cst_41 = arith.constant 1.000000e+01 : f32
    %60 = vector.broadcast %cst_41 : f32 to vector<154x8xf32>
    %61 = arith.mulf %59, %60 : vector<154x8xf32>
    %62 = vector.extract_strided_slice %37 {offsets = [0, 0], sizes = [154, 8], strides = [1, 1]} : vector<154x128xf32> to vector<154x8xf32>
    %63 = arith.addf %61, %62 : vector<154x8xf32>
    %cst_42 = arith.constant dense<0xFF800000> : vector<8xf32>
    %64 = vector.multi_reduction <maximumf>, %63, %cst_42 [0] : vector<154x8xf32> to vector<8xf32>
    %65 = vector.shape_cast %64 : vector<8xf32> to vector<1x8xf32>
    %66 = vector.broadcast %65 : vector<1x8xf32> to vector<154x8xf32>
    %67 = arith.subf %63, %66 : vector<154x8xf32>
    %68 = math.exp %67 : vector<154x8xf32>
    %69 = arith.addf %58, %37 : vector<154x128xf32>
    %cst_43 = arith.constant dense<0.000000e+00> : vector<8x128xf32>
    %70 = tpu.matmul %68, %69, %cst_43 {dimension_numbers = #tpu.dot_dimension_numbers<[0], [0], [1], [1], [0, 1, 1, 1], [], []>} : vector<154x8xf32>, vector<154x128xf32>, vector<8x128xf32> -> vector<8x128xf32>
    %71 = arith.mulf %38, %70 : vector<8x128xf32>
    %cst_44 = arith.constant dense<0.000000e+00> : vector<128xf32>
    %72 = vector.multi_reduction <add>, %71, %cst_44 [0] : vector<8x128xf32> to vector<128xf32>
    %73 = vector.shape_cast %72 : vector<128xf32> to vector<1x128xf32>
    %c1_45 = arith.constant 1 : index
    %c0_46 = arith.constant 0 : index
    %c0_47 = arith.constant 0 : index
    %74 = vector.load %arg6[%c1_45, %c0_46, %c0_47] : memref<2x1x128xf32, #tpu.memory_space<vmem>>, vector<1x1x128xf32>
    %75 = vector.shape_cast %74 : vector<1x1x128xf32> to vector<1x128xf32>
    %76 = vector.shape_cast %73 : vector<1x128xf32> to vector<1x1x128xf32>
    tpu.vector_store %arg6[%c1_45, %c0_46, %c0_47], %76 {strides = array<i32>} : memref<2x1x128xf32, #tpu.memory_space<vmem>>, vector<1x1x128xf32>,
    return
  }
  func.func @transform_0(%arg0: i32) -> (i32, i32) {
    %c0_i32 = arith.constant 0 : i32
    %c0_i32_0 = arith.constant 0 : i32
    return %arg0, %c0_i32 : i32, i32
  }
  func.func @transform_1(%arg0: i32) -> (i32, i32, i32) {
    %c0_i32 = arith.constant 0 : i32
    %c0_i32_0 = arith.constant 0 : i32
    %c0_i32_1 = arith.constant 0 : i32
    %c0_i32_2 = arith.constant 0 : i32
    return %c0_i32, %c0_i32_0, %c0_i32_1 : i32, i32, i32
  }
  func.func @transform_2(%arg0: i32) -> (i32, i32) {
    %c0_i32 = arith.constant 0 : i32
    %c0_i32_0 = arith.constant 0 : i32
    %c0_i32_1 = arith.constant 0 : i32
    return %c0_i32, %c0_i32_0 : i32, i32
  }
  func.func @transform_3(%arg0: i32) -> (i32, i32) {
    %c0_i32 = arith.constant 0 : i32
    %c0_i32_0 = arith.constant 0 : i32
    %c0_i32_1 = arith.constant 0 : i32
    return %c0_i32, %c0_i32_0 : i32, i32
  }
  func.func @transform_4(%arg0: i32) -> (i32, i32) {
    %c0_i32 = arith.constant 0 : i32
    %c0_i32_0 = arith.constant 0 : i32
    %c0_i32_1 = arith.constant 0 : i32
    return %c0_i32, %c0_i32_0 : i32, i32
  }
  func.func @transform_5(%arg0: i32) -> (i32, i32, i32) {
    %c0_i32 = arith.constant 0 : i32
    %c0_i32_0 = arith.constant 0 : i32
    %c0_i32_1 = arith.constant 0 : i32
    return %arg0, %c0_i32, %c0_i32_0 : i32, i32, i32
  }
}

</mosaic_0001>

<llo_original>
// kernel: second_order_kp_forward.1
$region0: #{second_order_kp_forward.1}
  #allocation0 [shape = 'u32[]', space=smem, size = 0x4, offset = 0x4, fixed_abs, tag = 'smem constant byte address 0x4 - core index']
  #allocation1 [shape = 'u32[144,128]{1,0:T(1,128)}', space=vmem, size = 0x12000, scoped, tag = 'internal scratch']
  %s0 = inlined_call_operand.vmem [shape: f32[512,256], index: 0, kind: input, shape index: {}]
  %s1 = inlined_call_operand.vmem [shape: f32[7,256,128], index: 1, kind: input, shape index: {}]
  %s2 = inlined_call_operand.vmem [shape: f32[1,128], index: 2, kind: input, shape index: {}]
  %s3 = inlined_call_operand.vmem [shape: f32[154,128], index: 3, kind: input, shape index: {}]
  %s4 = inlined_call_operand.vmem [shape: f32[8,128], index: 4, kind: input, shape index: {}]
  %s5 = inlined_call_operand.vmem [shape: f32[2,1,128], index: 5, kind: output, shape index: {}]
  %s6 = sld [smem:[#allocation0]]
  $region30: #{second_order_kp_forward.1} parent=0
    _
  %s8 = ssub.s32 1, %s6
  %s9 = scalar_select 0, %s8, %s6
  // Predicated region
  $region2: #{second_order_kp_forward.1} parent=0 // pred_check
    _
  $region3: #{second_order_kp_forward.1} parent=0 // pred_check_branch
    %11 = sbr.rel (0) target = $region5
  $region4: #{second_order_kp_forward.1} parent=0 // pred_region
    _
  $region5: #{second_order_kp_forward.1} parent=0 // pred_fallthru
    _
  // Predicated region
  $region6: #{second_order_kp_forward.1} parent=0 // pred_check
    _
  $region7: #{second_order_kp_forward.1} parent=0 // pred_check_branch
    %13 = sbr.rel (0) target = $region9
  $region8: #{second_order_kp_forward.1} parent=0 // pred_region
    _
  $region9: #{second_order_kp_forward.1} parent=0 // pred_fallthru
    _
  // Predicated region
  $region10: #{second_order_kp_forward.1} parent=0 // pred_check
    _
  $region11: #{second_order_kp_forward.1} parent=0 // pred_check_branch
    %15 = sbr.rel (0) target = $region13
  $region12: #{second_order_kp_forward.1} parent=0 // pred_region
    _
  $region13: #{second_order_kp_forward.1} parent=0 // pred_fallthru
    _
  // Predicated region
  $region14: #{second_order_kp_forward.1} parent=0 // pred_check
    _
  $region15: #{second_order_kp_forward.1} parent=0 // pred_check_branch
    %17 = sbr.rel (0) target = $region17
  $region16: #{second_order_kp_forward.1} parent=0 // pred_region
    _
  $region17: #{second_order_kp_forward.1} parent=0 // pred_fallthru
    _
  // Predicated region
  $region18: #{second_order_kp_forward.1} parent=0 // pred_check
    _
  $region19: #{second_order_kp_forward.1} parent=0 // pred_check_branch
    %19 = sbr.rel (0) target = $region21
  $region20: #{second_order_kp_forward.1} parent=0 // pred_region
    _
  $region21: #{second_order_kp_forward.1} parent=0 // pred_fallthru
    _
  %v20 = vld [vmem:[%s0] sm:$0xff]
  %v21 = vld [vmem:[%s0 + $0x8] sm:$0xff]
  %v22 = vld [vmem:[%s0 + $0x10] sm:$0xff]
  %v23 = vld [vmem:[%s0 + $0x18] sm:$0xff]
  %v24 = vld [vmem:[%s0 + $0x20] sm:$0xff]
  %v25 = vld [vmem:[%s0 + $0x28] sm:$0xff]
  %v26 = vld [vmem:[%s0 + $0x30] sm:$0xff]
  %v27 = vld [vmem:[%s0 + $0x38] sm:$0xff]
  %v28 = vld [vmem:[%s0 + $0x40] sm:$0xff]
  %v29 = vld [vmem:[%s0 + $0x48] sm:$0xff]
  %v30 = vld [vmem:[%s0 + $0x50] sm:$0xff]
  %v31 = vld [vmem:[%s0 + $0x58] sm:$0xff]
  %v32 = vld [vmem:[%s0 + $0x60] sm:$0xff]
  %v33 = vld [vmem:[%s0 + $0x68] sm:$0xff]
  %v34 = vld [vmem:[%s0 + $0x70] sm:$0xff]
  %v35 = vld [vmem:[%s0 + $0x78] sm:$0xff]
  %v36 = vld [vmem:[%s0 + $0x80] sm:$0xff]
  %v37 = vld [vmem:[%s0 + $0x88] sm:$0xff]
  %v38 = vld [vmem:[%s0 + $0x90] sm:$0xff]
  %v39 = vld [vmem:[%s0 + $0x98] sm:$0xff]
  %v40 = vld [vmem:[%s0 + $0xa0] sm:$0xff]
  %v41 = vld [vmem:[%s0 + $0xa8] sm:$0xff]
  %v42 = vld [vmem:[%s0 + $0xb0] sm:$0xff]
  %v43 = vld [vmem:[%s0 + $0xb8] sm:$0xff]
  %v44 = vld [vmem:[%s0 + $0xc0] sm:$0xff]
  %v45 = vld [vmem:[%s0 + $0xc8] sm:$0xff]
  %v46 = vld [vmem:[%s0 + $0xd0] sm:$0xff]
  %v47 = vld [vmem:[%s0 + $0xd8] sm:$0xff]
  %v48 = vld [vmem:[%s0 + $0xe0] sm:$0xff]
  %v49 = vld [vmem:[%s0 + $0xe8] sm:$0xff]
  %v50 = vld [vmem:[%s0 + $0xf0] sm:$0xff]
  %v51 = vld [vmem:[%s0 + $0xf8] sm:$0xff]
  %v52 = vld [vmem:[%s0 + $0x100] sm:$0xff]
  %v53 = vld [vmem:[%s0 + $0x108] sm:$0xff]
  %v54 = vld [vmem:[%s0 + $0x110] sm:$0xff]
  %v55 = vld [vmem:[%s0 + $0x118] sm:$0xff]
  %v56 = vld [vmem:[%s0 + $0x120] sm:$0xff]
  %v57 = vld [vmem:[%s0 + $0x128] sm:$0xff]
  %v58 = vld [vmem:[%s0 + $0x130] sm:$0xff]
  %v59 = vld [vmem:[%s0 + $0x138] sm:$0xff]
  %v60 = vld [vmem:[%s0 + $0x140] sm:$0xff]
  %v61 = vld [vmem:[%s0 + $0x148] sm:$0xff]
  %v62 = vld [vmem:[%s0 + $0x150] sm:$0xff]
  %v63 = vld [vmem:[%s0 + $0x158] sm:$0xff]
  %v64 = vld [vmem:[%s0 + $0x160] sm:$0xff]
  %v65 = vld [vmem:[%s0 + $0x168] sm:$0xff]
  %v66 = vld [vmem:[%s0 + $0x170] sm:$0xff]
  %v67 = vld [vmem:[%s0 + $0x178] sm:$0xff]
  %v68 = vld [vmem:[%s0 + $0x180] sm:$0xff]
  %v69 = vld [vmem:[%s0 + $0x188] sm:$0xff]
  %v70 = vld [vmem:[%s0 + $0x190] sm:$0xff]
  %v71 = vld [vmem:[%s0 + $0x198] sm:$0xff]
  %v72 = vld [vmem:[%s0 + $0x1a0] sm:$0xff]
  %v73 = vld [vmem:[%s0 + $0x1a8] sm:$0xff]
  %v74 = vld [vmem:[%s0 + $0x1b0] sm:$0xff]
  %v75 = vld [vmem:[%s0 + $0x1b8] sm:$0xff]
  %v76 = vld [vmem:[%s0 + $0x1c0] sm:$0xff]
  %v77 = vld [vmem:[%s0 + $0x1c8] sm:$0xff]
  %v78 = vld [vmem:[%s0 + $0x1d0] sm:$0xff]
  %v79 = vld [vmem:[%s0 + $0x1d8] sm:$0xff]
  %v80 = vld [vmem:[%s0 + $0x1e0] sm:$0xff]
  %v81 = vld [vmem:[%s0 + $0x1e8] sm:$0xff]
  %v82 = vld [vmem:[%s0 + $0x1f0] sm:$0xff]
  %v83 = vld [vmem:[%s0 + $0x1f8] sm:$0xff]
  %v84 = vld [vmem:[%s0 + $0x200] sm:$0xff]
  %v85 = vld [vmem:[%s0 + $0x208] sm:$0xff]
  %v86 = vld [vmem:[%s0 + $0x210] sm:$0xff]
  %v87 = vld [vmem:[%s0 + $0x218] sm:$0xff]
  %v88 = vld [vmem:[%s0 + $0x220] sm:$0xff]
  %v89 = vld [vmem:[%s0 + $0x228] sm:$0xff]
  %v90 = vld [vmem:[%s0 + $0x230] sm:$0xff]
  %v91 = vld [vmem:[%s0 + $0x238] sm:$0xff]
  %v92 = vld [vmem:[%s0 + $0x240] sm:$0xff]
  %v93 = vld [vmem:[%s0 + $0x248] sm:$0xff]
  %v94 = vld [vmem:[%s0 + $0x250] sm:$0xff]
  %v95 = vld [vmem:[%s0 + $0x258] sm:$0xff]
  %v96 = vld [vmem:[%s0 + $0x260] sm:$0xff]
  %v97 = vld [vmem:[%s0 + $0x268] sm:$0xff]
  %v98 = vld [vmem:[%s0 + $0x270] sm:$0xff]
  %v99 = vld [vmem:[%s0 + $0x278] sm:$0xff]
  %v100 = vld [vmem:[%s0 + $0x280] sm:$0xff]
  %v101 = vld [vmem:[%s0 + $0x288] sm:$0xff]
  %v102 = vld [vmem:[%s0 + $0x290] sm:$0xff]
  %v103 = vld [vmem:[%s0 + $0x298] sm:$0xff]
  %v104 = vld [vmem:[%s0 + $0x2a0] sm:$0xff]
  %v105 = vld [vmem:[%s0 + $0x2a8] sm:$0xff]
  %v106 = vld [vmem:[%s0 + $0x2b0] sm:$0xff]
  %v107 = vld [vmem:[%s0 + $0x2b8] sm:$0xff]
  %v108 = vld [vmem:[%s0 + $0x2c0] sm:$0xff]
  %v109 = vld [vmem:[%s0 + $0x2c8] sm:$0xff]
  %v110 = vld [vmem:[%s0 + $0x2d0] sm:$0xff]
  %v111 = vld [vmem:[%s0 + $0x2d8] sm:$0xff]
  %v112 = vld [vmem:[%s0 + $0x2e0] sm:$0xff]
  %v113 = vld [vmem:[%s0 + $0x2e8] sm:$0xff]
  %v114 = vld [vmem:[%s0 + $0x2f0] sm:$0xff]
  %v115 = vld [vmem:[%s0 + $0x2f8] sm:$0xff]
  %v116 = vld [vmem:[%s0 + $0x300] sm:$0xff]
  %v117 = vld [vmem:[%s0 + $0x308] sm:$0xff]
  %v118 = vld [vmem:[%s0 + $0x310] sm:$0xff]
  %v119 = vld [vmem:[%s0 + $0x318] sm:$0xff]
  %v120 = vld [vmem:[%s0 + $0x320] sm:$0xff]
  %v121 = vld [vmem:[%s0 + $0x328] sm:$0xff]
  %v122 = vld [vmem:[%s0 + $0x330] sm:$0x3]
  %v123 = vld [vmem:[%s0 + $0x338] sm:$0x3]
  %v124 = vld [vmem:[%s1] sm:$0xff]
  %v125 = vld [vmem:[%s1 + $0x8] sm:$0xff]
  %v126 = vld [vmem:[%s1 + $0x10] sm:$0xff]
  %v127 = vld [vmem:[%s1 + $0x18] sm:$0xff]
  %v128 = vld [vmem:[%s1 + $0x20] sm:$0xff]
  %v129 = vld [vmem:[%s1 + $0x28] sm:$0xff]
  %v130 = vld [vmem:[%s1 + $0x30] sm:$0xff]
  %v131 = vld [vmem:[%s1 + $0x38] sm:$0xff]
  %v132 = vld [vmem:[%s1 + $0x40] sm:$0xff]
  %v133 = vld [vmem:[%s1 + $0x48] sm:$0xff]
  %v134 = vld [vmem:[%s1 + $0x50] sm:$0xff]
  %v135 = vld [vmem:[%s1 + $0x58] sm:$0xff]
  %v136 = vld [vmem:[%s1 + $0x60] sm:$0xff]
  %v137 = vld [vmem:[%s1 + $0x68] sm:$0xff]
  %v138 = vld [vmem:[%s1 + $0x70] sm:$0xff]
  %v139 = vld [vmem:[%s1 + $0x78] sm:$0xff]
  %v140 = vld [vmem:[%s1 + $0x80] sm:$0xff]
  %v141 = vld [vmem:[%s1 + $0x88] sm:$0xff]
  %v142 = vld [vmem:[%s1 + $0x90] sm:$0xff]
  %v143 = vld [vmem:[%s1 + $0x98] sm:$0xff]
  %v144 = vld [vmem:[%s1 + $0xa0] sm:$0xff]
  %v145 = vld [vmem:[%s1 + $0xa8] sm:$0xff]
  %v146 = vld [vmem:[%s1 + $0xb0] sm:$0xff]
  %v147 = vld [vmem:[%s1 + $0xb8] sm:$0xff]
  %v148 = vld [vmem:[%s1 + $0xc0] sm:$0xff]
  %v149 = vld [vmem:[%s1 + $0xc8] sm:$0xff]
  %v150 = vld [vmem:[%s1 + $0xd0] sm:$0xff]
  %v151 = vld [vmem:[%s1 + $0xd8] sm:$0xff]
  %v152 = vld [vmem:[%s1 + $0xe0] sm:$0xff]
  %v153 = vld [vmem:[%s1 + $0xe8] sm:$0xff]
  %v154 = vld [vmem:[%s1 + $0xf0] sm:$0xff]
  %v155 = vld [vmem:[%s1 + $0xf8] sm:$0xff]
  %v156 = vld [vmem:[%s0 + $0x330] sm:$0xff]
  %v157 = vld [vmem:[%s0 + $0x338] sm:$0xff]
  %v158 = vld [vmem:[%s0 + $0x340] sm:$0xff]
  %v159 = vld [vmem:[%s0 + $0x348] sm:$0xff]
  %v160 = vld [vmem:[%s0 + $0x350] sm:$0x3]
  %v161 = vld [vmem:[%s0 + $0x358] sm:$0x3]
  %s162 = scalar_lea.vmem %s1, 256
  %v163 = vld [vmem:[%s162] sm:$0xff]
  %v164 = vld [vmem:[%s162 + $0x8] sm:$0xff]
  %v165 = vld [vmem:[%s162 + $0x10] sm:$0xff]
  %v166 = vld [vmem:[%s162 + $0x18] sm:$0xff]
  %v167 = vld [vmem:[%s162 + $0x20] sm:$0xff]
  %v168 = vld [vmem:[%s162 + $0x28] sm:$0xff]
  %v169 = vld [vmem:[%s162 + $0x30] sm:$0xff]
  %v170 = vld [vmem:[%s162 + $0x38] sm:$0xff]
  %v171 = vld [vmem:[%s162 + $0x40] sm:$0xff]
  %v172 = vld [vmem:[%s162 + $0x48] sm:$0xff]
  %v173 = vld [vmem:[%s162 + $0x50] sm:$0xff]
  %v174 = vld [vmem:[%s162 + $0x58] sm:$0xff]
  %v175 = vld [vmem:[%s162 + $0x60] sm:$0xff]
  %v176 = vld [vmem:[%s162 + $0x68] sm:$0xff]
  %v177 = vld [vmem:[%s162 + $0x70] sm:$0xff]
  %v178 = vld [vmem:[%s162 + $0x78] sm:$0xff]
  %v179 = vld [vmem:[%s162 + $0x80] sm:$0xff]
  %v180 = vld [vmem:[%s162 + $0x88] sm:$0xff]
  %v181 = vld [vmem:[%s162 + $0x90] sm:$0xff]
  %v182 = vld [vmem:[%s162 + $0x98] sm:$0xff]
  %v183 = vld [vmem:[%s162 + $0xa0] sm:$0xff]
  %v184 = vld [vmem:[%s162 + $0xa8] sm:$0xff]
  %v185 = vld [vmem:[%s162 + $0xb0] sm:$0xff]
  %v186 = vld [vmem:[%s162 + $0xb8] sm:$0xff]
  %v187 = vld [vmem:[%s162 + $0xc0] sm:$0xff]
  %v188 = vld [vmem:[%s162 + $0xc8] sm:$0xff]
  %v189 = vld [vmem:[%s162 + $0xd0] sm:$0xff]
  %v190 = vld [vmem:[%s162 + $0xd8] sm:$0xff]
  %v191 = vld [vmem:[%s162 + $0xe0] sm:$0xff]
  %v192 = vld [vmem:[%s162 + $0xe8] sm:$0xff]
  %v193 = vld [vmem:[%s162 + $0xf0] sm:$0xff]
  %v194 = vld [vmem:[%s162 + $0xf8] sm:$0xff]
  %195 = vmatprep.subr.mxu0 0.0
  %196 = vmatpush1.msra.mxu0 %v163
  %197 = vmatprep.subr.mxu0 0.0
  %198 = vmatpush1.msra.mxu0 %v164
  %199 = vmatprep.subr.mxu0 0.0
  %200 = vmatpush1.msra.mxu0 %v165
  %201 = vmatprep.subr.mxu0 0.0
  %202 = vmatpush1.msra.mxu0 %v166
  %203 = vmatprep.subr.mxu0 0.0
  %204 = vmatpush1.msra.mxu0 %v167
  %205 = vmatprep.subr.mxu0 0.0
  %206 = vmatpush1.msra.mxu0 %v168
  %207 = vmatprep.subr.mxu0 0.0
  %208 = vmatpush1.msra.mxu0 %v169
  %209 = vmatprep.subr.mxu0 0.0
  %210 = vmatpush1.msra.mxu0 %v170
  %211 = vmatprep.subr.mxu0 0.0
  %212 = vmatpush1.msra.mxu0 %v171
  %213 = vmatprep.subr.mxu0 0.0
  %214 = vmatpush1.msra.mxu0 %v172
  %215 = vmatprep.subr.mxu0 0.0
  %216 = vmatpush1.msra.mxu0 %v173
  %217 = vmatprep.subr.mxu0 0.0
  %218 = vmatpush1.msra.mxu0 %v174
  %219 = vmatprep.subr.mxu0 0.0
  %220 = vmatpush1.msra.mxu0 %v175
  %221 = vmatprep.subr.mxu0 0.0
  %222 = vmatpush1.msra.mxu0 %v176
  %223 = vmatprep.subr.mxu0 0.0
  %224 = vmatpush1.msra.mxu0 %v177
  %225 = vmatprep.subr.mxu0 0.0
  %226 = vmatpush1.msra.mxu0 %v178
  %227 = vmatprep.subr.mxu0 0.0
  %228 = vmatpush1.msra.mxu0 %v179
  %229 = vmatprep.subr.mxu0 0.0
  %230 = vmatpush1.msra.mxu0 %v180
  %231 = vmatprep.subr.mxu0 0.0
  %232 = vmatpush1.msra.mxu0 %v181
  %233 = vmatprep.subr.mxu0 0.0
  %234 = vmatpush1.msra.mxu0 %v182
  %235 = vmatprep.subr.mxu0 0.0
  %236 = vmatpush1.msra.mxu0 %v183
  %237 = vmatprep.subr.mxu0 0.0
  %238 = vmatpush1.msra.mxu0 %v184
  %239 = vmatprep.subr.mxu0 0.0
  %240 = vmatpush1.msra.mxu0 %v185
  %241 = vmatprep.subr.mxu0 0.0
  %242 = vmatpush1.msra.mxu0 %v186
  %243 = vmatprep.subr.mxu0 0.0
  %244 = vmatpush1.msra.mxu0 %v187
  %245 = vmatprep.subr.mxu0 0.0
  %246 = vmatpush1.msra.mxu0 %v188
  %247 = vmatprep.subr.mxu0 0.0
  %248 = vmatpush1.msra.mxu0 %v189
  %249 = vmatprep.subr.mxu0 0.0
  %250 = vmatpush1.msra.mxu0 %v190
  %251 = vmatprep.subr.mxu0 0.0
  %252 = vmatpush1.msra.mxu0 %v191
  %253 = vmatprep.subr.mxu0 0.0
  %254 = vmatpush1.msra.mxu0 %v192
  %255 = vmatprep.subr.mxu0 0.0
  %256 = vmatpush1.msra.mxu0 %v193
  %257 = vmatprep.subr.mxu0 0.0
  %258 = vmatpush1.msra.mxu0 %v194
  %259 = vmatprep.mubr.f32.mxu0 %v25
  %260 = vmatmul.mubr.f32.gmra.mrb[0].mxu0 %v24
  %v261 = vpop.f32.mrb[0].mxu0
  %v262 = vadd.f32 0.0, %v261
  %v263 = vpop.f32.mrb[0].mxu0
  %264 = vmatprep.mubr.f32.mxu0 %v27
  %265 = vmatmul.mubr.f32.gmra.mrb[0].mxu0 %v26
  %v266 = vpop.f32.mrb[0].mxu0
  %v267 = vadd.f32 0.0, %v266
  %v268 = vpop.f32.mrb[0].mxu0
  %269 = vmatprep.mubr.f32.mxu0 %v29
  %270 = vmatmul.mubr.f32.gmra.mrb[0].mxu0 %v28
  %v271 = vpop.f32.mrb[0].mxu0
  %v272 = vadd.f32 0.0, %v271
  %v273 = vpop.f32.mrb[0].mxu0
  %274 = vmatprep.mubr.f32.mxu0 %v31
  %275 = vmatmul.mubr.f32.gmra.mrb[0].mxu0 %v30
  %v276 = vpop.f32.mrb[0].mxu0
  %v277 = vadd.f32 0.0, %v276
  %v278 = vpop.f32.mrb[0].mxu0
  %279 = vmatprep.mubr.f32.mxu0 %v33
  %280 = vmatmul.mubr.f32.gmra.mrb[0].mxu0 %v32
  %v281 = vpop.f32.mrb[0].mxu0
  %v282 = vadd.f32 0.0, %v281
  %v283 = vpop.f32.mrb[0].mxu0
  %284 = vmatprep.mubr.f32.mxu0 %v35
  %285 = vmatmul.mubr.f32.gmra.mrb[0].mxu0 %v34
  %v286 = vpop.f32.mrb[0].mxu0
  %v287 = vadd.f32 0.0, %v286
  %v288 = vpop.f32.mrb[0].mxu0
  %289 = vmatprep.mubr.f32.mxu0 %v37
  %290 = vmatmul.mubr.f32.gmra.mrb[0].mxu0 %v36
  %v291 = vpop.f32.mrb[0].mxu0
  %v292 = vadd.f32 0.0, %v291
  %v293 = vpop.f32.mrb[0].mxu0
  %294 = vmatprep.mubr.f32.mxu0 %v39
  %295 = vmatmul.mubr.f32.gmra.mrb[0].mxu0 %v38
  %v296 = vpop.f32.mrb[0].mxu0
  %v297 = vadd.f32 0.0, %v296
  %v298 = vpop.f32.mrb[0].mxu0
  %299 = vmatprep.mubr.f32.mxu0 %v41
  %300 = vmatmul.mubr.f32.gmra.mrb[0].mxu0 %v40
  %v301 = vpop.f32.mrb[0].mxu0
  %v302 = vadd.f32 0.0, %v301
  %v303 = vpop.f32.mrb[0].mxu0
  %304 = vmatprep.mubr.f32.mxu0 %v43
  %305 = vmatmul.mubr.f32.gmra.mrb[0].mxu0 %v42
  %v306 = vpop.f32.mrb[0].mxu0
  %v307 = vadd.f32 0.0, %v306
  %v308 = vpop.f32.mrb[0].mxu0
  %309 = vmatprep.mubr.f32.mxu0 %v45
  %310 = vmatmul.mubr.f32.gmra.mrb[0].mxu0 %v44
  %v311 = vpop.f32.mrb[0].mxu0
  %v312 = vadd.f32 0.0, %v311
  %v313 = vpop.f32.mrb[0].mxu0
  %314 = vmatprep.mubr.f32.mxu0 %v47
  %315 = vmatmul.mubr.f32.gmra.mrb[0].mxu0 %v46
  %v316 = vpop.f32.mrb[0].mxu0
  %v317 = vadd.f32 0.0, %v316
  %v318 = vpop.f32.mrb[0].mxu0
  %319 = vmatprep.mubr.f32.mxu0 %v49
  %320 = vmatmul.mubr.f32.gmra.mrb[0].mxu0 %v48
  %v321 = vpop.f32.mrb[0].mxu0
  %v322 = vadd.f32 0.0, %v321
  %v323 = vpop.f32.mrb[0].mxu0
  %324 = vmatprep.mubr.f32.mxu0 %v51
  %325 = vmatmul.mubr.f32.gmra.mrb[0].mxu0 %v50
  %v326 = vpop.f32.mrb[0].mxu0
  %v327 = vadd.f32 0.0, %v326
  %v328 = vpop.f32.mrb[0].mxu0
  %329 = vmatprep.mubr.f32.mxu0 %v53
  %330 = vmatmul.mubr.f32.gmra.mrb[0].mxu0 %v52
  %v331 = vpop.f32.mrb[0].mxu0
  %v332 = vadd.f32 0.0, %v331
  %v333 = vpop.f32.mrb[0].mxu0
  %334 = vmatprep.mubr.f32.mxu0 %v55
  %335 = vmatmul.mubr.f32.gmra.mrb[0].mxu0 %v54
  %v336 = vpop.f32.mrb[0].mxu0
  %v337 = vadd.f32 0.0, %v336
  %v338 = vpop.f32.mrb[0].mxu0
  %339 = vmatprep.mubr.f32.mxu0 %v57
  %340 = vmatmul.mubr.f32.gmra.mrb[0].mxu0 %v56
  %v341 = vpop.f32.mrb[0].mxu0
  %v342 = vadd.f32 0.0, %v341
  %v343 = vpop.f32.mrb[0].mxu0
  %344 = vmatprep.mubr.f32.mxu0 %v59
  %345 = vmatmul.mubr.f32.gmra.mrb[0].mxu0 %v58
  %v346 = vpop.f32.mrb[0].mxu0
  %v347 = vadd.f32 0.0, %v346
  %v348 = vpop.f32.mrb[0].mxu0
  %349 = vmatprep.mubr.f32.mxu0 %v61
  %350 = vmatmul.mubr.f32.gmra.mrb[0].mxu0 %v60
  %v351 = vpop.f32.mrb[0].mxu0
  %v352 = vadd.f32 0.0, %v351
  %v353 = vpop.f32.mrb[0].mxu0
  %354 = vmatprep.mubr.f32.mxu0 %v63
  %355 = vmatmul.mubr.f32.gmra.mrb[0].mxu0 %v62
  %v356 = vpop.f32.mrb[0].mxu0
  %v357 = vadd.f32 0.0, %v356
  %v358 = vpop.f32.mrb[0].mxu0
  %359 = vmatprep.mubr.f32.mxu0 %v65
  %360 = vmatmul.mubr.f32.gmra.mrb[0].mxu0 %v64
  %v361 = vpop.f32.mrb[0].mxu0
  %v362 = vpop.f32.mrb[0].mxu0
  %363 = vmatprep.mubr.f32.mxu0 %v67
  %364 = vmatmul.mubr.f32.gmra.mrb[0].mxu0 %v66
  %v365 = vpop.f32.mrb[0].mxu0
  %v366 = vpop.f32.mrb[0].mxu0
  %367 = vmatprep.mubr.f32.mxu0 %v69
  %368 = vmatmul.mubr.f32.gmra.mrb[0].mxu0 %v68
  %v369 = vpop.f32.mrb[0].mxu0
  %v370 = vpop.f32.mrb[0].mxu0
  %371 = vmatprep.mubr.f32.mxu0 %v71
  %372 = vmatmul.mubr.f32.gmra.mrb[0].mxu0 %v70
  %v373 = vpop.f32.mrb[0].mxu0
  %v374 = vpop.f32.mrb[0].mxu0
  %375 = vmatprep.mubr.f32.mxu0 %v73
  %376 = vmatmul.mubr.f32.gmra.mrb[0].mxu0 %v72
  %v377 = vpop.f32.mrb[0].mxu0
  %v378 = vpop.f32.mrb[0].mxu0
  %379 = vmatprep.mubr.f32.mxu0 %v75
  %380 = vmatmul.mubr.f32.gmra.mrb[0].mxu0 %v74
  %v381 = vpop.f32.mrb[0].mxu0
  %v382 = vpop.f32.mrb[0].mxu0
  %383 = vmatprep.mubr.f32.mxu0 %v77
  %384 = vmatmul.mubr.f32.gmra.mrb[0].mxu0 %v76
  %v385 = vpop.f32.mrb[0].mxu0
  %v386 = vpop.f32.mrb[0].mxu0
  %387 = vmatprep.mubr.f32.mxu0 %v79
  %388 = vmatmul.mubr.f32.gmra.mrb[0].mxu0 %v78
  %v389 = vpop.f32.mrb[0].mxu0
  %v390 = vpop.f32.mrb[0].mxu0
  %391 = vmatprep.mubr.f32.mxu0 %v81
  %392 = vmatmul.mubr.f32.gmra.mrb[0].mxu0 %v80
  %v393 = vpop.f32.mrb[0].mxu0
  %v394 = vpop.f32.mrb[0].mxu0
  %395 = vmatprep.mubr.f32.mxu0 %v83
  %396 = vmatmul.mubr.f32.gmra.mrb[0].mxu0 %v82
  %v397 = vpop.f32.mrb[0].mxu0
  %v398 = vpop.f32.mrb[0].mxu0
  %399 = vmatprep.mubr.f32.mxu0 %v85
  %400 = vmatmul.mubr.f32.gmra.mrb[0].mxu0 %v84
  %v401 = vpop.f32.mrb[0].mxu0
  %v402 = vpop.f32.mrb[0].mxu0
  %403 = vmatprep.mubr.f32.mxu0 %v87
  %404 = vmatmul.mubr.f32.gmra.mrb[0].mxu0 %v86
  %v405 = vpop.f32.mrb[0].mxu0
  %v406 = vpop.f32.mrb[0].mxu0
  %407 = vmatprep.mubr.f32.mxu0 %v89
  %408 = vmatmul.mubr.f32.gmra.mrb[0].mxu0 %v88
  %v409 = vpop.f32.mrb[0].mxu0
  %v410 = vadd.f32 0.0, %v409
  %v411 = vpop.f32.mrb[0].mxu0
  %412 = vmatprep.mubr.f32.mxu0 %v91
  %413 = vmatmul.mubr.f32.gmra.mrb[0].mxu0 %v90
  %v414 = vpop.f32.mrb[0].mxu0
  %v415 = vadd.f32 0.0, %v414
  %v416 = vpop.f32.mrb[0].mxu0
  %417 = vmatprep.mubr.f32.mxu0 %v93
  %418 = vmatmul.mubr.f32.gmra.mrb[0].mxu0 %v92
  %v419 = vpop.f32.mrb[0].mxu0
  %v420 = vadd.f32 0.0, %v419
  %v421 = vpop.f32.mrb[0].mxu0
  %422 = vmatprep.mubr.f32.mxu0 %v95
  %423 = vmatmul.mubr.f32.gmra.mrb[0].mxu0 %v94
  %v424 = vpop.f32.mrb[0].mxu0
  %v425 = vadd.f32 0.0, %v424
  %v426 = vpop.f32.mrb[0].mxu0
  %427 = vmatprep.mubr.f32.mxu0 %v97
  %428 = vmatmul.mubr.f32.gmra.mrb[0].mxu0 %v96
  %v429 = vpop.f32.mrb[0].mxu0
  %v430 = vadd.f32 0.0, %v429
  %v431 = vpop.f32.mrb[0].mxu0
  %432 = vmatprep.mubr.f32.mxu0 %v99
  %433 = vmatmul.mubr.f32.gmra.mrb[0].mxu0 %v98
  %v434 = vpop.f32.mrb[0].mxu0
  %v435 = vadd.f32 0.0, %v434
  %v436 = vpop.f32.mrb[0].mxu0
  %437 = vmatprep.mubr.f32.mxu0 %v101
  %438 = vmatmul.mubr.f32.gmra.mrb[0].mxu0 %v100
  %v439 = vpop.f32.mrb[0].mxu0
  %v440 = vadd.f32 0.0, %v439
  %v441 = vpop.f32.mrb[0].mxu0
  %442 = vmatprep.mubr.f32.mxu0 %v103
  %443 = vmatmul.mubr.f32.gmra.mrb[0].mxu0 %v102
  %v444 = vpop.f32.mrb[0].mxu0
  %v445 = vadd.f32 0.0, %v444
  %v446 = vpop.f32.mrb[0].mxu0
  %447 = vmatprep.mubr.f32.mxu0 %v105
  %448 = vmatmul.mubr.f32.gmra.mrb[0].mxu0 %v104
  %v449 = vpop.f32.mrb[0].mxu0
  %v450 = vadd.f32 0.0, %v449
  %v451 = vpop.f32.mrb[0].mxu0
  %452 = vmatprep.mubr.f32.mxu0 %v107
  %453 = vmatmul.mubr.f32.gmra.mrb[0].mxu0 %v106
  %v454 = vpop.f32.mrb[0].mxu0
  %v455 = vadd.f32 0.0, %v454
  %v456 = vpop.f32.mrb[0].mxu0
  %457 = vmatprep.mubr.f32.mxu0 %v109
  %458 = vmatmul.mubr.f32.gmra.mrb[0].mxu0 %v108
  %v459 = vpop.f32.mrb[0].mxu0
  %v460 = vadd.f32 0.0, %v459
  %v461 = vpop.f32.mrb[0].mxu0
  %462 = vmatprep.mubr.f32.mxu0 %v111
  %463 = vmatmul.mubr.f32.gmra.mrb[0].mxu0 %v110
  %v464 = vpop.f32.mrb[0].mxu0
  %v465 = vadd.f32 0.0, %v464
  %v466 = vpop.f32.mrb[0].mxu0
  %467 = vmatprep.mubr.f32.mxu0 %v113
  %468 = vmatmul.mubr.f32.gmra.mrb[0].mxu0 %v112
  %v469 = vpop.f32.mrb[0].mxu0
  %v470 = vadd.f32 0.0, %v469
  %v471 = vpop.f32.mrb[0].mxu0
  %472 = vmatprep.mubr.f32.mxu0 %v115
  %473 = vmatmul.mubr.f32.gmra.mrb[0].mxu0 %v114
  %v474 = vpop.f32.mrb[0].mxu0
  %v475 = vadd.f32 0.0, %v474
  %v476 = vpop.f32.mrb[0].mxu0
  %477 = vmatprep.mubr.f32.mxu0 %v117
  %478 = vmatmul.mubr.f32.gmra.mrb[0].mxu0 %v116
  %v479 = vpop.f32.mrb[0].mxu0
  %v480 = vadd.f32 0.0, %v479
  %v481 = vpop.f32.mrb[0].mxu0
  %482 = vmatprep.mubr.f32.mxu0 %v119
  %483 = vmatmul.mubr.f32.gmra.mrb[0].mxu0 %v118
  %v484 = vpop.f32.mrb[0].mxu0
  %v485 = vadd.f32 0.0, %v484
  %v486 = vpop.f32.mrb[0].mxu0
  %487 = vmatprep.mubr.f32.mxu0 %v121
  %488 = vmatmul.mubr.f32.gmra.mrb[0].mxu0 %v120
  %v489 = vpop.f32.mrb[0].mxu0
  %v490 = vadd.f32 0.0, %v489
  %v491 = vpop.f32.mrb[0].mxu0
  %492 = vmatprep.mubr.f32.mxu0 %v157
  %493 = vmatmul.mubr.f32.gmra.mrb[0].mxu0 %v156
  %v494 = vpop.f32.mrb[0].mxu0
  %v495 = vadd.f32 0.0, %v494
  %v496 = vpop.f32.mrb[0].mxu0
  %497 = vmatprep.mubr.f32.mxu0 %v159
  %498 = vmatmul.mubr.f32.gmra.mrb[0].mxu0 %v158
  %v499 = vpop.f32.mrb[0].mxu0
  %v500 = vadd.f32 0.0, %v499
  %v501 = vpop.f32.mrb[0].mxu0
  %502 = vmatprep.mubr.f32.mxu0 %v161
  %503 = vmatmul.mubr.f32.gmra.mrb[0].mxu0 %v160
  %v504 = vpop.f32.mrb[0].mxu0
  %v505 = vadd.f32 0.0, %v504
  %v506 = vpop.f32.mrb[0].mxu0
  %507 = vdwg.mxu0
  %508 = vmatprep.subr.mxu0 0.0
  %509 = vmatpush1.msra.mxu0 %v124
  %510 = vmatprep.subr.mxu0 0.0
  %511 = vmatpush1.msra.mxu0 %v125
  %512 = vmatprep.subr.mxu0 0.0
  %513 = vmatpush1.msra.mxu0 %v126
  %514 = vmatprep.subr.mxu0 0.0
  %515 = vmatpush1.msra.mxu0 %v127
  %516 = vmatprep.subr.mxu0 0.0
  %517 = vmatpush1.msra.mxu0 %v128
  %518 = vmatprep.subr.mxu0 0.0
  %519 = vmatpush1.msra.mxu0 %v129
  %520 = vmatprep.subr.mxu0 0.0
  %521 = vmatpush1.msra.mxu0 %v130
  %522 = vmatprep.subr.mxu0 0.0
  %523 = vmatpush1.msra.mxu0 %v131
  %524 = vmatprep.subr.mxu0 0.0
  %525 = vmatpush1.msra.mxu0 %v132
  %526 = vmatprep.subr.mxu0 0.0
  %527 = vmatpush1.msra.mxu0 %v133
  %528 = vmatprep.subr.mxu0 0.0
  %529 = vmatpush1.msra.mxu0 %v134
  %530 = vmatprep.subr.mxu0 0.0
  %531 = vmatpush1.msra.mxu0 %v135
  %532 = vmatprep.subr.mxu0 0.0
  %533 = vmatpush1.msra.mxu0 %v136
  %534 = vmatprep.subr.mxu0 0.0
  %535 = vmatpush1.msra.mxu0 %v137
  %536 = vmatprep.subr.mxu0 0.0
  %537 = vmatpush1.msra.mxu0 %v138
  %538 = vmatprep.subr.mxu0 0.0
  %539 = vmatpush1.msra.mxu0 %v139
  %540 = vmatprep.subr.mxu0 0.0
  %541 = vmatpush1.msra.mxu0 %v140
  %542 = vmatprep.subr.mxu0 0.0
  %543 = vmatpush1.msra.mxu0 %v141
  %544 = vmatprep.subr.mxu0 0.0
  %545 = vmatpush1.msra.mxu0 %v142
  %546 = vmatprep.subr.mxu0 0.0
  %547 = vmatpush1.msra.mxu0 %v143
  %548 = vmatprep.subr.mxu0 0.0
  %549 = vmatpush1.msra.mxu0 %v144
  %550 = vmatprep.subr.mxu0 0.0
  %551 = vmatpush1.msra.mxu0 %v145
  %552 = vmatprep.subr.mxu0 0.0
  %553 = vmatpush1.msra.mxu0 %v146
  %554 = vmatprep.subr.mxu0 0.0
  %555 = vmatpush1.msra.mxu0 %v147
  %556 = vmatprep.subr.mxu0 0.0
  %557 = vmatpush1.msra.mxu0 %v148
  %558 = vmatprep.subr.mxu0 0.0
  %559 = vmatpush1.msra.mxu0 %v149
  %560 = vmatprep.subr.mxu0 0.0
  %561 = vmatpush1.msra.mxu0 %v150
  %562 = vmatprep.subr.mxu0 0.0
  %563 = vmatpush1.msra.mxu0 %v151
  %564 = vmatprep.subr.mxu0 0.0
  %565 = vmatpush1.msra.mxu0 %v152
  %566 = vmatprep.subr.mxu0 0.0
  %567 = vmatpush1.msra.mxu0 %v153
  %568 = vmatprep.subr.mxu0 0.0
  %569 = vmatpush1.msra.mxu0 %v154
  %570 = vmatprep.subr.mxu0 0.0
  %571 = vmatpush1.msra.mxu0 %v155
  %572 = vmatprep.mubr.f32.mxu0 %v21
  %573 = vmatmul.mubr.f32.gmra.mrb[0].mxu0 %v20
  %v574 = vpop.f32.mrb[0].mxu0
  %v575 = vadd.f32 %v262, %v574
  %v576 = vpop.f32.mrb[0].mxu0
  %577 = vmatprep.mubr.f32.mxu0 %v23
  %578 = vmatmul.mubr.f32.gmra.mrb[0].mxu0 %v22
  %v579 = vpop.f32.mrb[0].mxu0
  %v580 = vadd.f32 %v267, %v579
  %v581 = vpop.f32.mrb[0].mxu0
  %582 = vmatprep.mubr.f32.mxu0 %v25
  %583 = vmatmul.mubr.f32.gmra.mrb[0].mxu0 %v24
  %v584 = vpop.f32.mrb[0].mxu0
  %v585 = vadd.f32 %v272, %v584
  %v586 = vpop.f32.mrb[0].mxu0
  %587 = vmatprep.mubr.f32.mxu0 %v27
  %588 = vmatmul.mubr.f32.gmra.mrb[0].mxu0 %v26
  %v589 = vpop.f32.mrb[0].mxu0
  %v590 = vadd.f32 %v277, %v589
  %v591 = vpop.f32.mrb[0].mxu0
  %592 = vmatprep.mubr.f32.mxu0 %v29
  %593 = vmatmul.mubr.f32.gmra.mrb[0].mxu0 %v28
  %v594 = vpop.f32.mrb[0].mxu0
  %v595 = vadd.f32 %v282, %v594
  %v596 = vpop.f32.mrb[0].mxu0
  %597 = vmatprep.mubr.f32.mxu0 %v31
  %598 = vmatmul.mubr.f32.gmra.mrb[0].mxu0 %v30
  %v599 = vpop.f32.mrb[0].mxu0
  %v600 = vadd.f32 %v287, %v599
  %v601 = vpop.f32.mrb[0].mxu0
  %602 = vmatprep.mubr.f32.mxu0 %v33
  %603 = vmatmul.mubr.f32.gmra.mrb[0].mxu0 %v32
  %v604 = vpop.f32.mrb[0].mxu0
  %v605 = vadd.f32 %v292, %v604
  %v606 = vpop.f32.mrb[0].mxu0
  %607 = vmatprep.mubr.f32.mxu0 %v35
  %608 = vmatmul.mubr.f32.gmra.mrb[0].mxu0 %v34
  %v609 = vpop.f32.mrb[0].mxu0
  %v610 = vadd.f32 %v297, %v609
  %v611 = vpop.f32.mrb[0].mxu0
  %612 = vmatprep.mubr.f32.mxu0 %v37
  %613 = vmatmul.mubr.f32.gmra.mrb[0].mxu0 %v36
  %v614 = vpop.f32.mrb[0].mxu0
  %v615 = vadd.f32 %v302, %v614
  %v616 = vpop.f32.mrb[0].mxu0
  %617 = vmatprep.mubr.f32.mxu0 %v39
  %618 = vmatmul.mubr.f32.gmra.mrb[0].mxu0 %v38
  %v619 = vpop.f32.mrb[0].mxu0
  %v620 = vadd.f32 %v307, %v619
  %v621 = vpop.f32.mrb[0].mxu0
  %622 = vmatprep.mubr.f32.mxu0 %v41
  %623 = vmatmul.mubr.f32.gmra.mrb[0].mxu0 %v40
  %v624 = vpop.f32.mrb[0].mxu0
  %v625 = vadd.f32 %v312, %v624
  %v626 = vpop.f32.mrb[0].mxu0
  %627 = vmatprep.mubr.f32.mxu0 %v43
  %628 = vmatmul.mubr.f32.gmra.mrb[0].mxu0 %v42
  %v629 = vpop.f32.mrb[0].mxu0
  %v630 = vadd.f32 %v317, %v629
  %v631 = vpop.f32.mrb[0].mxu0
  %632 = vmatprep.mubr.f32.mxu0 %v45
  %633 = vmatmul.mubr.f32.gmra.mrb[0].mxu0 %v44
  %v634 = vpop.f32.mrb[0].mxu0
  %v635 = vadd.f32 %v322, %v634
  %v636 = vpop.f32.mrb[0].mxu0
  %637 = vmatprep.mubr.f32.mxu0 %v47
  %638 = vmatmul.mubr.f32.gmra.mrb[0].mxu0 %v46
  %v639 = vpop.f32.mrb[0].mxu0
  %v640 = vadd.f32 %v327, %v639
  %v641 = vpop.f32.mrb[0].mxu0
  %642 = vmatprep.mubr.f32.mxu0 %v49
  %643 = vmatmul.mubr.f32.gmra.mrb[0].mxu0 %v48
  %v644 = vpop.f32.mrb[0].mxu0
  %v645 = vadd.f32 %v332, %v644
  %v646 = vpop.f32.mrb[0].mxu0
  %647 = vmatprep.mubr.f32.mxu0 %v51
  %648 = vmatmul.mubr.f32.gmra.mrb[0].mxu0 %v50
  %v649 = vpop.f32.mrb[0].mxu0
  %v650 = vadd.f32 %v337, %v649
  %v651 = vpop.f32.mrb[0].mxu0
  %652 = vmatprep.mubr.f32.mxu0 %v53
  %653 = vmatmul.mubr.f32.gmra.mrb[0].mxu0 %v52
  %v654 = vpop.f32.mrb[0].mxu0
  %v655 = vadd.f32 %v342, %v654
  %v656 = vpop.f32.mrb[0].mxu0
  %657 = vmatprep.mubr.f32.mxu0 %v55
  %658 = vmatmul.mubr.f32.gmra.mrb[0].mxu0 %v54
  %v659 = vpop.f32.mrb[0].mxu0
  %v660 = vadd.f32 %v347, %v659
  %v661 = vpop.f32.mrb[0].mxu0
  %662 = vmatprep.mubr.f32.mxu0 %v57
  %663 = vmatmul.mubr.f32.gmra.mrb[0].mxu0 %v56
  %v664 = vpop.f32.mrb[0].mxu0
  %v665 = vadd.f32 %v352, %v664
  %v666 = vpop.f32.mrb[0].mxu0
  %667 = vmatprep.mubr.f32.mxu0 %v59
  %668 = vmatmul.mubr.f32.gmra.mrb[0].mxu0 %v58
  %v669 = vpop.f32.mrb[0].mxu0
  %v670 = vadd.f32 %v357, %v669
  %v671 = vpop.f32.mrb[0].mxu0
  %672 = vmatprep.mubr.f32.mxu0 %v61
  %673 = vmatmul.mubr.f32.gmra.mrb[0].mxu0 %v60
  %v674 = vpop.f32.mrb[0].mxu0
  %v675 = vpop.f32.mrb[0].mxu0
  %676 = vmatprep.mubr.f32.mxu0 %v63
  %677 = vmatmul.mubr.f32.gmra.mrb[0].mxu0 %v62
  %v678 = vpop.f32.mrb[0].mxu0
  %v679 = vpop.f32.mrb[0].mxu0
  %680 = vmatprep.mubr.f32.mxu0 %v65
  %681 = vmatmul.mubr.f32.gmra.mrb[0].mxu0 %v64
  %v682 = vpop.f32.mrb[0].mxu0
  %v683 = vpop.f32.mrb[0].mxu0
  %684 = vmatprep.mubr.f32.mxu0 %v67
  %685 = vmatmul.mubr.f32.gmra.mrb[0].mxu0 %v66
  %v686 = vpop.f32.mrb[0].mxu0
  %v687 = vpop.f32.mrb[0].mxu0
  %688 = vmatprep.mubr.f32.mxu0 %v69
  %689 = vmatmul.mubr.f32.gmra.mrb[0].mxu0 %v68
  %v690 = vpop.f32.mrb[0].mxu0
  %v691 = vpop.f32.mrb[0].mxu0
  %692 = vmatprep.mubr.f32.mxu0 %v71
  %693 = vmatmul.mubr.f32.gmra.mrb[0].mxu0 %v70
  %v694 = vpop.f32.mrb[0].mxu0
  %v695 = vpop.f32.mrb[0].mxu0
  %696 = vmatprep.mubr.f32.mxu0 %v73
  %697 = vmatmul.mubr.f32.gmra.mrb[0].mxu0 %v72
  %v698 = vpop.f32.mrb[0].mxu0
  %v699 = vpop.f32.mrb[0].mxu0
  %700 = vmatprep.mubr.f32.mxu0 %v75
  %701 = vmatmul.mubr.f32.gmra.mrb[0].mxu0 %v74
  %v702 = vpop.f32.mrb[0].mxu0
  %v703 = vpop.f32.mrb[0].mxu0
  %704 = vmatprep.mubr.f32.mxu0 %v77
  %705 = vmatmul.mubr.f32.gmra.mrb[0].mxu0 %v76
  %v706 = vpop.f32.mrb[0].mxu0
  %v707 = vpop.f32.mrb[0].mxu0
  %708 = vmatprep.mubr.f32.mxu0 %v79
  %709 = vmatmul.mubr.f32.gmra.mrb[0].mxu0 %v78
  %v710 = vpop.f32.mrb[0].mxu0
  %v711 = vpop.f32.mrb[0].mxu0
  %712 = vmatprep.mubr.f32.mxu0 %v81
  %713 = vmatmul.mubr.f32.gmra.mrb[0].mxu0 %v80
  %v714 = vpop.f32.mrb[0].mxu0
  %v715 = vpop.f32.mrb[0].mxu0
  %716 = vmatprep.mubr.f32.mxu0 %v83
  %717 = vmatmul.mubr.f32.gmra.mrb[0].mxu0 %v82
  %v718 = vpop.f32.mrb[0].mxu0
  %v719 = vpop.f32.mrb[0].mxu0
  %720 = vmatprep.mubr.f32.mxu0 %v85
  %721 = vmatmul.mubr.f32.gmra.mrb[0].mxu0 %v84
  %v722 = vpop.f32.mrb[0].mxu0
  %v723 = vadd.f32 %v410, %v722
  %v724 = vpop.f32.mrb[0].mxu0
  %725 = vmatprep.mubr.f32.mxu0 %v87
  %726 = vmatmul.mubr.f32.gmra.mrb[0].mxu0 %v86
  %v727 = vpop.f32.mrb[0].mxu0
  %v728 = vadd.f32 %v415, %v727
  %v729 = vpop.f32.mrb[0].mxu0
  %730 = vmatprep.mubr.f32.mxu0 %v89
  %731 = vmatmul.mubr.f32.gmra.mrb[0].mxu0 %v88
  %v732 = vpop.f32.mrb[0].mxu0
  %v733 = vadd.f32 %v420, %v732
  %v734 = vpop.f32.mrb[0].mxu0
  %735 = vmatprep.mubr.f32.mxu0 %v91
  %736 = vmatmul.mubr.f32.gmra.mrb[0].mxu0 %v90
  %v737 = vpop.f32.mrb[0].mxu0
  %v738 = vadd.f32 %v425, %v737
  %v739 = vpop.f32.mrb[0].mxu0
  %740 = vmatprep.mubr.f32.mxu0 %v93
  %741 = vmatmul.mubr.f32.gmra.mrb[0].mxu0 %v92
  %v742 = vpop.f32.mrb[0].mxu0
  %v743 = vadd.f32 %v430, %v742
  %v744 = vpop.f32.mrb[0].mxu0
  %745 = vmatprep.mubr.f32.mxu0 %v95
  %746 = vmatmul.mubr.f32.gmra.mrb[0].mxu0 %v94
  %v747 = vpop.f32.mrb[0].mxu0
  %v748 = vadd.f32 %v435, %v747
  %v749 = vpop.f32.mrb[0].mxu0
  %750 = vmatprep.mubr.f32.mxu0 %v97
  %751 = vmatmul.mubr.f32.gmra.mrb[0].mxu0 %v96
  %v752 = vpop.f32.mrb[0].mxu0
  %v753 = vadd.f32 %v440, %v752
  %v754 = vpop.f32.mrb[0].mxu0
  %755 = vmatprep.mubr.f32.mxu0 %v99
  %756 = vmatmul.mubr.f32.gmra.mrb[0].mxu0 %v98
  %v757 = vpop.f32.mrb[0].mxu0
  %v758 = vadd.f32 %v445, %v757
  %v759 = vpop.f32.mrb[0].mxu0
  %760 = vmatprep.mubr.f32.mxu0 %v101
  %761 = vmatmul.mubr.f32.gmra.mrb[0].mxu0 %v100
  %v762 = vpop.f32.mrb[0].mxu0
  %v763 = vadd.f32 %v450, %v762
  %v764 = vpop.f32.mrb[0].mxu0
  %765 = vmatprep.mubr.f32.mxu0 %v103
  %766 = vmatmul.mubr.f32.gmra.mrb[0].mxu0 %v102
  %v767 = vpop.f32.mrb[0].mxu0
  %v768 = vadd.f32 %v455, %v767
  %v769 = vpop.f32.mrb[0].mxu0
  %770 = vmatprep.mubr.f32.mxu0 %v105
  %771 = vmatmul.mubr.f32.gmra.mrb[0].mxu0 %v104
  %v772 = vpop.f32.mrb[0].mxu0
  %v773 = vadd.f32 %v460, %v772
  %v774 = vpop.f32.mrb[0].mxu0
  %775 = vmatprep.mubr.f32.mxu0 %v107
  %776 = vmatmul.mubr.f32.gmra.mrb[0].mxu0 %v106
  %v777 = vpop.f32.mrb[0].mxu0
  %v778 = vadd.f32 %v465, %v777
  %v779 = vpop.f32.mrb[0].mxu0
  %780 = vmatprep.mubr.f32.mxu0 %v109
  %781 = vmatmul.mubr.f32.gmra.mrb[0].mxu0 %v108
  %v782 = vpop.f32.mrb[0].mxu0
  %v783 = vadd.f32 %v470, %v782
  %v784 = vpop.f32.mrb[0].mxu0
  %785 = vmatprep.mubr.f32.mxu0 %v111
  %786 = vmatmul.mubr.f32.gmra.mrb[0].mxu0 %v110
  %v787 = vpop.f32.mrb[0].mxu0
  %v788 = vadd.f32 %v475, %v787
  %v789 = vpop.f32.mrb[0].mxu0
  %790 = vmatprep.mubr.f32.mxu0 %v113
  %791 = vmatmul.mubr.f32.gmra.mrb[0].mxu0 %v112
  %v792 = vpop.f32.mrb[0].mxu0
  %v793 = vadd.f32 %v480, %v792
  %v794 = vpop.f32.mrb[0].mxu0
  %795 = vmatprep.mubr.f32.mxu0 %v115
  %796 = vmatmul.mubr.f32.gmra.mrb[0].mxu0 %v114
  %v797 = vpop.f32.mrb[0].mxu0
  %v798 = vadd.f32 %v485, %v797
  %v799 = vpop.f32.mrb[0].mxu0
  %800 = vmatprep.mubr.f32.mxu0 %v117
  %801 = vmatmul.mubr.f32.gmra.mrb[0].mxu0 %v116
  %v802 = vpop.f32.mrb[0].mxu0
  %v803 = vadd.f32 %v490, %v802
  %v804 = vpop.f32.mrb[0].mxu0
  %805 = vmatprep.mubr.f32.mxu0 %v119
  %806 = vmatmul.mubr.f32.gmra.mrb[0].mxu0 %v118
  %v807 = vpop.f32.mrb[0].mxu0
  %v808 = vadd.f32 %v495, %v807
  %v809 = vpop.f32.mrb[0].mxu0
  %810 = vmatprep.mubr.f32.mxu0 %v121
  %811 = vmatmul.mubr.f32.gmra.mrb[0].mxu0 %v120
  %v812 = vpop.f32.mrb[0].mxu0
  %v813 = vadd.f32 %v500, %v812
  %v814 = vpop.f32.mrb[0].mxu0
  %815 = vmatprep.mubr.f32.mxu0 %v123
  %816 = vmatmul.mubr.f32.gmra.mrb[0].mxu0 %v122
  %v817 = vpop.f32.mrb[0].mxu0
  %v818 = vadd.f32 %v505, %v817
  %v819 = vpop.f32.mrb[0].mxu0
  %820 = vdwg.mxu0
  %v821 = vld [vmem:[%s0 + $0x40] sm:$0xff]
  %v822 = vld [vmem:[%s0 + $0x48] sm:$0xff]
  %v823 = vld [vmem:[%s0 + $0x50] sm:$0xff]
  %v824 = vld [vmem:[%s0 + $0x58] sm:$0xff]
  %v825 = vld [vmem:[%s0 + $0x60] sm:$0xff]
  %v826 = vld [vmem:[%s0 + $0x68] sm:$0xff]
  %v827 = vld [vmem:[%s0 + $0x70] sm:$0xff]
  %v828 = vld [vmem:[%s0 + $0x78] sm:$0xff]
  %v829 = vld [vmem:[%s0 + $0x80] sm:$0xff]
  %v830 = vld [vmem:[%s0 + $0x88] sm:$0xff]
  %v831 = vld [vmem:[%s0 + $0x90] sm:$0xff]
  %v832 = vld [vmem:[%s0 + $0x98] sm:$0xff]
  %v833 = vld [vmem:[%s0 + $0xa0] sm:$0xff]
  %v834 = vld [vmem:[%s0 + $0xa8] sm:$0xff]
  %v835 = vld [vmem:[%s0 + $0xb0] sm:$0xff]
  %v836 = vld [vmem:[%s0 + $0xb8] sm:$0xff]
  %v837 = vld [vmem:[%s0 + $0xc0] sm:$0xff]
  %v838 = vld [vmem:[%s0 + $0xc8] sm:$0xff]
  %v839 = vld [vmem:[%s0 + $0xd0] sm:$0xff]
  %v840 = vld [vmem:[%s0 + $0xd8] sm:$0xff]
  %v841 = vld [vmem:[%s0 + $0xe0] sm:$0xff]
  %v842 = vld [vmem:[%s0 + $0xe8] sm:$0xff]
  %v843 = vld [vmem:[%s0 + $0xf0] sm:$0xff]
  %v844 = vld [vmem:[%s0 + $0xf8] sm:$0xff]
  %v845 = vld [vmem:[%s0 + $0x100] sm:$0xff]
  %v846 = vld [vmem:[%s0 + $0x108] sm:$0xff]
  %v847 = vld [vmem:[%s0 + $0x110] sm:$0xff]
  %v848 = vld [vmem:[%s0 + $0x118] sm:$0xff]
  %v849 = vld [vmem:[%s0 + $0x120] sm:$0xff]
  %v850 = vld [vmem:[%s0 + $0x128] sm:$0xff]
  %v851 = vld [vmem:[%s0 + $0x130] sm:$0xff]
  %v852 = vld [vmem:[%s0 + $0x138] sm:$0xff]
  %v853 = vld [vmem:[%s0 + $0x140] sm:$0xff]
  %v854 = vld [vmem:[%s0 + $0x148] sm:$0xff]
  %v855 = vld [vmem:[%s0 + $0x150] sm:$0xff]
  %v856 = vld [vmem:[%s0 + $0x158] sm:$0xff]
  %v857 = vld [vmem:[%s0 + $0x160] sm:$0xff]
  %v858 = vld [vmem:[%s0 + $0x168] sm:$0xff]
  %v859 = vld [vmem:[%s0 + $0x170] sm:$0xff]
  %v860 = vld [vmem:[%s0 + $0x178] sm:$0xff]
  %v861 = vld [vmem:[%s0 + $0x180] sm:$0xff]
  %v862 = vld [vmem:[%s0 + $0x188] sm:$0xff]
  %v863 = vld [vmem:[%s0 + $0x190] sm:$0xff]
  %v864 = vld [vmem:[%s0 + $0x198] sm:$0xff]
  %v865 = vld [vmem:[%s0 + $0x1a0] sm:$0xff]
  %v866 = vld [vmem:[%s0 + $0x1a8] sm:$0xff]
  %v867 = vld [vmem:[%s0 + $0x1b0] sm:$0xff]
  %v868 = vld [vmem:[%s0 + $0x1b8] sm:$0xff]
  %v869 = vld [vmem:[%s0 + $0x1c0] sm:$0xff]
  %v870 = vld [vmem:[%s0 + $0x1c8] sm:$0xff]
  %v871 = vld [vmem:[%s0 + $0x1d0] sm:$0xff]
  %v872 = vld [vmem:[%s0 + $0x1d8] sm:$0xff]
  %v873 = vld [vmem:[%s0 + $0x1e0] sm:$0xff]
  %v874 = vld [vmem:[%s0 + $0x1e8] sm:$0xff]
  %v875 = vld [vmem:[%s0 + $0x1f0] sm:$0xff]
  %v876 = vld [vmem:[%s0 + $0x1f8] sm:$0xff]
  %v877 = vld [vmem:[%s0 + $0x200] sm:$0xff]
  %v878 = vld [vmem:[%s0 + $0x208] sm:$0xff]
  %v879 = vld [vmem:[%s0 + $0x210] sm:$0xff]
  %v880 = vld [vmem:[%s0 + $0x218] sm:$0xff]
  %v881 = vld [vmem:[%s0 + $0x220] sm:$0xff]
  %v882 = vld [vmem:[%s0 + $0x228] sm:$0xff]
  %v883 = vld [vmem:[%s0 + $0x230] sm:$0xff]
  %v884 = vld [vmem:[%s0 + $0x238] sm:$0xff]
  %v885 = vld [vmem:[%s0 + $0x240] sm:$0xff]
  %v886 = vld [vmem:[%s0 + $0x248] sm:$0xff]
  %v887 = vld [vmem:[%s0 + $0x250] sm:$0xff]
  %v888 = vld [vmem:[%s0 + $0x258] sm:$0xff]
  %v889 = vld [vmem:[%s0 + $0x260] sm:$0xff]
  %v890 = vld [vmem:[%s0 + $0x268] sm:$0xff]
  %v891 = vld [vmem:[%s0 + $0x270] sm:$0xff]
  %v892 = vld [vmem:[%s0 + $0x278] sm:$0xff]
  %v893 = vld [vmem:[%s0 + $0x280] sm:$0xff]
  %v894 = vld [vmem:[%s0 + $0x288] sm:$0xff]
  %v895 = vld [vmem:[%s0 + $0x290] sm:$0xff]
  %v896 = vld [vmem:[%s0 + $0x298] sm:$0xff]
  %v897 = vld [vmem:[%s0 + $0x2a0] sm:$0xff]
  %v898 = vld [vmem:[%s0 + $0x2a8] sm:$0xff]
  %v899 = vld [vmem:[%s0 + $0x2b0] sm:$0xff]
  %v900 = vld [vmem:[%s0 + $0x2b8] sm:$0xff]
  %v901 = vld [vmem:[%s0 + $0x2c0] sm:$0xff]
  %v902 = vld [vmem:[%s0 + $0x2c8] sm:$0xff]
  %v903 = vld [vmem:[%s0 + $0x2d0] sm:$0xff]
  %v904 = vld [vmem:[%s0 + $0x2d8] sm:$0xff]
  %v905 = vld [vmem:[%s0 + $0x2e0] sm:$0xff]
  %v906 = vld [vmem:[%s0 + $0x2e8] sm:$0xff]
  %v907 = vld [vmem:[%s0 + $0x2f0] sm:$0xff]
  %v908 = vld [vmem:[%s0 + $0x2f8] sm:$0xff]
  %v909 = vld [vmem:[%s0 + $0x300] sm:$0xff]
  %v910 = vld [vmem:[%s0 + $0x308] sm:$0xff]
  %v911 = vld [vmem:[%s0 + $0x310] sm:$0xff]
  %v912 = vld [vmem:[%s0 + $0x318] sm:$0xff]
  %v913 = vld [vmem:[%s0 + $0x320] sm:$0xff]
  %v914 = vld [vmem:[%s0 + $0x328] sm:$0xff]
  %v915 = vld [vmem:[%s0 + $0x330] sm:$0xff]
  %v916 = vld [vmem:[%s0 + $0x338] sm:$0xff]
  %v917 = vld [vmem:[%s0 + $0x340] sm:$0xff]
  %v918 = vld [vmem:[%s0 + $0x348] sm:$0xff]
  %v919 = vld [vmem:[%s0 + $0x350] sm:$0xff]
  %v920 = vld [vmem:[%s0 + $0x358] sm:$0xff]
  %v921 = vld [vmem:[%s0 + $0x360] sm:$0xff]
  %v922 = vld [vmem:[%s0 + $0x368] sm:$0xff]
  %v923 = vld [vmem:[%s0 + $0x370] sm:$0x3]
  %v924 = vld [vmem:[%s0 + $0x378] sm:$0x3]
  %s925 = scalar_lea.vmem %s1, 512
  %v926 = vld [vmem:[%s925] sm:$0xff]
  %v927 = vld [vmem:[%s925 + $0x8] sm:$0xff]
  %v928 = vld [vmem:[%s925 + $0x10] sm:$0xff]
  %v929 = vld [vmem:[%s925 + $0x18] sm:$0xff]
  %v930 = vld [vmem:[%s925 + $0x20] sm:$0xff]
  %v931 = vld [vmem:[%s925 + $0x28] sm:$0xff]
  %v932 = vld [vmem:[%s925 + $0x30] sm:$0xff]
  %v933 = vld [vmem:[%s925 + $0x38] sm:$0xff]
  %v934 = vld [vmem:[%s925 + $0x40] sm:$0xff]
  %v935 = vld [vmem:[%s925 + $0x48] sm:$0xff]
  %v936 = vld [vmem:[%s925 + $0x50] sm:$0xff]
  %v937 = vld [vmem:[%s925 + $0x58] sm:$0xff]
  %v938 = vld [vmem:[%s925 + $0x60] sm:$0xff]
  %v939 = vld [vmem:[%s925 + $0x68] sm:$0xff]
  %v940 = vld [vmem:[%s925 + $0x70] sm:$0xff]
  %v941 = vld [vmem:[%s925 + $0x78] sm:$0xff]
  %v942 = vld [vmem:[%s925 + $0x80] sm:$0xff]
  %v943 = vld [vmem:[%s925 + $0x88] sm:$0xff]
  %v944 = vld [vmem:[%s925 + $0x90] sm:$0xff]
  %v945 = vld [vmem:[%s925 + $0x98] sm:$0xff]
  %v946 = vld [vmem:[%s925 + $0xa0] sm:$0xff]
  %v947 = vld [vmem:[%s925 + $0xa8] sm:$0xff]
  %v948 = vld [vmem:[%s925 + $0xb0] sm:$0xff]
  %v949 = vld [vmem:[%s925 + $0xb8] sm:$0xff]
  %v950 = vld [vmem:[%s925 + $0xc0] sm:$0xff]
  %v951 = vld [vmem:[%s925 + $0xc8] sm:$0xff]
  %v952 = vld [vmem:[%s925 + $0xd0] sm:$0xff]
  %v953 = vld [vmem:[%s925 + $0xd8] sm:$0xff]
  %v954 = vld [vmem:[%s925 + $0xe0] sm:$0xff]
  %v955 = vld [vmem:[%s925 + $0xe8] sm:$0xff]
  %v956 = vld [vmem:[%s925 + $0xf0] sm:$0xff]
  %v957 = vld [vmem:[%s925 + $0xf8] sm:$0xff]
  %958 = vmatprep.subr.mxu0 0.0
  %959 = vmatpush1.msra.mxu0 %v926
  %960 = vmatprep.subr.mxu0 0.0
  %961 = vmatpush1.msra.mxu0 %v927
  %962 = vmatprep.subr.mxu0 0.0
  %963 = vmatpush1.msra.mxu0 %v928
  %964 = vmatprep.subr.mxu0 0.0
  %965 = vmatpush1.msra.mxu0 %v929
  %966 = vmatprep.subr.mxu0 0.0
  %967 = vmatpush1.msra.mxu0 %v930
  %968 = vmatprep.subr.mxu0 0.0
  %969 = vmatpush1.msra.mxu0 %v931
  %970 = vmatprep.subr.mxu0 0.0
  %971 = vmatpush1.msra.mxu0 %v932
  %972 = vmatprep.subr.mxu0 0.0
  %973 = vmatpush1.msra.mxu0 %v933
  %974 = vmatprep.subr.mxu0 0.0
  %975 = vmatpush1.msra.mxu0 %v934
  %976 = vmatprep.subr.mxu0 0.0
  %977 = vmatpush1.msra.mxu0 %v935
  %978 = vmatprep.subr.mxu0 0.0
  %979 = vmatpush1.msra.mxu0 %v936
  %980 = vmatprep.subr.mxu0 0.0
  %981 = vmatpush1.msra.mxu0 %v937
  %982 = vmatprep.subr.mxu0 0.0
  %983 = vmatpush1.msra.mxu0 %v938
  %984 = vmatprep.subr.mxu0 0.0
  %985 = vmatpush1.msra.mxu0 %v939
  %986 = vmatprep.subr.mxu0 0.0
  %987 = vmatpush1.msra.mxu0 %v940
  %988 = vmatprep.subr.mxu0 0.0
  %989 = vmatpush1.msra.mxu0 %v941
  %990 = vmatprep.subr.mxu0 0.0
  %991 = vmatpush1.msra.mxu0 %v942
  %992 = vmatprep.subr.mxu0 0.0
  %993 = vmatpush1.msra.mxu0 %v943
  %994 = vmatprep.subr.mxu0 0.0
  %995 = vmatpush1.msra.mxu0 %v944
  %996 = vmatprep.subr.mxu0 0.0
  %997 = vmatpush1.msra.mxu0 %v945
  %998 = vmatprep.subr.mxu0 0.0
  %999 = vmatpush1.msra.mxu0 %v946
  %1000 = vmatprep.subr.mxu0 0.0
  %1001 = vmatpush1.msra.mxu0 %v947
  %1002 = vmatprep.subr.mxu0 0.0
  %1003 = vmatpush1.msra.mxu0 %v948
  %1004 = vmatprep.subr.mxu0 0.0
  %1005 = vmatpush1.msra.mxu0 %v949
  %1006 = vmatprep.subr.mxu0 0.0
  %1007 = vmatpush1.msra.mxu0 %v950
  %1008 = vmatprep.subr.mxu0 0.0
  %1009 = vmatpush1.msra.mxu0 %v951
  %1010 = vmatprep.subr.mxu0 0.0
  %1011 = vmatpush1.msra.mxu0 %v952
  %1012 = vmatprep.subr.mxu0 0.0
  %1013 = vmatpush1.msra.mxu0 %v953
  %1014 = vmatprep.subr.mxu0 0.0
  %1015 = vmatpush1.msra.mxu0 %v954
  %1016 = vmatprep.subr.mxu0 0.0
  %1017 = vmatpush1.msra.mxu0 %v955
  %1018 = vmatprep.subr.mxu0 0.0
  %1019 = vmatpush1.msra.mxu0 %v956
  %1020 = vmatprep.subr.mxu0 0.0
  %1021 = vmatpush1.msra.mxu0 %v957
  %1022 = vmatprep.mubr.f32.mxu0 %v822
  %1023 = vmatmul.mubr.f32.gmra.mrb[0].mxu0 %v821
  %v1024 = vpop.f32.mrb[0].mxu0
  %v1025 = vadd.f32 0.0, %v1024
  %v1026 = vpop.f32.mrb[0].mxu0
  %1027 = vmatprep.mubr.f32.mxu0 %v824
  %1028 = vmatmul.mubr.f32.gmra.mrb[0].mxu0 %v823
  %v1029 = vpop.f32.mrb[0].mxu0
  %v1030 = vadd.f32 0.0, %v1029
  %v1031 = vpop.f32.mrb[0].mxu0
  %1032 = vmatprep.mubr.f32.mxu0 %v826
  %1033 = vmatmul.mubr.f32.gmra.mrb[0].mxu0 %v825
  %v1034 = vpop.f32.mrb[0].mxu0
  %v1035 = vadd.f32 0.0, %v1034
  %v1036 = vpop.f32.mrb[0].mxu0
  %1037 = vmatprep.mubr.f32.mxu0 %v828
  %1038 = vmatmul.mubr.f32.gmra.mrb[0].mxu0 %v827
  %v1039 = vpop.f32.mrb[0].mxu0
  %v1040 = vadd.f32 0.0, %v1039
  %v1041 = vpop.f32.mrb[0].mxu0
  %1042 = vmatprep.mubr.f32.mxu0 %v830
  %1043 = vmatmul.mubr.f32.gmra.mrb[0].mxu0 %v829
  %v1044 = vpop.f32.mrb[0].mxu0
  %v1045 = vadd.f32 0.0, %v1044
  %v1046 = vpop.f32.mrb[0].mxu0
  %1047 = vmatprep.mubr.f32.mxu0 %v832
  %1048 = vmatmul.mubr.f32.gmra.mrb[0].mxu0 %v831
  %v1049 = vpop.f32.mrb[0].mxu0
  %v1050 = vadd.f32 0.0, %v1049
  %v1051 = vpop.f32.mrb[0].mxu0
  %1052 = vmatprep.mubr.f32.mxu0 %v834
  %1053 = vmatmul.mubr.f32.gmra.mrb[0].mxu0 %v833
  %v1054 = vpop.f32.mrb[0].mxu0
  %v1055 = vadd.f32 0.0, %v1054
  %v1056 = vpop.f32.mrb[0].mxu0
  %1057 = vmatprep.mubr.f32.mxu0 %v836
  %1058 = vmatmul.mubr.f32.gmra.mrb[0].mxu0 %v835
  %v1059 = vpop.f32.mrb[0].mxu0
  %v1060 = vadd.f32 0.0, %v1059
  %v1061 = vpop.f32.mrb[0].mxu0
  %1062 = vmatprep.mubr.f32.mxu0 %v838
  %1063 = vmatmul.mubr.f32.gmra.mrb[0].mxu0 %v837
  %v1064 = vpop.f32.mrb[0].mxu0
  %v1065 = vadd.f32 0.0, %v1064
  %v1066 = vpop.f32.mrb[0].mxu0
  %1067 = vmatprep.mubr.f32.mxu0 %v840
  %1068 = vmatmul.mubr.f32.gmra.mrb[0].mxu0 %v839
  %v1069 = vpop.f32.mrb[0].mxu0
  %v1070 = vadd.f32 0.0, %v1069
  %v1071 = vpop.f32.mrb[0].mxu0
  %1072 = vmatprep.mubr.f32.mxu0 %v842
  %1073 = vmatmul.mubr.f32.gmra.mrb[0].mxu0 %v841
  %v1074 = vpop.f32.mrb[0].mxu0
  %v1075 = vadd.f32 0.0, %v1074
  %v1076 = vpop.f32.mrb[0].mxu0
  %1077 = vmatprep.mubr.f32.mxu0 %v844
  %1078 = vmatmul.mubr.f32.gmra.mrb[0].mxu0 %v843
  %v1079 = vpop.f32.mrb[0].mxu0
  %v1080 = vadd.f32 0.0, %v1079
  %v1081 = vpop.f32.mrb[0].mxu0
  %1082 = vmatprep.mubr.f32.mxu0 %v846
  %1083 = vmatmul.mubr.f32.gmra.mrb[0].mxu0 %v845
  %v1084 = vpop.f32.mrb[0].mxu0
  %v1085 = vadd.f32 0.0, %v1084
  %v1086 = vpop.f32.mrb[0].mxu0
  %1087 = vmatprep.mubr.f32.mxu0 %v848
  %1088 = vmatmul.mubr.f32.gmra.mrb[0].mxu0 %v847
  %v1089 = vpop.f32.mrb[0].mxu0
  %v1090 = vadd.f32 0.0, %v1089
  %v1091 = vpop.f32.mrb[0].mxu0
  %1092 = vmatprep.mubr.f32.mxu0 %v850
  %1093 = vmatmul.mubr.f32.gmra.mrb[0].mxu0 %v849
  %v1094 = vpop.f32.mrb[0].mxu0
  %v1095 = vadd.f32 0.0, %v1094
  %v1096 = vpop.f32.mrb[0].mxu0
  %1097 = vmatprep.mubr.f32.mxu0 %v852
  %1098 = vmatmul.mubr.f32.gmra.mrb[0].mxu0 %v851
  %v1099 = vpop.f32.mrb[0].mxu0
  %v1100 = vadd.f32 0.0, %v1099
  %v1101 = vpop.f32.mrb[0].mxu0
  %1102 = vmatprep.mubr.f32.mxu0 %v854
  %1103 = vmatmul.mubr.f32.gmra.mrb[0].mxu0 %v853
  %v1104 = vpop.f32.mrb[0].mxu0
  %v1105 = vadd.f32 0.0, %v1104
  %v1106 = vpop.f32.mrb[0].mxu0
  %1107 = vmatprep.mubr.f32.mxu0 %v856
  %1108 = vmatmul.mubr.f32.gmra.mrb[0].mxu0 %v855
  %v1109 = vpop.f32.mrb[0].mxu0
  %v1110 = vadd.f32 0.0, %v1109
  %v1111 = vpop.f32.mrb[0].mxu0
  %1112 = vmatprep.mubr.f32.mxu0 %v858
  %1113 = vmatmul.mubr.f32.gmra.mrb[0].mxu0 %v857
  %v1114 = vpop.f32.mrb[0].mxu0
  %v1115 = vadd.f32 0.0, %v1114
  %v1116 = vpop.f32.mrb[0].mxu0
  %1117 = vmatprep.mubr.f32.mxu0 %v860
  %1118 = vmatmul.mubr.f32.gmra.mrb[0].mxu0 %v859
  %v1119 = vpop.f32.mrb[0].mxu0
  %v1120 = vadd.f32 0.0, %v1119
  %v1121 = vpop.f32.mrb[0].mxu0
  %1122 = vmatprep.mubr.f32.mxu0 %v862
  %1123 = vmatmul.mubr.f32.gmra.mrb[0].mxu0 %v861
  %v1124 = vpop.f32.mrb[0].mxu0
  %v1125 = vpop.f32.mrb[0].mxu0
  %1126 = vmatprep.mubr.f32.mxu0 %v864
  %1127 = vmatmul.mubr.f32.gmra.mrb[0].mxu0 %v863
  %v1128 = vpop.f32.mrb[0].mxu0
  %v1129 = vpop.f32.mrb[0].mxu0
  %1130 = vmatprep.mubr.f32.mxu0 %v866
  %1131 = vmatmul.mubr.f32.gmra.mrb[0].mxu0 %v865
  %v1132 = vpop.f32.mrb[0].mxu0
  %v1133 = vpop.f32.mrb[0].mxu0
  %1134 = vmatprep.mubr.f32.mxu0 %v868
  %1135 = vmatmul.mubr.f32.gmra.mrb[0].mxu0 %v867
  %v1136 = vpop.f32.mrb[0].mxu0
  %v1137 = vpop.f32.mrb[0].mxu0
  %1138 = vmatprep.mubr.f32.mxu0 %v870
  %1139 = vmatmul.mubr.f32.gmra.mrb[0].mxu0 %v869
  %v1140 = vpop.f32.mrb[0].mxu0
  %v1141 = vpop.f32.mrb[0].mxu0
  %1142 = vmatprep.mubr.f32.mxu0 %v872
  %1143 = vmatmul.mubr.f32.gmra.mrb[0].mxu0 %v871
  %v1144 = vpop.f32.mrb[0].mxu0
  %v1145 = vpop.f32.mrb[0].mxu0
  %1146 = vmatprep.mubr.f32.mxu0 %v874
  %1147 = vmatmul.mubr.f32.gmra.mrb[0].mxu0 %v873
  %v1148 = vpop.f32.mrb[0].mxu0
  %v1149 = vpop.f32.mrb[0].mxu0
  %1150 = vmatprep.mubr.f32.mxu0 %v876
  %1151 = vmatmul.mubr.f32.gmra.mrb[0].mxu0 %v875
  %v1152 = vpop.f32.mrb[0].mxu0
  %v1153 = vpop.f32.mrb[0].mxu0
  %1154 = vmatprep.mubr.f32.mxu0 %v878
  %1155 = vmatmul.mubr.f32.gmra.mrb[0].mxu0 %v877
  %v1156 = vpop.f32.mrb[0].mxu0
  %v1157 = vpop.f32.mrb[0].mxu0
  %1158 = vmatprep.mubr.f32.mxu0 %v880
  %1159 = vmatmul.mubr.f32.gmra.mrb[0].mxu0 %v879
  %v1160 = vpop.f32.mrb[0].mxu0
  %v1161 = vpop.f32.mrb[0].mxu0
  %1162 = vmatprep.mubr.f32.mxu0 %v882
  %1163 = vmatmul.mubr.f32.gmra.mrb[0].mxu0 %v881
  %v1164 = vpop.f32.mrb[0].mxu0
  %v1165 = vpop.f32.mrb[0].mxu0
  %1166 = vmatprep.mubr.f32.mxu0 %v884
  %1167 = vmatmul.mubr.f32.gmra.mrb[0].mxu0 %v883
  %v1168 = vpop.f32.mrb[0].mxu0
  %v1169 = vpop.f32.mrb[0].mxu0
  %1170 = vmatprep.mubr.f32.mxu0 %v886
  %1171 = vmatmul.mubr.f32.gmra.mrb[0].mxu0 %v885
  %v1172 = vpop.f32.mrb[0].mxu0
  %v1173 = vadd.f32 0.0, %v1172
  %v1174 = vpop.f32.mrb[0].mxu0
  %1175 = vmatprep.mubr.f32.mxu0 %v888
  %1176 = vmatmul.mubr.f32.gmra.mrb[0].mxu0 %v887
  %v1177 = vpop.f32.mrb[0].mxu0
  %v1178 = vadd.f32 0.0, %v1177
  %v1179 = vpop.f32.mrb[0].mxu0
  %1180 = vmatprep.mubr.f32.mxu0 %v890
  %1181 = vmatmul.mubr.f32.gmra.mrb[0].mxu0 %v889
  %v1182 = vpop.f32.mrb[0].mxu0
  %v1183 = vadd.f32 0.0, %v1182
  %v1184 = vpop.f32.mrb[0].mxu0
  %1185 = vmatprep.mubr.f32.mxu0 %v892
  %1186 = vmatmul.mubr.f32.gmra.mrb[0].mxu0 %v891
  %v1187 = vpop.f32.mrb[0].mxu0
  %v1188 = vadd.f32 0.0, %v1187
  %v1189 = vpop.f32.mrb[0].mxu0
  %1190 = vmatprep.mubr.f32.mxu0 %v894
  %1191 = vmatmul.mubr.f32.gmra.mrb[0].mxu0 %v893
  %v1192 = vpop.f32.mrb[0].mxu0
  %v1193 = vadd.f32 0.0, %v1192
  %v1194 = vpop.f32.mrb[0].mxu0
  %1195 = vmatprep.mubr.f32.mxu0 %v896
  %1196 = vmatmul.mubr.f32.gmra.mrb[0].mxu0 %v895
  %v1197 = vpop.f32.mrb[0].mxu0
  %v1198 = vadd.f32 0.0, %v1197
  %v1199 = vpop.f32.mrb[0].mxu0
  %1200 = vmatprep.mubr.f32.mxu0 %v898
  %1201 = vmatmul.mubr.f32.gmra.mrb[0].mxu0 %v897
  %v1202 = vpop.f32.mrb[0].mxu0
  %v1203 = vadd.f32 0.0, %v1202
  %v1204 = vpop.f32.mrb[0].mxu0
  %1205 = vmatprep.mubr.f32.mxu0 %v900
  %1206 = vmatmul.mubr.f32.gmra.mrb[0].mxu0 %v899
  %v1207 = vpop.f32.mrb[0].mxu0
  %v1208 = vadd.f32 0.0, %v1207
  %v1209 = vpop.f32.mrb[0].mxu0
  %1210 = vmatprep.mubr.f32.mxu0 %v902
  %1211 = vmatmul.mubr.f32.gmra.mrb[0].mxu0 %v901
  %v1212 = vpop.f32.mrb[0].mxu0
  %v1213 = vadd.f32 0.0, %v1212
  %v1214 = vpop.f32.mrb[0].mxu0
  %1215 = vmatprep.mubr.f32.mxu0 %v904
  %1216 = vmatmul.mubr.f32.gmra.mrb[0].mxu0 %v903
  %v1217 = vpop.f32.mrb[0].mxu0
  %v1218 = vadd.f32 0.0, %v1217
  %v1219 = vpop.f32.mrb[0].mxu0
  %1220 = vmatprep.mubr.f32.mxu0 %v906
  %1221 = vmatmul.mubr.f32.gmra.mrb[0].mxu0 %v905
  %v1222 = vpop.f32.mrb[0].mxu0
  %v1223 = vadd.f32 0.0, %v1222
  %v1224 = vpop.f32.mrb[0].mxu0
  %1225 = vmatprep.mubr.f32.mxu0 %v908
  %1226 = vmatmul.mubr.f32.gmra.mrb[0].mxu0 %v907
  %v1227 = vpop.f32.mrb[0].mxu0
  %v1228 = vadd.f32 0.0, %v1227
  %v1229 = vpop.f32.mrb[0].mxu0
  %1230 = vmatprep.mubr.f32.mxu0 %v910
  %1231 = vmatmul.mubr.f32.gmra.mrb[0].mxu0 %v909
  %v1232 = vpop.f32.mrb[0].mxu0
  %v1233 = vadd.f32 0.0, %v1232
  %v1234 = vpop.f32.mrb[0].mxu0
  %1235 = vmatprep.mubr.f32.mxu0 %v912
  %1236 = vmatmul.mubr.f32.gmra.mrb[0].mxu0 %v911
  %v1237 = vpop.f32.mrb[0].mxu0
  %v1238 = vadd.f32 0.0, %v1237
  %v1239 = vpop.f32.mrb[0].mxu0
  %1240 = vmatprep.mubr.f32.mxu0 %v914
  %1241 = vmatmul.mubr.f32.gmra.mrb[0].mxu0 %v913
  %v1242 = vpop.f32.mrb[0].mxu0
  %v1243 = vadd.f32 0.0, %v1242
  %v1244 = vpop.f32.mrb[0].mxu0
  %1245 = vmatprep.mubr.f32.mxu0 %v916
  %1246 = vmatmul.mubr.f32.gmra.mrb[0].mxu0 %v915
  %v1247 = vpop.f32.mrb[0].mxu0
  %v1248 = vadd.f32 0.0, %v1247
  %v1249 = vpop.f32.mrb[0].mxu0
  %1250 = vmatprep.mubr.f32.mxu0 %v918
  %1251 = vmatmul.mubr.f32.gmra.mrb[0].mxu0 %v917
  %v1252 = vpop.f32.mrb[0].mxu0
  %v1253 = vadd.f32 0.0, %v1252
  %v1254 = vpop.f32.mrb[0].mxu0
  %1255 = vmatprep.mubr.f32.mxu0 %v920
  %1256 = vmatmul.mubr.f32.gmra.mrb[0].mxu0 %v919
  %v1257 = vpop.f32.mrb[0].mxu0
  %v1258 = vadd.f32 0.0, %v1257
  %v1259 = vpop.f32.mrb[0].mxu0
  %1260 = vmatprep.mubr.f32.mxu0 %v922
  %1261 = vmatmul.mubr.f32.gmra.mrb[0].mxu0 %v921
  %v1262 = vpop.f32.mrb[0].mxu0
  %v1263 = vadd.f32 0.0, %v1262
  %v1264 = vpop.f32.mrb[0].mxu0
  %1265 = vmatprep.mubr.f32.mxu0 %v924
  %1266 = vmatmul.mubr.f32.gmra.mrb[0].mxu0 %v923
  %v1267 = vpop.f32.mrb[0].mxu0
  %v1268 = vadd.f32 0.0, %v1267
  %v1269 = vpop.f32.mrb[0].mxu0
  %1270 = vdwg.mxu0
  %v1271 = vadd.f32 %v575, %v1025
  %v1272 = vadd.f32 %v580, %v1030
  %v1273 = vadd.f32 %v585, %v1035
  %v1274 = vadd.f32 %v590, %v1040
  %v1275 = vadd.f32 %v595, %v1045
  %v1276 = vadd.f32 %v600, %v1050
  %v1277 = vadd.f32 %v605, %v1055
  %v1278 = vadd.f32 %v610, %v1060
  %v1279 = vadd.f32 %v615, %v1065
  %v1280 = vadd.f32 %v620, %v1070
  %v1281 = vadd.f32 %v625, %v1075
  %v1282 = vadd.f32 %v630, %v1080
  %v1283 = vadd.f32 %v635, %v1085
  %v1284 = vadd.f32 %v640, %v1090
  %v1285 = vadd.f32 %v645, %v1095
  %v1286 = vadd.f32 %v650, %v1100
  %v1287 = vadd.f32 %v655, %v1105
  %v1288 = vadd.f32 %v660, %v1110
  %v1289 = vadd.f32 %v665, %v1115
  %v1290 = vadd.f32 %v670, %v1120
  %v1291 = vadd.f32 %v723, %v1173
  %v1292 = vadd.f32 %v728, %v1178
  %v1293 = vadd.f32 %v733, %v1183
  %v1294 = vadd.f32 %v738, %v1188
  %v1295 = vadd.f32 %v743, %v1193
  %v1296 = vadd.f32 %v748, %v1198
  %v1297 = vadd.f32 %v753, %v1203
  %v1298 = vadd.f32 %v758, %v1208
  %v1299 = vadd.f32 %v763, %v1213
  %v1300 = vadd.f32 %v768, %v1218
  %v1301 = vadd.f32 %v773, %v1223
  %v1302 = vadd.f32 %v778, %v1228
  %v1303 = vadd.f32 %v783, %v1233
  %v1304 = vadd.f32 %v788, %v1238
  %v1305 = vadd.f32 %v793, %v1243
  %v1306 = vadd.f32 %v798, %v1248
  %v1307 = vadd.f32 %v803, %v1253
  %v1308 = vadd.f32 %v808, %v1258
  %v1309 = vadd.f32 %v813, %v1263
  %v1310 = vadd.f32 %v818, %v1268
  %v1311 = vld [vmem:[%s0 + $0x60] sm:$0xff]
  %v1312 = vld [vmem:[%s0 + $0x68] sm:$0xff]
  %v1313 = vld [vmem:[%s0 + $0x70] sm:$0xff]
  %v1314 = vld [vmem:[%s0 + $0x78] sm:$0xff]
  %v1315 = vld [vmem:[%s0 + $0x80] sm:$0xff]
  %v1316 = vld [vmem:[%s0 + $0x88] sm:$0xff]
  %v1317 = vld [vmem:[%s0 + $0x90] sm:$0xff]
  %v1318 = vld [vmem:[%s0 + $0x98] sm:$0xff]
  %v1319 = vld [vmem:[%s0 + $0xa0] sm:$0xff]
  %v1320 = vld [vmem:[%s0 + $0xa8] sm:$0xff]
  %v1321 = vld [vmem:[%s0 + $0xb0] sm:$0xff]
  %v1322 = vld [vmem:[%s0 + $0xb8] sm:$0xff]
  %v1323 = vld [vmem:[%s0 + $0xc0] sm:$0xff]
  %v1324 = vld [vmem:[%s0 + $0xc8] sm:$0xff]
  %v1325 = vld [vmem:[%s0 + $0xd0] sm:$0xff]
  %v1326 = vld [vmem:[%s0 + $0xd8] sm:$0xff]
  %v1327 = vld [vmem:[%s0 + $0xe0] sm:$0xff]
  %v1328 = vld [vmem:[%s0 + $0xe8] sm:$0xff]
  %v1329 = vld [vmem:[%s0 + $0xf0] sm:$0xff]
  %v1330 = vld [vmem:[%s0 + $0xf8] sm:$0xff]
  %v1331 = vld [vmem:[%s0 + $0x100] sm:$0xff]
  %v1332 = vld [vmem:[%s0 + $0x108] sm:$0xff]
  %v1333 = vld [vmem:[%s0 + $0x110] sm:$0xff]
  %v1334 = vld [vmem:[%s0 + $0x118] sm:$0xff]
  %v1335 = vld [vmem:[%s0 + $0x120] sm:$0xff]
  %v1336 = vld [vmem:[%s0 + $0x128] sm:$0xff]
  %v1337 = vld [vmem:[%s0 + $0x130] sm:$0xff]
  %v1338 = vld [vmem:[%s0 + $0x138] sm:$0xff]
  %v1339 = vld [vmem:[%s0 + $0x140] sm:$0xff]
  %v1340 = vld [vmem:[%s0 + $0x148] sm:$0xff]
  %v1341 = vld [vmem:[%s0 + $0x150] sm:$0xff]
  %v1342 = vld [vmem:[%s0 + $0x158] sm:$0xff]
  %v1343 = vld [vmem:[%s0 + $0x160] sm:$0xff]
  %v1344 = vld [vmem:[%s0 + $0x168] sm:$0xff]
  %v1345 = vld [vmem:[%s0 + $0x170] sm:$0xff]
  %v1346 = vld [vmem:[%s0 + $0x178] sm:$0xff]
  %v1347 = vld [vmem:[%s0 + $0x180] sm:$0xff]
  %v1348 = vld [vmem:[%s0 + $0x188] sm:$0xff]
  %v1349 = vld [vmem:[%s0 + $0x190] sm:$0xff]
  %v1350 = vld [vmem:[%s0 + $0x198] sm:$0xff]
  %v1351 = vld [vmem:[%s0 + $0x1a0] sm:$0xff]
  %v1352 = vld [vmem:[%s0 + $0x1a8] sm:$0xff]
  %v1353 = vld [vmem:[%s0 + $0x1b0] sm:$0xff]
  %v1354 = vld [vmem:[%s0 + $0x1b8] sm:$0xff]
  %v1355 = vld [vmem:[%s0 + $0x1c0] sm:$0xff]
  %v1356 = vld [vmem:[%s0 + $0x1c8] sm:$0xff]
  %v1357 = vld [vmem:[%s0 + $0x1d0] sm:$0xff]
  %v1358 = vld [vmem:[%s0 + $0x1d8] sm:$0xff]
  %v1359 = vld [vmem:[%s0 + $0x1e0] sm:$0xff]
  %v1360 = vld [vmem:[%s0 + $0x1e8] sm:$0xff]
  %v1361 = vld [vmem:[%s0 + $0x1f0] sm:$0xff]
  %v1362 = vld [vmem:[%s0 + $0x1f8] sm:$0xff]
  %v1363 = vld [vmem:[%s0 + $0x200] sm:$0xff]
  %v1364 = vld [vmem:[%s0 + $0x208] sm:$0xff]
  %v1365 = vld [vmem:[%s0 + $0x210] sm:$0xff]
  %v1366 = vld [vmem:[%s0 + $0x218] sm:$0xff]
  %v1367 = vld [vmem:[%s0 + $0x220] sm:$0xff]
  %v1368 = vld [vmem:[%s0 + $0x228] sm:$0xff]
  %v1369 = vld [vmem:[%s0 + $0x230] sm:$0xff]
  %v1370 = vld [vmem:[%s0 + $0x238] sm:$0xff]
  %v1371 = vld [vmem:[%s0 + $0x240] sm:$0xff]
  %v1372 = vld [vmem:[%s0 + $0x248] sm:$0xff]
  %v1373 = vld [vmem:[%s0 + $0x250] sm:$0xff]
  %v1374 = vld [vmem:[%s0 + $0x258] sm:$0xff]
  %v1375 = vld [vmem:[%s0 + $0x260] sm:$0xff]
  %v1376 = vld [vmem:[%s0 + $0x268] sm:$0xff]
  %v1377 = vld [vmem:[%s0 + $0x270] sm:$0xff]
  %v1378 = vld [vmem:[%s0 + $0x278] sm:$0xff]
  %v1379 = vld [vmem:[%s0 + $0x280] sm:$0xff]
  %v1380 = vld [vmem:[%s0 + $0x288] sm:$0xff]
  %v1381 = vld [vmem:[%s0 + $0x290] sm:$0xff]
  %v1382 = vld [vmem:[%s0 + $0x298] sm:$0xff]
  %v1383 = vld [vmem:[%s0 + $0x2a0] sm:$0xff]
  %v1384 = vld [vmem:[%s0 + $0x2a8] sm:$0xff]
  %v1385 = vld [vmem:[%s0 + $0x2b0] sm:$0xff]
  %v1386 = vld [vmem:[%s0 + $0x2b8] sm:$0xff]
  %v1387 = vld [vmem:[%s0 + $0x2c0] sm:$0xff]
  %v1388 = vld [vmem:[%s0 + $0x2c8] sm:$0xff]
  %v1389 = vld [vmem:[%s0 + $0x2d0] sm:$0xff]
  %v1390 = vld [vmem:[%s0 + $0x2d8] sm:$0xff]
  %v1391 = vld [vmem:[%s0 + $0x2e0] sm:$0xff]
  %v1392 = vld [vmem:[%s0 + $0x2e8] sm:$0xff]
  %v1393 = vld [vmem:[%s0 + $0x2f0] sm:$0xff]
  %v1394 = vld [vmem:[%s0 + $0x2f8] sm:$0xff]
  %v1395 = vld [vmem:[%s0 + $0x300] sm:$0xff]
  %v1396 = vld [vmem:[%s0 + $0x308] sm:$0xff]
  %v1397 = vld [vmem:[%s0 + $0x310] sm:$0xff]
  %v1398 = vld [vmem:[%s0 + $0x318] sm:$0xff]
  %v1399 = vld [vmem:[%s0 + $0x320] sm:$0xff]
  %v1400 = vld [vmem:[%s0 + $0x328] sm:$0xff]
  %v1401 = vld [vmem:[%s0 + $0x330] sm:$0xff]
  %v1402 = vld [vmem:[%s0 + $0x338] sm:$0xff]
  %v1403 = vld [vmem:[%s0 + $0x340] sm:$0xff]
  %v1404 = vld [vmem:[%s0 + $0x348] sm:$0xff]
  %v1405 = vld [vmem:[%s0 + $0x350] sm:$0xff]
  %v1406 = vld [vmem:[%s0 + $0x358] sm:$0xff]
  %v1407 = vld [vmem:[%s0 + $0x360] sm:$0xff]
  %v1408 = vld [vmem:[%s0 + $0x368] sm:$0xff]
  %v1409 = vld [vmem:[%s0 + $0x370] sm:$0xff]
  %v1410 = vld [vmem:[%s0 + $0x378] sm:$0xff]
  %v1411 = vld [vmem:[%s0 + $0x380] sm:$0xff]
  %v1412 = vld [vmem:[%s0 + $0x388] sm:$0xff]
  %v1413 = vld [vmem:[%s0 + $0x390] sm:$0x3]
  %v1414 = vld [vmem:[%s0 + $0x398] sm:$0x3]
  %s1415 = scalar_lea.vmem %s1, 768
  %v1416 = vld [vmem:[%s1415] sm:$0xff]
  %v1417 = vld [vmem:[%s1415 + $0x8] sm:$0xff]
  %v1418 = vld [vmem:[%s1415 + $0x10] sm:$0xff]
  %v1419 = vld [vmem:[%s1415 + $0x18] sm:$0xff]
  %v1420 = vld [vmem:[%s1415 + $0x20] sm:$0xff]
  %v1421 = vld [vmem:[%s1415 + $0x28] sm:$0xff]
  %v1422 = vld [vmem:[%s1415 + $0x30] sm:$0xff]
  %v1423 = vld [vmem:[%s1415 + $0x38] sm:$0xff]
  %v1424 = vld [vmem:[%s1415 + $0x40] sm:$0xff]
  %v1425 = vld [vmem:[%s1415 + $0x48] sm:$0xff]
  %v1426 = vld [vmem:[%s1415 + $0x50] sm:$0xff]
  %v1427 = vld [vmem:[%s1415 + $0x58] sm:$0xff]
  %v1428 = vld [vmem:[%s1415 + $0x60] sm:$0xff]
  %v1429 = vld [vmem:[%s1415 + $0x68] sm:$0xff]
  %v1430 = vld [vmem:[%s1415 + $0x70] sm:$0xff]
  %v1431 = vld [vmem:[%s1415 + $0x78] sm:$0xff]
  %v1432 = vld [vmem:[%s1415 + $0x80] sm:$0xff]
  %v1433 = vld [vmem:[%s1415 + $0x88] sm:$0xff]
  %v1434 = vld [vmem:[%s1415 + $0x90] sm:$0xff]
  %v1435 = vld [vmem:[%s1415 + $0x98] sm:$0xff]
  %v1436 = vld [vmem:[%s1415 + $0xa0] sm:$0xff]
  %v1437 = vld [vmem:[%s1415 + $0xa8] sm:$0xff]
  %v1438 = vld [vmem:[%s1415 + $0xb0] sm:$0xff]
  %v1439 = vld [vmem:[%s1415 + $0xb8] sm:$0xff]
  %v1440 = vld [vmem:[%s1415 + $0xc0] sm:$0xff]
  %v1441 = vld [vmem:[%s1415 + $0xc8] sm:$0xff]
  %v1442 = vld [vmem:[%s1415 + $0xd0] sm:$0xff]
  %v1443 = vld [vmem:[%s1415 + $0xd8] sm:$0xff]
  %v1444 = vld [vmem:[%s1415 + $0xe0] sm:$0xff]
  %v1445 = vld [vmem:[%s1415 + $0xe8] sm:$0xff]
  %v1446 = vld [vmem:[%s1415 + $0xf0] sm:$0xff]
  %v1447 = vld [vmem:[%s1415 + $0xf8] sm:$0xff]
  %1448 = vmatprep.subr.mxu0 0.0
  %1449 = vmatpush1.msra.mxu0 %v1416
  %1450 = vmatprep.subr.mxu0 0.0
  %1451 = vmatpush1.msra.mxu0 %v1417
  %1452 = vmatprep.subr.mxu0 0.0
  %1453 = vmatpush1.msra.mxu0 %v1418
  %1454 = vmatprep.subr.mxu0 0.0
  %1455 = vmatpush1.msra.mxu0 %v1419
  %1456 = vmatprep.subr.mxu0 0.0
  %1457 = vmatpush1.msra.mxu0 %v1420
  %1458 = vmatprep.subr.mxu0 0.0
  %1459 = vmatpush1.msra.mxu0 %v1421
  %1460 = vmatprep.subr.mxu0 0.0
  %1461 = vmatpush1.msra.mxu0 %v1422
  %1462 = vmatprep.subr.mxu0 0.0
  %1463 = vmatpush1.msra.mxu0 %v1423
  %1464 = vmatprep.subr.mxu0 0.0
  %1465 = vmatpush1.msra.mxu0 %v1424
  %1466 = vmatprep.subr.mxu0 0.0
  %1467 = vmatpush1.msra.mxu0 %v1425
  %1468 = vmatprep.subr.mxu0 0.0
  %1469 = vmatpush1.msra.mxu0 %v1426
  %1470 = vmatprep.subr.mxu0 0.0
  %1471 = vmatpush1.msra.mxu0 %v1427
  %1472 = vmatprep.subr.mxu0 0.0
  %1473 = vmatpush1.msra.mxu0 %v1428
  %1474 = vmatprep.subr.mxu0 0.0
  %1475 = vmatpush1.msra.mxu0 %v1429
  %1476 = vmatprep.subr.mxu0 0.0
  %1477 = vmatpush1.msra.mxu0 %v1430
  %1478 = vmatprep.subr.mxu0 0.0
  %1479 = vmatpush1.msra.mxu0 %v1431
  %1480 = vmatprep.subr.mxu0 0.0
  %1481 = vmatpush1.msra.mxu0 %v1432
  %1482 = vmatprep.subr.mxu0 0.0
  %1483 = vmatpush1.msra.mxu0 %v1433
  %1484 = vmatprep.subr.mxu0 0.0
  %1485 = vmatpush1.msra.mxu0 %v1434
  %1486 = vmatprep.subr.mxu0 0.0
  %1487 = vmatpush1.msra.mxu0 %v1435
  %1488 = vmatprep.subr.mxu0 0.0
  %1489 = vmatpush1.msra.mxu0 %v1436
  %1490 = vmatprep.subr.mxu0 0.0
  %1491 = vmatpush1.msra.mxu0 %v1437
  %1492 = vmatprep.subr.mxu0 0.0
  %1493 = vmatpush1.msra.mxu0 %v1438
  %1494 = vmatprep.subr.mxu0 0.0
  %1495 = vmatpush1.msra.mxu0 %v1439
  %1496 = vmatprep.subr.mxu0 0.0
  %1497 = vmatpush1.msra.mxu0 %v1440
  %1498 = vmatprep.subr.mxu0 0.0
  %1499 = vmatpush1.msra.mxu0 %v1441
  %1500 = vmatprep.subr.mxu0 0.0
  %1501 = vmatpush1.msra.mxu0 %v1442
  %1502 = vmatprep.subr.mxu0 0.0
  %1503 = vmatpush1.msra.mxu0 %v1443
  %1504 = vmatprep.subr.mxu0 0.0
  %1505 = vmatpush1.msra.mxu0 %v1444
  %1506 = vmatprep.subr.mxu0 0.0
  %1507 = vmatpush1.msra.mxu0 %v1445
  %1508 = vmatprep.subr.mxu0 0.0
  %1509 = vmatpush1.msra.mxu0 %v1446
  %1510 = vmatprep.subr.mxu0 0.0
  %1511 = vmatpush1.msra.mxu0 %v1447
  %1512 = vmatprep.mubr.f32.mxu0 %v1312
  %1513 = vmatmul.mubr.f32.gmra.mrb[0].mxu0 %v1311
  %v1514 = vpop.f32.mrb[0].mxu0
  %v1515 = vadd.f32 0.0, %v1514
  %v1516 = vpop.f32.mrb[0].mxu0
  %1517 = vmatprep.mubr.f32.mxu0 %v1314
  %1518 = vmatmul.mubr.f32.gmra.mrb[0].mxu0 %v1313
  %v1519 = vpop.f32.mrb[0].mxu0
  %v1520 = vadd.f32 0.0, %v1519
  %v1521 = vpop.f32.mrb[0].mxu0
  %1522 = vmatprep.mubr.f32.mxu0 %v1316
  %1523 = vmatmul.mubr.f32.gmra.mrb[0].mxu0 %v1315
  %v1524 = vpop.f32.mrb[0].mxu0
  %v1525 = vadd.f32 0.0, %v1524
  %v1526 = vpop.f32.mrb[0].mxu0
  %1527 = vmatprep.mubr.f32.mxu0 %v1318
  %1528 = vmatmul.mubr.f32.gmra.mrb[0].mxu0 %v1317
  %v1529 = vpop.f32.mrb[0].mxu0
  %v1530 = vadd.f32 0.0, %v1529
  %v1531 = vpop.f32.mrb[0].mxu0
  %1532 = vmatprep.mubr.f32.mxu0 %v1320
  %1533 = vmatmul.mubr.f32.gmra.mrb[0].mxu0 %v1319
  %v1534 = vpop.f32.mrb[0].mxu0
  %v1535 = vadd.f32 0.0, %v1534
  %v1536 = vpop.f32.mrb[0].mxu0
  %1537 = vmatprep.mubr.f32.mxu0 %v1322
  %1538 = vmatmul.mubr.f32.gmra.mrb[0].mxu0 %v1321
  %v1539 = vpop.f32.mrb[0].mxu0
  %v1540 = vadd.f32 0.0, %v1539
  %v1541 = vpop.f32.mrb[0].mxu0
  %1542 = vmatprep.mubr.f32.mxu0 %v1324
  %1543 = vmatmul.mubr.f32.gmra.mrb[0].mxu0 %v1323
  %v1544 = vpop.f32.mrb[0].mxu0
  %v1545 = vadd.f32 0.0, %v1544
  %v1546 = vpop.f32.mrb[0].mxu0
  %1547 = vmatprep.mubr.f32.mxu0 %v1326
  %1548 = vmatmul.mubr.f32.gmra.mrb[0].mxu0 %v1325
  %v1549 = vpop.f32.mrb[0].mxu0
  %v1550 = vadd.f32 0.0, %v1549
  %v1551 = vpop.f32.mrb[0].mxu0
  %1552 = vmatprep.mubr.f32.mxu0 %v1328
  %1553 = vmatmul.mubr.f32.gmra.mrb[0].mxu0 %v1327
  %v1554 = vpop.f32.mrb[0].mxu0
  %v1555 = vadd.f32 0.0, %v1554
  %v1556 = vpop.f32.mrb[0].mxu0
  %1557 = vmatprep.mubr.f32.mxu0 %v1330
  %1558 = vmatmul.mubr.f32.gmra.mrb[0].mxu0 %v1329
  %v1559 = vpop.f32.mrb[0].mxu0
  %v1560 = vadd.f32 0.0, %v1559
  %v1561 = vpop.f32.mrb[0].mxu0
  %1562 = vmatprep.mubr.f32.mxu0 %v1332
  %1563 = vmatmul.mubr.f32.gmra.mrb[0].mxu0 %v1331
  %v1564 = vpop.f32.mrb[0].mxu0
  %v1565 = vadd.f32 0.0, %v1564
  %v1566 = vpop.f32.mrb[0].mxu0
  %1567 = vmatprep.mubr.f32.mxu0 %v1334
  %1568 = vmatmul.mubr.f32.gmra.mrb[0].mxu0 %v1333
  %v1569 = vpop.f32.mrb[0].mxu0
  %v1570 = vadd.f32 0.0, %v1569
  %v1571 = vpop.f32.mrb[0].mxu0
  %1572 = vmatprep.mubr.f32.mxu0 %v1336
  %1573 = vmatmul.mubr.f32.gmra.mrb[0].mxu0 %v1335
  %v1574 = vpop.f32.mrb[0].mxu0
  %v1575 = vadd.f32 0.0, %v1574
  %v1576 = vpop.f32.mrb[0].mxu0
  %1577 = vmatprep.mubr.f32.mxu0 %v1338
  %1578 = vmatmul.mubr.f32.gmra.mrb[0].mxu0 %v1337
  %v1579 = vpop.f32.mrb[0].mxu0
  %v1580 = vadd.f32 0.0, %v1579
  %v1581 = vpop.f32.mrb[0].mxu0
  %1582 = vmatprep.mubr.f32.mxu0 %v1340
  %1583 = vmatmul.mubr.f32.gmra.mrb[0].mxu0 %v1339
  %v1584 = vpop.f32.mrb[0].mxu0
  %v1585 = vadd.f32 0.0, %v1584
  %v1586 = vpop.f32.mrb[0].mxu0
  %1587 = vmatprep.mubr.f32.mxu0 %v1342
  %1588 = vmatmul.mubr.f32.gmra.mrb[0].mxu0 %v1341
  %v1589 = vpop.f32.mrb[0].mxu0
  %v1590 = vadd.f32 0.0, %v1589
  %v1591 = vpop.f32.mrb[0].mxu0
  %1592 = vmatprep.mubr.f32.mxu0 %v1344
  %1593 = vmatmul.mubr.f32.gmra.mrb[0].mxu0 %v1343
  %v1594 = vpop.f32.mrb[0].mxu0
  %v1595 = vadd.f32 0.0, %v1594
  %v1596 = vpop.f32.mrb[0].mxu0
  %1597 = vmatprep.mubr.f32.mxu0 %v1346
  %1598 = vmatmul.mubr.f32.gmra.mrb[0].mxu0 %v1345
  %v1599 = vpop.f32.mrb[0].mxu0
  %v1600 = vadd.f32 0.0, %v1599
  %v1601 = vpop.f32.mrb[0].mxu0
  %1602 = vmatprep.mubr.f32.mxu0 %v1348
  %1603 = vmatmul.mubr.f32.gmra.mrb[0].mxu0 %v1347
  %v1604 = vpop.f32.mrb[0].mxu0
  %v1605 = vadd.f32 0.0, %v1604
  %v1606 = vpop.f32.mrb[0].mxu0
  %1607 = vmatprep.mubr.f32.mxu0 %v1350
  %1608 = vmatmul.mubr.f32.gmra.mrb[0].mxu0 %v1349
  %v1609 = vpop.f32.mrb[0].mxu0
  %v1610 = vadd.f32 0.0, %v1609
  %v1611 = vpop.f32.mrb[0].mxu0
  %1612 = vmatprep.mubr.f32.mxu0 %v1352
  %1613 = vmatmul.mubr.f32.gmra.mrb[0].mxu0 %v1351
  %v1614 = vpop.f32.mrb[0].mxu0
  %v1615 = vpop.f32.mrb[0].mxu0
  %1616 = vmatprep.mubr.f32.mxu0 %v1354
  %1617 = vmatmul.mubr.f32.gmra.mrb[0].mxu0 %v1353
  %v1618 = vpop.f32.mrb[0].mxu0
  %v1619 = vpop.f32.mrb[0].mxu0
  %1620 = vmatprep.mubr.f32.mxu0 %v1356
  %1621 = vmatmul.mubr.f32.gmra.mrb[0].mxu0 %v1355
  %v1622 = vpop.f32.mrb[0].mxu0
  %v1623 = vpop.f32.mrb[0].mxu0
  %1624 = vmatprep.mubr.f32.mxu0 %v1358
  %1625 = vmatmul.mubr.f32.gmra.mrb[0].mxu0 %v1357
  %v1626 = vpop.f32.mrb[0].mxu0
  %v1627 = vpop.f32.mrb[0].mxu0
  %1628 = vmatprep.mubr.f32.mxu0 %v1360
  %1629 = vmatmul.mubr.f32.gmra.mrb[0].mxu0 %v1359
  %v1630 = vpop.f32.mrb[0].mxu0
  %v1631 = vpop.f32.mrb[0].mxu0
  %1632 = vmatprep.mubr.f32.mxu0 %v1362
  %1633 = vmatmul.mubr.f32.gmra.mrb[0].mxu0 %v1361
  %v1634 = vpop.f32.mrb[0].mxu0
  %v1635 = vpop.f32.mrb[0].mxu0
  %1636 = vmatprep.mubr.f32.mxu0 %v1364
  %1637 = vmatmul.mubr.f32.gmra.mrb[0].mxu0 %v1363
  %v1638 = vpop.f32.mrb[0].mxu0
  %v1639 = vpop.f32.mrb[0].mxu0
  %1640 = vmatprep.mubr.f32.mxu0 %v1366
  %1641 = vmatmul.mubr.f32.gmra.mrb[0].mxu0 %v1365
  %v1642 = vpop.f32.mrb[0].mxu0
  %v1643 = vpop.f32.mrb[0].mxu0
  %1644 = vmatprep.mubr.f32.mxu0 %v1368
  %1645 = vmatmul.mubr.f32.gmra.mrb[0].mxu0 %v1367
  %v1646 = vpop.f32.mrb[0].mxu0
  %v1647 = vpop.f32.mrb[0].mxu0
  %1648 = vmatprep.mubr.f32.mxu0 %v1370
  %1649 = vmatmul.mubr.f32.gmra.mrb[0].mxu0 %v1369
  %v1650 = vpop.f32.mrb[0].mxu0
  %v1651 = vpop.f32.mrb[0].mxu0
  %1652 = vmatprep.mubr.f32.mxu0 %v1372
  %1653 = vmatmul.mubr.f32.gmra.mrb[0].mxu0 %v1371
  %v1654 = vpop.f32.mrb[0].mxu0
  %v1655 = vpop.f32.mrb[0].mxu0
  %1656 = vmatprep.mubr.f32.mxu0 %v1374
  %1657 = vmatmul.mubr.f32.gmra.mrb[0].mxu0 %v1373
  %v1658 = vpop.f32.mrb[0].mxu0
  %v1659 = vpop.f32.mrb[0].mxu0
  %1660 = vmatprep.mubr.f32.mxu0 %v1376
  %1661 = vmatmul.mubr.f32.gmra.mrb[0].mxu0 %v1375
  %v1662 = vpop.f32.mrb[0].mxu0
  %v1663 = vadd.f32 0.0, %v1662
  %v1664 = vpop.f32.mrb[0].mxu0
  %1665 = vmatprep.mubr.f32.mxu0 %v1378
  %1666 = vmatmul.mubr.f32.gmra.mrb[0].mxu0 %v1377
  %v1667 = vpop.f32.mrb[0].mxu0
  %v1668 = vadd.f32 0.0, %v1667
  %v1669 = vpop.f32.mrb[0].mxu0
  %1670 = vmatprep.mubr.f32.mxu0 %v1380
  %1671 = vmatmul.mubr.f32.gmra.mrb[0].mxu0 %v1379
  %v1672 = vpop.f32.mrb[0].mxu0
  %v1673 = vadd.f32 0.0, %v1672
  %v1674 = vpop.f32.mrb[0].mxu0
  %1675 = vmatprep.mubr.f32.mxu0 %v1382
  %1676 = vmatmul.mubr.f32.gmra.mrb[0].mxu0 %v1381
  %v1677 = vpop.f32.mrb[0].mxu0
  %v1678 = vadd.f32 0.0, %v1677
  %v1679 = vpop.f32.mrb[0].mxu0
  %1680 = vmatprep.mubr.f32.mxu0 %v1384
  %1681 = vmatmul.mubr.f32.gmra.mrb[0].mxu0 %v1383
  %v1682 = vpop.f32.mrb[0].mxu0
  %v1683 = vadd.f32 0.0, %v1682
  %v1684 = vpop.f32.mrb[0].mxu0
  %1685 = vmatprep.mubr.f32.mxu0 %v1386
  %1686 = vmatmul.mubr.f32.gmra.mrb[0].mxu0 %v1385
  %v1687 = vpop.f32.mrb[0].mxu0
  %v1688 = vadd.f32 0.0, %v1687
  %v1689 = vpop.f32.mrb[0].mxu0
  %1690 = vmatprep.mubr.f32.mxu0 %v1388
  %1691 = vmatmul.mubr.f32.gmra.mrb[0].mxu0 %v1387
  %v1692 = vpop.f32.mrb[0].mxu0
  %v1693 = vadd.f32 0.0, %v1692
  %v1694 = vpop.f32.mrb[0].mxu0
  %1695 = vmatprep.mubr.f32.mxu0 %v1390
  %1696 = vmatmul.mubr.f32.gmra.mrb[0].mxu0 %v1389
  %v1697 = vpop.f32.mrb[0].mxu0
  %v1698 = vadd.f32 0.0, %v1697
  %v1699 = vpop.f32.mrb[0].mxu0
  %1700 = vmatprep.mubr.f32.mxu0 %v1392
  %1701 = vmatmul.mubr.f32.gmra.mrb[0].mxu0 %v1391
  %v1702 = vpop.f32.mrb[0].mxu0
  %v1703 = vadd.f32 0.0, %v1702
  %v1704 = vpop.f32.mrb[0].mxu0
  %1705 = vmatprep.mubr.f32.mxu0 %v1394
  %1706 = vmatmul.mubr.f32.gmra.mrb[0].mxu0 %v1393
  %v1707 = vpop.f32.mrb[0].mxu0
  %v1708 = vadd.f32 0.0, %v1707
  %v1709 = vpop.f32.mrb[0].mxu0
  %1710 = vmatprep.mubr.f32.mxu0 %v1396
  %1711 = vmatmul.mubr.f32.gmra.mrb[0].mxu0 %v1395
  %v1712 = vpop.f32.mrb[0].mxu0
  %v1713 = vadd.f32 0.0, %v1712
  %v1714 = vpop.f32.mrb[0].mxu0
  %1715 = vmatprep.mubr.f32.mxu0 %v1398
  %1716 = vmatmul.mubr.f32.gmra.mrb[0].mxu0 %v1397
  %v1717 = vpop.f32.mrb[0].mxu0
  %v1718 = vadd.f32 0.0, %v1717
  %v1719 = vpop.f32.mrb[0].mxu0
  %1720 = vmatprep.mubr.f32.mxu0 %v1400
  %1721 = vmatmul.mubr.f32.gmra.mrb[0].mxu0 %v1399
  %v1722 = vpop.f32.mrb[0].mxu0
  %v1723 = vadd.f32 0.0, %v1722
  %v1724 = vpop.f32.mrb[0].mxu0
  %1725 = vmatprep.mubr.f32.mxu0 %v1402
  %1726 = vmatmul.mubr.f32.gmra.mrb[0].mxu0 %v1401
  %v1727 = vpop.f32.mrb[0].mxu0
  %v1728 = vadd.f32 0.0, %v1727
  %v1729 = vpop.f32.mrb[0].mxu0
  %1730 = vmatprep.mubr.f32.mxu0 %v1404
  %1731 = vmatmul.mubr.f32.gmra.mrb[0].mxu0 %v1403
  %v1732 = vpop.f32.mrb[0].mxu0
  %v1733 = vadd.f32 0.0, %v1732
  %v1734 = vpop.f32.mrb[0].mxu0
  %1735 = vmatprep.mubr.f32.mxu0 %v1406
  %1736 = vmatmul.mubr.f32.gmra.mrb[0].mxu0 %v1405
  %v1737 = vpop.f32.mrb[0].mxu0
  %v1738 = vadd.f32 0.0, %v1737
  %v1739 = vpop.f32.mrb[0].mxu0
  %1740 = vmatprep.mubr.f32.mxu0 %v1408
  %1741 = vmatmul.mubr.f32.gmra.mrb[0].mxu0 %v1407
  %v1742 = vpop.f32.mrb[0].mxu0
  %v1743 = vadd.f32 0.0, %v1742
  %v1744 = vpop.f32.mrb[0].mxu0
  %1745 = vmatprep.mubr.f32.mxu0 %v1410
  %1746 = vmatmul.mubr.f32.gmra.mrb[0].mxu0 %v1409
  %v1747 = vpop.f32.mrb[0].mxu0
  %v1748 = vadd.f32 0.0, %v1747
  %v1749 = vpop.f32.mrb[0].mxu0
  %1750 = vmatprep.mubr.f32.mxu0 %v1412
  %1751 = vmatmul.mubr.f32.gmra.mrb[0].mxu0 %v1411
  %v1752 = vpop.f32.mrb[0].mxu0
  %v1753 = vadd.f32 0.0, %v1752
  %v1754 = vpop.f32.mrb[0].mxu0
  %1755 = vmatprep.mubr.f32.mxu0 %v1414
  %1756 = vmatmul.mubr.f32.gmra.mrb[0].mxu0 %v1413
  %v1757 = vpop.f32.mrb[0].mxu0
  %v1758 = vadd.f32 0.0, %v1757
  %v1759 = vpop.f32.mrb[0].mxu0
  %1760 = vdwg.mxu0
  %v1761 = vadd.f32 %v1271, %v1515
  %v1762 = vadd.f32 %v1272, %v1520
  %v1763 = vadd.f32 %v1273, %v1525
  %v1764 = vadd.f32 %v1274, %v1530
  %v1765 = vadd.f32 %v1275, %v1535
  %v1766 = vadd.f32 %v1276, %v1540
  %v1767 = vadd.f32 %v1277, %v1545
  %v1768 = vadd.f32 %v1278, %v1550
  %v1769 = vadd.f32 %v1279, %v1555
  %v1770 = vadd.f32 %v1280, %v1560
  %v1771 = vadd.f32 %v1281, %v1565
  %v1772 = vadd.f32 %v1282, %v1570
  %v1773 = vadd.f32 %v1283, %v1575
  %v1774 = vadd.f32 %v1284, %v1580
  %v1775 = vadd.f32 %v1285, %v1585
  %v1776 = vadd.f32 %v1286, %v1590
  %v1777 = vadd.f32 %v1287, %v1595
  %v1778 = vadd.f32 %v1288, %v1600
  %v1779 = vadd.f32 %v1289, %v1605
  %v1780 = vadd.f32 %v1290, %v1610
  %v1781 = vadd.f32 %v1291, %v1663
  %v1782 = vadd.f32 %v1292, %v1668
  %v1783 = vadd.f32 %v1293, %v1673
  %v1784 = vadd.f32 %v1294, %v1678
  %v1785 = vadd.f32 %v1295, %v1683
  %v1786 = vadd.f32 %v1296, %v1688
  %v1787 = vadd.f32 %v1297, %v1693
  %v1788 = vadd.f32 %v1298, %v1698
  %v1789 = vadd.f32 %v1299, %v1703
  %v1790 = vadd.f32 %v1300, %v1708
  %v1791 = vadd.f32 %v1301, %v1713
  %v1792 = vadd.f32 %v1302, %v1718
  %v1793 = vadd.f32 %v1303, %v1723
  %v1794 = vadd.f32 %v1304, %v1728
  %v1795 = vadd.f32 %v1305, %v1733
  %v1796 = vadd.f32 %v1306, %v1738
  %v1797 = vadd.f32 %v1307, %v1743
  %v1798 = vadd.f32 %v1308, %v1748
  %v1799 = vadd.f32 %v1309, %v1753
  %v1800 = vadd.f32 %v1310, %v1758
  %v1801 = vld [vmem:[%s0 + $0x80] sm:$0xff]
  %v1802 = vld [vmem:[%s0 + $0x88] sm:$0xff]
  %v1803 = vld [vmem:[%s0 + $0x90] sm:$0xff]
  %v1804 = vld [vmem:[%s0 + $0x98] sm:$0xff]
  %v1805 = vld [vmem:[%s0 + $0xa0] sm:$0xff]
  %v1806 = vld [vmem:[%s0 + $0xa8] sm:$0xff]
  %v1807 = vld [vmem:[%s0 + $0xb0] sm:$0xff]
  %v1808 = vld [vmem:[%s0 + $0xb8] sm:$0xff]
  %v1809 = vld [vmem:[%s0 + $0xc0] sm:$0xff]
  %v1810 = vld [vmem:[%s0 + $0xc8] sm:$0xff]
  %v1811 = vld [vmem:[%s0 + $0xd0] sm:$0xff]
  %v1812 = vld [vmem:[%s0 + $0xd8] sm:$0xff]
  %v1813 = vld [vmem:[%s0 + $0xe0] sm:$0xff]
  %v1814 = vld [vmem:[%s0 + $0xe8] sm:$0xff]
  %v1815 = vld [vmem:[%s0 + $0xf0] sm:$0xff]
  %v1816 = vld [vmem:[%s0 + $0xf8] sm:$0xff]
  %v1817 = vld [vmem:[%s0 + $0x100] sm:$0xff]
  %v1818 = vld [vmem:[%s0 + $0x108] sm:$0xff]
  %v1819 = vld [vmem:[%s0 + $0x110] sm:$0xff]
  %v1820 = vld [vmem:[%s0 + $0x118] sm:$0xff]
  %v1821 = vld [vmem:[%s0 + $0x120] sm:$0xff]
  %v1822 = vld [vmem:[%s0 + $0x128] sm:$0xff]
  %v1823 = vld [vmem:[%s0 + $0x130] sm:$0xff]
  %v1824 = vld [vmem:[%s0 + $0x138] sm:$0xff]
  %v1825 = vld [vmem:[%s0 + $0x140] sm:$0xff]
  %v1826 = vld [vmem:[%s0 + $0x148] sm:$0xff]
  %v1827 = vld [vmem:[%s0 + $0x150] sm:$0xff]
  %v1828 = vld [vmem:[%s0 + $0x158] sm:$0xff]
  %v1829 = vld [vmem:[%s0 + $0x160] sm:$0xff]
  %v1830 = vld [vmem:[%s0 + $0x168] sm:$0xff]
  %v1831 = vld [vmem:[%s0 + $0x170] sm:$0xff]
  %v1832 = vld [vmem:[%s0 + $0x178] sm:$0xff]
  %v1833 = vld [vmem:[%s0 + $0x180] sm:$0xff]
  %v1834 = vld [vmem:[%s0 + $0x188] sm:$0xff]
  %v1835 = vld [vmem:[%s0 + $0x190] sm:$0xff]
  %v1836 = vld [vmem:[%s0 + $0x198] sm:$0xff]
  %v1837 = vld [vmem:[%s0 + $0x1a0] sm:$0xff]
  %v1838 = vld [vmem:[%s0 + $0x1a8] sm:$0xff]
  %v1839 = vld [vmem:[%s0 + $0x1b0] sm:$0xff]
  %v1840 = vld [vmem:[%s0 + $0x1b8] sm:$0xff]
  %v1841 = vld [vmem:[%s0 + $0x1c0] sm:$0xff]
  %v1842 = vld [vmem:[%s0 + $0x1c8] sm:$0xff]
  %v1843 = vld [vmem:[%s0 + $0x1d0] sm:$0xff]
  %v1844 = vld [vmem:[%s0 + $0x1d8] sm:$0xff]
  %v1845 = vld [vmem:[%s0 + $0x1e0] sm:$0xff]
  %v1846 = vld [vmem:[%s0 + $0x1e8] sm:$0xff]
  %v1847 = vld [vmem:[%s0 + $0x1f0] sm:$0xff]
  %v1848 = vld [vmem:[%s0 + $0x1f8] sm:$0xff]
  %v1849 = vld [vmem:[%s0 + $0x200] sm:$0xff]
  %v1850 = vld [vmem:[%s0 + $0x208] sm:$0xff]
  %v1851 = vld [vmem:[%s0 + $0x210] sm:$0xff]
  %v1852 = vld [vmem:[%s0 + $0x218] sm:$0xff]
  %v1853 = vld [vmem:[%s0 + $0x220] sm:$0xff]
  %v1854 = vld [vmem:[%s0 + $0x228] sm:$0xff]
  %v1855 = vld [vmem:[%s0 + $0x230] sm:$0xff]
  %v1856 = vld [vmem:[%s0 + $0x238] sm:$0xff]
  %v1857 = vld [vmem:[%s0 + $0x240] sm:$0xff]
  %v1858 = vld [vmem:[%s0 + $0x248] sm:$0xff]
  %v1859 = vld [vmem:[%s0 + $0x250] sm:$0xff]
  %v1860 = vld [vmem:[%s0 + $0x258] sm:$0xff]
  %v1861 = vld [vmem:[%s0 + $0x260] sm:$0xff]
  %v1862 = vld [vmem:[%s0 + $0x268] sm:$0xff]
  %v1863 = vld [vmem:[%s0 + $0x270] sm:$0xff]
  %v1864 = vld [vmem:[%s0 + $0x278] sm:$0xff]
  %v1865 = vld [vmem:[%s0 + $0x280] sm:$0xff]
  %v1866 = vld [vmem:[%s0 + $0x288] sm:$0xff]
  %v1867 = vld [vmem:[%s0 + $0x290] sm:$0xff]
  %v1868 = vld [vmem:[%s0 + $0x298] sm:$0xff]
  %v1869 = vld [vmem:[%s0 + $0x2a0] sm:$0xff]
  %v1870 = vld [vmem:[%s0 + $0x2a8] sm:$0xff]
  %v1871 = vld [vmem:[%s0 + $0x2b0] sm:$0xff]
  %v1872 = vld [vmem:[%s0 + $0x2b8] sm:$0xff]
  %v1873 = vld [vmem:[%s0 + $0x2c0] sm:$0xff]
  %v1874 = vld [vmem:[%s0 + $0x2c8] sm:$0xff]
  %v1875 = vld [vmem:[%s0 + $0x2d0] sm:$0xff]
  %v1876 = vld [vmem:[%s0 + $0x2d8] sm:$0xff]
  %v1877 = vld [vmem:[%s0 + $0x2e0] sm:$0xff]
  %v1878 = vld [vmem:[%s0 + $0x2e8] sm:$0xff]
  %v1879 = vld [vmem:[%s0 + $0x2f0] sm:$0xff]
  %v1880 = vld [vmem:[%s0 + $0x2f8] sm:$0xff]
  %v1881 = vld [vmem:[%s0 + $0x300] sm:$0xff]
  %v1882 = vld [vmem:[%s0 + $0x308] sm:$0xff]
  %v1883 = vld [vmem:[%s0 + $0x310] sm:$0xff]
  %v1884 = vld [vmem:[%s0 + $0x318] sm:$0xff]
  %v1885 = vld [vmem:[%s0 + $0x320] sm:$0xff]
  %v1886 = vld [vmem:[%s0 + $0x328] sm:$0xff]
  %v1887 = vld [vmem:[%s0 + $0x330] sm:$0xff]
  %v1888 = vld [vmem:[%s0 + $0x338] sm:$0xff]
  %v1889 = vld [vmem:[%s0 + $0x340] sm:$0xff]
  %v1890 = vld [vmem:[%s0 + $0x348] sm:$0xff]
  %v1891 = vld [vmem:[%s0 + $0x350] sm:$0xff]
  %v1892 = vld [vmem:[%s0 + $0x358] sm:$0xff]
  %v1893 = vld [vmem:[%s0 + $0x360] sm:$0xff]
  %v1894 = vld [vmem:[%s0 + $0x368] sm:$0xff]
  %v1895 = vld [vmem:[%s0 + $0x370] sm:$0xff]
  %v1896 = vld [vmem:[%s0 + $0x378] sm:$0xff]
  %v1897 = vld [vmem:[%s0 + $0x380] sm:$0xff]
  %v1898 = vld [vmem:[%s0 + $0x388] sm:$0xff]
  %v1899 = vld [vmem:[%s0 + $0x390] sm:$0xff]
  %v1900 = vld [vmem:[%s0 + $0x398] sm:$0xff]
  %v1901 = vld [vmem:[%s0 + $0x3a0] sm:$0xff]
  %v1902 = vld [vmem:[%s0 + $0x3a8] sm:$0xff]
  %v1903 = vld [vmem:[%s0 + $0x3b0] sm:$0x3]
  %v1904 = vld [vmem:[%s0 + $0x3b8] sm:$0x3]
  %s1905 = scalar_lea.vmem %s1, 1024
  %v1906 = vld [vmem:[%s1905] sm:$0xff]
  %v1907 = vld [vmem:[%s1905 + $0x8] sm:$0xff]
  %v1908 = vld [vmem:[%s1905 + $0x10] sm:$0xff]
  %v1909 = vld [vmem:[%s1905 + $0x18] sm:$0xff]
  %v1910 = vld [vmem:[%s1905 + $0x20] sm:$0xff]
  %v1911 = vld [vmem:[%s1905 + $0x28] sm:$0xff]
  %v1912 = vld [vmem:[%s1905 + $0x30] sm:$0xff]
  %v1913 = vld [vmem:[%s1905 + $0x38] sm:$0xff]
  %v1914 = vld [vmem:[%s1905 + $0x40] sm:$0xff]
  %v1915 = vld [vmem:[%s1905 + $0x48] sm:$0xff]
  %v1916 = vld [vmem:[%s1905 + $0x50] sm:$0xff]
  %v1917 = vld [vmem:[%s1905 + $0x58] sm:$0xff]
  %v1918 = vld [vmem:[%s1905 + $0x60] sm:$0xff]
  %v1919 = vld [vmem:[%s1905 + $0x68] sm:$0xff]
  %v1920 = vld [vmem:[%s1905 + $0x70] sm:$0xff]
  %v1921 = vld [vmem:[%s1905 + $0x78] sm:$0xff]
  %v1922 = vld [vmem:[%s1905 + $0x80] sm:$0xff]
  %v1923 = vld [vmem:[%s1905 + $0x88] sm:$0xff]
  %v1924 = vld [vmem:[%s1905 + $0x90] sm:$0xff]
  %v1925 = vld [vmem:[%s1905 + $0x98] sm:$0xff]
  %v1926 = vld [vmem:[%s1905 + $0xa0] sm:$0xff]
  %v1927 = vld [vmem:[%s1905 + $0xa8] sm:$0xff]
  %v1928 = vld [vmem:[%s1905 + $0xb0] sm:$0xff]
  %v1929 = vld [vmem:[%s1905 + $0xb8] sm:$0xff]
  %v1930 = vld [vmem:[%s1905 + $0xc0] sm:$0xff]
  %v1931 = vld [vmem:[%s1905 + $0xc8] sm:$0xff]
  %v1932 = vld [vmem:[%s1905 + $0xd0] sm:$0xff]
  %v1933 = vld [vmem:[%s1905 + $0xd8] sm:$0xff]
  %v1934 = vld [vmem:[%s1905 + $0xe0] sm:$0xff]
  %v1935 = vld [vmem:[%s1905 + $0xe8] sm:$0xff]
  %v1936 = vld [vmem:[%s1905 + $0xf0] sm:$0xff]
  %v1937 = vld [vmem:[%s1905 + $0xf8] sm:$0xff]
  %1938 = vmatprep.subr.mxu0 0.0
  %1939 = vmatpush1.msra.mxu0 %v1906
  %1940 = vmatprep.subr.mxu0 0.0
  %1941 = vmatpush1.msra.mxu0 %v1907
  %1942 = vmatprep.subr.mxu0 0.0
  %1943 = vmatpush1.msra.mxu0 %v1908
  %1944 = vmatprep.subr.mxu0 0.0
  %1945 = vmatpush1.msra.mxu0 %v1909
  %1946 = vmatprep.subr.mxu0 0.0
  %1947 = vmatpush1.msra.mxu0 %v1910
  %1948 = vmatprep.subr.mxu0 0.0
  %1949 = vmatpush1.msra.mxu0 %v1911
  %1950 = vmatprep.subr.mxu0 0.0
  %1951 = vmatpush1.msra.mxu0 %v1912
  %1952 = vmatprep.subr.mxu0 0.0
  %1953 = vmatpush1.msra.mxu0 %v1913
  %1954 = vmatprep.subr.mxu0 0.0
  %1955 = vmatpush1.msra.mxu0 %v1914
  %1956 = vmatprep.subr.mxu0 0.0
  %1957 = vmatpush1.msra.mxu0 %v1915
  %1958 = vmatprep.subr.mxu0 0.0
  %1959 = vmatpush1.msra.mxu0 %v1916
  %1960 = vmatprep.subr.mxu0 0.0
  %1961 = vmatpush1.msra.mxu0 %v1917
  %1962 = vmatprep.subr.mxu0 0.0
  %1963 = vmatpush1.msra.mxu0 %v1918
  %1964 = vmatprep.subr.mxu0 0.0
  %1965 = vmatpush1.msra.mxu0 %v1919
  %1966 = vmatprep.subr.mxu0 0.0
  %1967 = vmatpush1.msra.mxu0 %v1920
  %1968 = vmatprep.subr.mxu0 0.0
  %1969 = vmatpush1.msra.mxu0 %v1921
  %1970 = vmatprep.subr.mxu0 0.0
  %1971 = vmatpush1.msra.mxu0 %v1922
  %1972 = vmatprep.subr.mxu0 0.0
  %1973 = vmatpush1.msra.mxu0 %v1923
  %1974 = vmatprep.subr.mxu0 0.0
  %1975 = vmatpush1.msra.mxu0 %v1924
  %1976 = vmatprep.subr.mxu0 0.0
  %1977 = vmatpush1.msra.mxu0 %v1925
  %1978 = vmatprep.subr.mxu0 0.0
  %1979 = vmatpush1.msra.mxu0 %v1926
  %1980 = vmatprep.subr.mxu0 0.0
  %1981 = vmatpush1.msra.mxu0 %v1927
  %1982 = vmatprep.subr.mxu0 0.0
  %1983 = vmatpush1.msra.mxu0 %v1928
  %1984 = vmatprep.subr.mxu0 0.0
  %1985 = vmatpush1.msra.mxu0 %v1929
  %1986 = vmatprep.subr.mxu0 0.0
  %1987 = vmatpush1.msra.mxu0 %v1930
  %1988 = vmatprep.subr.mxu0 0.0
  %1989 = vmatpush1.msra.mxu0 %v1931
  %1990 = vmatprep.subr.mxu0 0.0
  %1991 = vmatpush1.msra.mxu0 %v1932
  %1992 = vmatprep.subr.mxu0 0.0
  %1993 = vmatpush1.msra.mxu0 %v1933
  %1994 = vmatprep.subr.mxu0 0.0
  %1995 = vmatpush1.msra.mxu0 %v1934
  %1996 = vmatprep.subr.mxu0 0.0
  %1997 = vmatpush1.msra.mxu0 %v1935
  %1998 = vmatprep.subr.mxu0 0.0
  %1999 = vmatpush1.msra.mxu0 %v1936
  %2000 = vmatprep.subr.mxu0 0.0
  %2001 = vmatpush1.msra.mxu0 %v1937
  %2002 = vmatprep.mubr.f32.mxu0 %v1802
  %2003 = vmatmul.mubr.f32.gmra.mrb[0].mxu0 %v1801
  %v2004 = vpop.f32.mrb[0].mxu0
  %v2005 = vadd.f32 0.0, %v2004
  %v2006 = vpop.f32.mrb[0].mxu0
  %2007 = vmatprep.mubr.f32.mxu0 %v1804
  %2008 = vmatmul.mubr.f32.gmra.mrb[0].mxu0 %v1803
  %v2009 = vpop.f32.mrb[0].mxu0
  %v2010 = vadd.f32 0.0, %v2009
  %v2011 = vpop.f32.mrb[0].mxu0
  %2012 = vmatprep.mubr.f32.mxu0 %v1806
  %2013 = vmatmul.mubr.f32.gmra.mrb[0].mxu0 %v1805
  %v2014 = vpop.f32.mrb[0].mxu0
  %v2015 = vadd.f32 0.0, %v2014
  %v2016 = vpop.f32.mrb[0].mxu0
  %2017 = vmatprep.mubr.f32.mxu0 %v1808
  %2018 = vmatmul.mubr.f32.gmra.mrb[0].mxu0 %v1807
  %v2019 = vpop.f32.mrb[0].mxu0
  %v2020 = vadd.f32 0.0, %v2019
  %v2021 = vpop.f32.mrb[0].mxu0
  %2022 = vmatprep.mubr.f32.mxu0 %v1810
  %2023 = vmatmul.mubr.f32.gmra.mrb[0].mxu0 %v1809
  %v2024 = vpop.f32.mrb[0].mxu0
  %v2025 = vadd.f32 0.0, %v2024
  %v2026 = vpop.f32.mrb[0].mxu0
  %2027 = vmatprep.mubr.f32.mxu0 %v1812
  %2028 = vmatmul.mubr.f32.gmra.mrb[0].mxu0 %v1811
  %v2029 = vpop.f32.mrb[0].mxu0
  %v2030 = vadd.f32 0.0, %v2029
  %v2031 = vpop.f32.mrb[0].mxu0
  %2032 = vmatprep.mubr.f32.mxu0 %v1814
  %2033 = vmatmul.mubr.f32.gmra.mrb[0].mxu0 %v1813
  %v2034 = vpop.f32.mrb[0].mxu0
  %v2035 = vadd.f32 0.0, %v2034
  %v2036 = vpop.f32.mrb[0].mxu0
  %2037 = vmatprep.mubr.f32.mxu0 %v1816
  %2038 = vmatmul.mubr.f32.gmra.mrb[0].mxu0 %v1815
  %v2039 = vpop.f32.mrb[0].mxu0
  %v2040 = vadd.f32 0.0, %v2039
  %v2041 = vpop.f32.mrb[0].mxu0
  %2042 = vmatprep.mubr.f32.mxu0 %v1818
  %2043 = vmatmul.mubr.f32.gmra.mrb[0].mxu0 %v1817
  %v2044 = vpop.f32.mrb[0].mxu0
  %v2045 = vadd.f32 0.0, %v2044
  %v2046 = vpop.f32.mrb[0].mxu0
  %2047 = vmatprep.mubr.f32.mxu0 %v1820
  %2048 = vmatmul.mubr.f32.gmra.mrb[0].mxu0 %v1819
  %v2049 = vpop.f32.mrb[0].mxu0
  %v2050 = vadd.f32 0.0, %v2049
  %v2051 = vpop.f32.mrb[0].mxu0
  %2052 = vmatprep.mubr.f32.mxu0 %v1822
  %2053 = vmatmul.mubr.f32.gmra.mrb[0].mxu0 %v1821
  %v2054 = vpop.f32.mrb[0].mxu0
  %v2055 = vadd.f32 0.0, %v2054
  %v2056 = vpop.f32.mrb[0].mxu0
  %2057 = vmatprep.mubr.f32.mxu0 %v1824
  %2058 = vmatmul.mubr.f32.gmra.mrb[0].mxu0 %v1823
  %v2059 = vpop.f32.mrb[0].mxu0
  %v2060 = vadd.f32 0.0, %v2059
  %v2061 = vpop.f32.mrb[0].mxu0
  %2062 = vmatprep.mubr.f32.mxu0 %v1826
  %2063 = vmatmul.mubr.f32.gmra.mrb[0].mxu0 %v1825
  %v2064 = vpop.f32.mrb[0].mxu0
  %v2065 = vadd.f32 0.0, %v2064
  %v2066 = vpop.f32.mrb[0].mxu0
  %2067 = vmatprep.mubr.f32.mxu0 %v1828
  %2068 = vmatmul.mubr.f32.gmra.mrb[0].mxu0 %v1827
  %v2069 = vpop.f32.mrb[0].mxu0
  %v2070 = vadd.f32 0.0, %v2069
  %v2071 = vpop.f32.mrb[0].mxu0
  %2072 = vmatprep.mubr.f32.mxu0 %v1830
  %2073 = vmatmul.mubr.f32.gmra.mrb[0].mxu0 %v1829
  %v2074 = vpop.f32.mrb[0].mxu0
  %v2075 = vadd.f32 0.0, %v2074
  %v2076 = vpop.f32.mrb[0].mxu0
  %2077 = vmatprep.mubr.f32.mxu0 %v1832
  %2078 = vmatmul.mubr.f32.gmra.mrb[0].mxu0 %v1831
  %v2079 = vpop.f32.mrb[0].mxu0
  %v2080 = vadd.f32 0.0, %v2079
  %v2081 = vpop.f32.mrb[0].mxu0
  %2082 = vmatprep.mubr.f32.mxu0 %v1834
  %2083 = vmatmul.mubr.f32.gmra.mrb[0].mxu0 %v1833
  %v2084 = vpop.f32.mrb[0].mxu0
  %v2085 = vadd.f32 0.0, %v2084
  %v2086 = vpop.f32.mrb[0].mxu0
  %2087 = vmatprep.mubr.f32.mxu0 %v1836
  %2088 = vmatmul.mubr.f32.gmra.mrb[0].mxu0 %v1835
  %v2089 = vpop.f32.mrb[0].mxu0
  %v2090 = vadd.f32 0.0, %v2089
  %v2091 = vpop.f32.mrb[0].mxu0
  %2092 = vmatprep.mubr.f32.mxu0 %v1838
  %2093 = vmatmul.mubr.f32.gmra.mrb[0].mxu0 %v1837
  %v2094 = vpop.f32.mrb[0].mxu0
  %v2095 = vadd.f32 0.0, %v2094
  %v2096 = vpop.f32.mrb[0].mxu0
  %2097 = vmatprep.mubr.f32.mxu0 %v1840
  %2098 = vmatmul.mubr.f32.gmra.mrb[0].mxu0 %v1839
  %v2099 = vpop.f32.mrb[0].mxu0
  %v2100 = vadd.f32 0.0, %v2099
  %v2101 = vpop.f32.mrb[0].mxu0
  %2102 = vmatprep.mubr.f32.mxu0 %v1842
  %2103 = vmatmul.mubr.f32.gmra.mrb[0].mxu0 %v1841
  %v2104 = vpop.f32.mrb[0].mxu0
  %v2105 = vpop.f32.mrb[0].mxu0
  %2106 = vmatprep.mubr.f32.mxu0 %v1844
  %2107 = vmatmul.mubr.f32.gmra.mrb[0].mxu0 %v1843
  %v2108 = vpop.f32.mrb[0].mxu0
  %v2109 = vpop.f32.mrb[0].mxu0
  %2110 = vmatprep.mubr.f32.mxu0 %v1846
  %2111 = vmatmul.mubr.f32.gmra.mrb[0].mxu0 %v1845
  %v2112 = vpop.f32.mrb[0].mxu0
  %v2113 = vpop.f32.mrb[0].mxu0
  %2114 = vmatprep.mubr.f32.mxu0 %v1848
  %2115 = vmatmul.mubr.f32.gmra.mrb[0].mxu0 %v1847
  %v2116 = vpop.f32.mrb[0].mxu0
  %v2117 = vpop.f32.mrb[0].mxu0
  %2118 = vmatprep.mubr.f32.mxu0 %v1850
  %2119 = vmatmul.mubr.f32.gmra.mrb[0].mxu0 %v1849
  %v2120 = vpop.f32.mrb[0].mxu0
  %v2121 = vpop.f32.mrb[0].mxu0
  %2122 = vmatprep.mubr.f32.mxu0 %v1852
  %2123 = vmatmul.mubr.f32.gmra.mrb[0].mxu0 %v1851
  %v2124 = vpop.f32.mrb[0].mxu0
  %v2125 = vpop.f32.mrb[0].mxu0
  %2126 = vmatprep.mubr.f32.mxu0 %v1854
  %2127 = vmatmul.mubr.f32.gmra.mrb[0].mxu0 %v1853
  %v2128 = vpop.f32.mrb[0].mxu0
  %v2129 = vpop.f32.mrb[0].mxu0
  %2130 = vmatprep.mubr.f32.mxu0 %v1856
  %2131 = vmatmul.mubr.f32.gmra.mrb[0].mxu0 %v1855
  %v2132 = vpop.f32.mrb[0].mxu0
  %v2133 = vpop.f32.mrb[0].mxu0
  %2134 = vmatprep.mubr.f32.mxu0 %v1858
  %2135 = vmatmul.mubr.f32.gmra.mrb[0].mxu0 %v1857
  %v2136 = vpop.f32.mrb[0].mxu0
  %v2137 = vpop.f32.mrb[0].mxu0
  %2138 = vmatprep.mubr.f32.mxu0 %v1860
  %2139 = vmatmul.mubr.f32.gmra.mrb[0].mxu0 %v1859
  %v2140 = vpop.f32.mrb[0].mxu0
  %v2141 = vpop.f32.mrb[0].mxu0
  %2142 = vmatprep.mubr.f32.mxu0 %v1862
  %2143 = vmatmul.mubr.f32.gmra.mrb[0].mxu0 %v1861
  %v2144 = vpop.f32.mrb[0].mxu0
  %v2145 = vpop.f32.mrb[0].mxu0
  %2146 = vmatprep.mubr.f32.mxu0 %v1864
  %2147 = vmatmul.mubr.f32.gmra.mrb[0].mxu0 %v1863
  %v2148 = vpop.f32.mrb[0].mxu0
  %v2149 = vpop.f32.mrb[0].mxu0
  %2150 = vmatprep.mubr.f32.mxu0 %v1866
  %2151 = vmatmul.mubr.f32.gmra.mrb[0].mxu0 %v1865
  %v2152 = vpop.f32.mrb[0].mxu0
  %v2153 = vadd.f32 0.0, %v2152
  %v2154 = vpop.f32.mrb[0].mxu0
  %2155 = vmatprep.mubr.f32.mxu0 %v1868
  %2156 = vmatmul.mubr.f32.gmra.mrb[0].mxu0 %v1867
  %v2157 = vpop.f32.mrb[0].mxu0
  %v2158 = vadd.f32 0.0, %v2157
  %v2159 = vpop.f32.mrb[0].mxu0
  %2160 = vmatprep.mubr.f32.mxu0 %v1870
  %2161 = vmatmul.mubr.f32.gmra.mrb[0].mxu0 %v1869
  %v2162 = vpop.f32.mrb[0].mxu0
  %v2163 = vadd.f32 0.0, %v2162
  %v2164 = vpop.f32.mrb[0].mxu0
  %2165 = vmatprep.mubr.f32.mxu0 %v1872
  %2166 = vmatmul.mubr.f32.gmra.mrb[0].mxu0 %v1871
  %v2167 = vpop.f32.mrb[0].mxu0
  %v2168 = vadd.f32 0.0, %v2167
  %v2169 = vpop.f32.mrb[0].mxu0
  %2170 = vmatprep.mubr.f32.mxu0 %v1874
  %2171 = vmatmul.mubr.f32.gmra.mrb[0].mxu0 %v1873
  %v2172 = vpop.f32.mrb[0].mxu0
  %v2173 = vadd.f32 0.0, %v2172
  %v2174 = vpop.f32.mrb[0].mxu0
  %2175 = vmatprep.mubr.f32.mxu0 %v1876
  %2176 = vmatmul.mubr.f32.gmra.mrb[0].mxu0 %v1875
  %v2177 = vpop.f32.mrb[0].mxu0
  %v2178 = vadd.f32 0.0, %v2177
  %v2179 = vpop.f32.mrb[0].mxu0
  %2180 = vmatprep.mubr.f32.mxu0 %v1878
  %2181 = vmatmul.mubr.f32.gmra.mrb[0].mxu0 %v1877
  %v2182 = vpop.f32.mrb[0].mxu0
  %v2183 = vadd.f32 0.0, %v2182
  %v2184 = vpop.f32.mrb[0].mxu0
  %2185 = vmatprep.mubr.f32.mxu0 %v1880
  %2186 = vmatmul.mubr.f32.gmra.mrb[0].mxu0 %v1879
  %v2187 = vpop.f32.mrb[0].mxu0
  %v2188 = vadd.f32 0.0, %v2187
  %v2189 = vpop.f32.mrb[0].mxu0
  %2190 = vmatprep.mubr.f32.mxu0 %v1882
  %2191 = vmatmul.mubr.f32.gmra.mrb[0].mxu0 %v1881
  %v2192 = vpop.f32.mrb[0].mxu0
  %v2193 = vadd.f32 0.0, %v2192
  %v2194 = vpop.f32.mrb[0].mxu0
  %2195 = vmatprep.mubr.f32.mxu0 %v1884
  %2196 = vmatmul.mubr.f32.gmra.mrb[0].mxu0 %v1883
  %v2197 = vpop.f32.mrb[0].mxu0
  %v2198 = vadd.f32 0.0, %v2197
  %v2199 = vpop.f32.mrb[0].mxu0
  %2200 = vmatprep.mubr.f32.mxu0 %v1886
  %2201 = vmatmul.mubr.f32.gmra.mrb[0].mxu0 %v1885
  %v2202 = vpop.f32.mrb[0].mxu0
  %v2203 = vadd.f32 0.0, %v2202
  %v2204 = vpop.f32.mrb[0].mxu0
  %2205 = vmatprep.mubr.f32.mxu0 %v1888
  %2206 = vmatmul.mubr.f32.gmra.mrb[0].mxu0 %v1887
  %v2207 = vpop.f32.mrb[0].mxu0
  %v2208 = vadd.f32 0.0, %v2207
  %v2209 = vpop.f32.mrb[0].mxu0
  %2210 = vmatprep.mubr.f32.mxu0 %v1890
  %2211 = vmatmul.mubr.f32.gmra.mrb[0].mxu0 %v1889
  %v2212 = vpop.f32.mrb[0].mxu0
  %v2213 = vadd.f32 0.0, %v2212
  %v2214 = vpop.f32.mrb[0].mxu0
  %2215 = vmatprep.mubr.f32.mxu0 %v1892
  %2216 = vmatmul.mubr.f32.gmra.mrb[0].mxu0 %v1891
  %v2217 = vpop.f32.mrb[0].mxu0
  %v2218 = vadd.f32 0.0, %v2217
  %v2219 = vpop.f32.mrb[0].mxu0
  %2220 = vmatprep.mubr.f32.mxu0 %v1894
  %2221 = vmatmul.mubr.f32.gmra.mrb[0].mxu0 %v1893
  %v2222 = vpop.f32.mrb[0].mxu0
  %v2223 = vadd.f32 0.0, %v2222
  %v2224 = vpop.f32.mrb[0].mxu0
  %2225 = vmatprep.mubr.f32.mxu0 %v1896
  %2226 = vmatmul.mubr.f32.gmra.mrb[0].mxu0 %v1895
  %v2227 = vpop.f32.mrb[0].mxu0
  %v2228 = vadd.f32 0.0, %v2227
  %v2229 = vpop.f32.mrb[0].mxu0
  %2230 = vmatprep.mubr.f32.mxu0 %v1898
  %2231 = vmatmul.mubr.f32.gmra.mrb[0].mxu0 %v1897
  %v2232 = vpop.f32.mrb[0].mxu0
  %v2233 = vadd.f32 0.0, %v2232
  %v2234 = vpop.f32.mrb[0].mxu0
  %2235 = vmatprep.mubr.f32.mxu0 %v1900
  %2236 = vmatmul.mubr.f32.gmra.mrb[0].mxu0 %v1899
  %v2237 = vpop.f32.mrb[0].mxu0
  %v2238 = vadd.f32 0.0, %v2237
  %v2239 = vpop.f32.mrb[0].mxu0
  %2240 = vmatprep.mubr.f32.mxu0 %v1902
  %2241 = vmatmul.mubr.f32.gmra.mrb[0].mxu0 %v1901
  %v2242 = vpop.f32.mrb[0].mxu0
  %v2243 = vadd.f32 0.0, %v2242
  %v2244 = vpop.f32.mrb[0].mxu0
  %2245 = vmatprep.mubr.f32.mxu0 %v1904
  %2246 = vmatmul.mubr.f32.gmra.mrb[0].mxu0 %v1903
  %v2247 = vpop.f32.mrb[0].mxu0
  %v2248 = vadd.f32 0.0, %v2247
  %v2249 = vpop.f32.mrb[0].mxu0
  %2250 = vdwg.mxu0
  %v2251 = vadd.f32 %v1761, %v2005
  %v2252 = vadd.f32 %v1762, %v2010
  %v2253 = vadd.f32 %v1763, %v2015
  %v2254 = vadd.f32 %v1764, %v2020
  %v2255 = vadd.f32 %v1765, %v2025
  %v2256 = vadd.f32 %v1766, %v2030
  %v2257 = vadd.f32 %v1767, %v2035
  %v2258 = vadd.f32 %v1768, %v2040
  %v2259 = vadd.f32 %v1769, %v2045
  %v2260 = vadd.f32 %v1770, %v2050
  %v2261 = vadd.f32 %v1771, %v2055
  %v2262 = vadd.f32 %v1772, %v2060
  %v2263 = vadd.f32 %v1773, %v2065
  %v2264 = vadd.f32 %v1774, %v2070
  %v2265 = vadd.f32 %v1775, %v2075
  %v2266 = vadd.f32 %v1776, %v2080
  %v2267 = vadd.f32 %v1777, %v2085
  %v2268 = vadd.f32 %v1778, %v2090
  %v2269 = vadd.f32 %v1779, %v2095
  %v2270 = vadd.f32 %v1780, %v2100
  %v2271 = vadd.f32 %v1781, %v2153
  %v2272 = vadd.f32 %v1782, %v2158
  %v2273 = vadd.f32 %v1783, %v2163
  %v2274 = vadd.f32 %v1784, %v2168
  %v2275 = vadd.f32 %v1785, %v2173
  %v2276 = vadd.f32 %v1786, %v2178
  %v2277 = vadd.f32 %v1787, %v2183
  %v2278 = vadd.f32 %v1788, %v2188
  %v2279 = vadd.f32 %v1789, %v2193
  %v2280 = vadd.f32 %v1790, %v2198
  %v2281 = vadd.f32 %v1791, %v2203
  %v2282 = vadd.f32 %v1792, %v2208
  %v2283 = vadd.f32 %v1793, %v2213
  %v2284 = vadd.f32 %v1794, %v2218
  %v2285 = vadd.f32 %v1795, %v2223
  %v2286 = vadd.f32 %v1796, %v2228
  %v2287 = vadd.f32 %v1797, %v2233
  %v2288 = vadd.f32 %v1798, %v2238
  %v2289 = vadd.f32 %v1799, %v2243
  %v2290 = vadd.f32 %v1800, %v2248
  %v2291 = vld [vmem:[%s0 + $0xa0] sm:$0xff]
  %v2292 = vld [vmem:[%s0 + $0xa8] sm:$0xff]
  %v2293 = vld [vmem:[%s0 + $0xb0] sm:$0xff]
  %v2294 = vld [vmem:[%s0 + $0xb8] sm:$0xff]
  %v2295 = vld [vmem:[%s0 + $0xc0] sm:$0xff]
  %v2296 = vld [vmem:[%s0 + $0xc8] sm:$0xff]
  %v2297 = vld [vmem:[%s0 + $0xd0] sm:$0xff]
  %v2298 = vld [vmem:[%s0 + $0xd8] sm:$0xff]
  %v2299 = vld [vmem:[%s0 + $0xe0] sm:$0xff]
  %v2300 = vld [vmem:[%s0 + $0xe8] sm:$0xff]
  %v2301 = vld [vmem:[%s0 + $0xf0] sm:$0xff]
  %v2302 = vld [vmem:[%s0 + $0xf8] sm:$0xff]
  %v2303 = vld [vmem:[%s0 + $0x100] sm:$0xff]
  %v2304 = vld [vmem:[%s0 + $0x108] sm:$0xff]
  %v2305 = vld [vmem:[%s0 + $0x110] sm:$0xff]
  %v2306 = vld [vmem:[%s0 + $0x118] sm:$0xff]
  %v2307 = vld [vmem:[%s0 + $0x120] sm:$0xff]
  %v2308 = vld [vmem:[%s0 + $0x128] sm:$0xff]
  %v2309 = vld [vmem:[%s0 + $0x130] sm:$0xff]
  %v2310 = vld [vmem:[%s0 + $0x138] sm:$0xff]
  %v2311 = vld [vmem:[%s0 + $0x140] sm:$0xff]
  %v2312 = vld [vmem:[%s0 + $0x148] sm:$0xff]
  %v2313 = vld [vmem:[%s0 + $0x150] sm:$0xff]
  %v2314 = vld [vmem:[%s0 + $0x158] sm:$0xff]
  %v2315 = vld [vmem:[%s0 + $0x160] sm:$0xff]
  %v2316 = vld [vmem:[%s0 + $0x168] sm:$0xff]
  %v2317 = vld [vmem:[%s0 + $0x170] sm:$0xff]
  %v2318 = vld [vmem:[%s0 + $0x178] sm:$0xff]
  %v2319 = vld [vmem:[%s0 + $0x180] sm:$0xff]
  %v2320 = vld [vmem:[%s0 + $0x188] sm:$0xff]
  %v2321 = vld [vmem:[%s0 + $0x190] sm:$0xff]
  %v2322 = vld [vmem:[%s0 + $0x198] sm:$0xff]
  %v2323 = vld [vmem:[%s0 + $0x1a0] sm:$0xff]
  %v2324 = vld [vmem:[%s0 + $0x1a8] sm:$0xff]
  %v2325 = vld [vmem:[%s0 + $0x1b0] sm:$0xff]
  %v2326 = vld [vmem:[%s0 + $0x1b8] sm:$0xff]
  %v2327 = vld [vmem:[%s0 + $0x1c0] sm:$0xff]
  %v2328 = vld [vmem:[%s0 + $0x1c8] sm:$0xff]
  %v2329 = vld [vmem:[%s0 + $0x1d0] sm:$0xff]
  %v2330 = vld [vmem:[%s0 + $0x1d8] sm:$0xff]
  %v2331 = vld [vmem:[%s0 + $0x1e0] sm:$0xff]
  %v2332 = vld [vmem:[%s0 + $0x1e8] sm:$0xff]
  %v2333 = vld [vmem:[%s0 + $0x1f0] sm:$0xff]
  %v2334 = vld [vmem:[%s0 + $0x1f8] sm:$0xff]
  %v2335 = vld [vmem:[%s0 + $0x200] sm:$0xff]
  %v2336 = vld [vmem:[%s0 + $0x208] sm:$0xff]
  %v2337 = vld [vmem:[%s0 + $0x210] sm:$0xff]
  %v2338 = vld [vmem:[%s0 + $0x218] sm:$0xff]
  %v2339 = vld [vmem:[%s0 + $0x220] sm:$0xff]
  %v2340 = vld [vmem:[%s0 + $0x228] sm:$0xff]
  %v2341 = vld [vmem:[%s0 + $0x230] sm:$0xff]
  %v2342 = vld [vmem:[%s0 + $0x238] sm:$0xff]
  %v2343 = vld [vmem:[%s0 + $0x240] sm:$0xff]
  %v2344 = vld [vmem:[%s0 + $0x248] sm:$0xff]
  %v2345 = vld [vmem:[%s0 + $0x250] sm:$0xff]
  %v2346 = vld [vmem:[%s0 + $0x258] sm:$0xff]
  %v2347 = vld [vmem:[%s0 + $0x260] sm:$0xff]
  %v2348 = vld [vmem:[%s0 + $0x268] sm:$0xff]
  %v2349 = vld [vmem:[%s0 + $0x270] sm:$0xff]
  %v2350 = vld [vmem:[%s0 + $0x278] sm:$0xff]
  %v2351 = vld [vmem:[%s0 + $0x280] sm:$0xff]
  %v2352 = vld [vmem:[%s0 + $0x288] sm:$0xff]
  %v2353 = vld [vmem:[%s0 + $0x290] sm:$0xff]
  %v2354 = vld [vmem:[%s0 + $0x298] sm:$0xff]
  %v2355 = vld [vmem:[%s0 + $0x2a0] sm:$0xff]
  %v2356 = vld [vmem:[%s0 + $0x2a8] sm:$0xff]
  %v2357 = vld [vmem:[%s0 + $0x2b0] sm:$0xff]
  %v2358 = vld [vmem:[%s0 + $0x2b8] sm:$0xff]
  %v2359 = vld [vmem:[%s0 + $0x2c0] sm:$0xff]
  %v2360 = vld [vmem:[%s0 + $0x2c8] sm:$0xff]
  %v2361 = vld [vmem:[%s0 + $0x2d0] sm:$0xff]
  %v2362 = vld [vmem:[%s0 + $0x2d8] sm:$0xff]
  %v2363 = vld [vmem:[%s0 + $0x2e0] sm:$0xff]
  %v2364 = vld [vmem:[%s0 + $0x2e8] sm:$0xff]
  %v2365 = vld [vmem:[%s0 + $0x2f0] sm:$0xff]
  %v2366 = vld [vmem:[%s0 + $0x2f8] sm:$0xff]
  %v2367 = vld [vmem:[%s0 + $0x300] sm:$0xff]
  %v2368 = vld [vmem:[%s0 + $0x308] sm:$0xff]
  %v2369 = vld [vmem:[%s0 + $0x310] sm:$0xff]
  %v2370 = vld [vmem:[%s0 + $0x318] sm:$0xff]
  %v2371 = vld [vmem:[%s0 + $0x320] sm:$0xff]
  %v2372 = vld [vmem:[%s0 + $0x328] sm:$0xff]
  %v2373 = vld [vmem:[%s0 + $0x330] sm:$0xff]
  %v2374 = vld [vmem:[%s0 + $0x338] sm:$0xff]
  %v2375 = vld [vmem:[%s0 + $0x340] sm:$0xff]
  %v2376 = vld [vmem:[%s0 + $0x348] sm:$0xff]
  %v2377 = vld [vmem:[%s0 + $0x350] sm:$0xff]
  %v2378 = vld [vmem:[%s0 + $0x358] sm:$0xff]
  %v2379 = vld [vmem:[%s0 + $0x360] sm:$0xff]
  %v2380 = vld [vmem:[%s0 + $0x368] sm:$0xff]
  %v2381 = vld [vmem:[%s0 + $0x370] sm:$0xff]
  %v2382 = vld [vmem:[%s0 + $0x378] sm:$0xff]
  %v2383 = vld [vmem:[%s0 + $0x380] sm:$0xff]
  %v2384 = vld [vmem:[%s0 + $0x388] sm:$0xff]
  %v2385 = vld [vmem:[%s0 + $0x390] sm:$0xff]
  %v2386 = vld [vmem:[%s0 + $0x398] sm:$0xff]
  %v2387 = vld [vmem:[%s0 + $0x3a0] sm:$0xff]
  %v2388 = vld [vmem:[%s0 + $0x3a8] sm:$0xff]
  %v2389 = vld [vmem:[%s0 + $0x3b0] sm:$0xff]
  %v2390 = vld [vmem:[%s0 + $0x3b8] sm:$0xff]
  %v2391 = vld [vmem:[%s0 + $0x3c0] sm:$0xff]
  %v2392 = vld [vmem:[%s0 + $0x3c8] sm:$0xff]
  %v2393 = vld [vmem:[%s0 + $0x3d0] sm:$0x3]
  %v2394 = vld [vmem:[%s0 + $0x3d8] sm:$0x3]
  %s2395 = scalar_lea.vmem %s1, 1280
  %v2396 = vld [vmem:[%s2395] sm:$0xff]
  %v2397 = vld [vmem:[%s2395 + $0x8] sm:$0xff]
  %v2398 = vld [vmem:[%s2395 + $0x10] sm:$0xff]
  %v2399 = vld [vmem:[%s2395 + $0x18] sm:$0xff]
  %v2400 = vld [vmem:[%s2395 + $0x20] sm:$0xff]
  %v2401 = vld [vmem:[%s2395 + $0x28] sm:$0xff]
  %v2402 = vld [vmem:[%s2395 + $0x30] sm:$0xff]
  %v2403 = vld [vmem:[%s2395 + $0x38] sm:$0xff]
  %v2404 = vld [vmem:[%s2395 + $0x40] sm:$0xff]
  %v2405 = vld [vmem:[%s2395 + $0x48] sm:$0xff]
  %v2406 = vld [vmem:[%s2395 + $0x50] sm:$0xff]
  %v2407 = vld [vmem:[%s2395 + $0x58] sm:$0xff]
  %v2408 = vld [vmem:[%s2395 + $0x60] sm:$0xff]
  %v2409 = vld [vmem:[%s2395 + $0x68] sm:$0xff]
  %v2410 = vld [vmem:[%s2395 + $0x70] sm:$0xff]
  %v2411 = vld [vmem:[%s2395 + $0x78] sm:$0xff]
  %v2412 = vld [vmem:[%s2395 + $0x80] sm:$0xff]
  %v2413 = vld [vmem:[%s2395 + $0x88] sm:$0xff]
  %v2414 = vld [vmem:[%s2395 + $0x90] sm:$0xff]
  %v2415 = vld [vmem:[%s2395 + $0x98] sm:$0xff]
  %v2416 = vld [vmem:[%s2395 + $0xa0] sm:$0xff]
  %v2417 = vld [vmem:[%s2395 + $0xa8] sm:$0xff]
  %v2418 = vld [vmem:[%s2395 + $0xb0] sm:$0xff]
  %v2419 = vld [vmem:[%s2395 + $0xb8] sm:$0xff]
  %v2420 = vld [vmem:[%s2395 + $0xc0] sm:$0xff]
  %v2421 = vld [vmem:[%s2395 + $0xc8] sm:$0xff]
  %v2422 = vld [vmem:[%s2395 + $0xd0] sm:$0xff]
  %v2423 = vld [vmem:[%s2395 + $0xd8] sm:$0xff]
  %v2424 = vld [vmem:[%s2395 + $0xe0] sm:$0xff]
  %v2425 = vld [vmem:[%s2395 + $0xe8] sm:$0xff]
  %v2426 = vld [vmem:[%s2395 + $0xf0] sm:$0xff]
  %v2427 = vld [vmem:[%s2395 + $0xf8] sm:$0xff]
  %2428 = vmatprep.subr.mxu0 0.0
  %2429 = vmatpush1.msra.mxu0 %v2396
  %2430 = vmatprep.subr.mxu0 0.0
  %2431 = vmatpush1.msra.mxu0 %v2397
  %2432 = vmatprep.subr.mxu0 0.0
  %2433 = vmatpush1.msra.mxu0 %v2398
  %2434 = vmatprep.subr.mxu0 0.0
  %2435 = vmatpush1.msra.mxu0 %v2399
  %2436 = vmatprep.subr.mxu0 0.0
  %2437 = vmatpush1.msra.mxu0 %v2400
  %2438 = vmatprep.subr.mxu0 0.0
  %2439 = vmatpush1.msra.mxu0 %v2401
  %2440 = vmatprep.subr.mxu0 0.0
  %2441 = vmatpush1.msra.mxu0 %v2402
  %2442 = vmatprep.subr.mxu0 0.0
  %2443 = vmatpush1.msra.mxu0 %v2403
  %2444 = vmatprep.subr.mxu0 0.0
  %2445 = vmatpush1.msra.mxu0 %v2404
  %2446 = vmatprep.subr.mxu0 0.0
  %2447 = vmatpush1.msra.mxu0 %v2405
  %2448 = vmatprep.subr.mxu0 0.0
  %2449 = vmatpush1.msra.mxu0 %v2406
  %2450 = vmatprep.subr.mxu0 0.0
  %2451 = vmatpush1.msra.mxu0 %v2407
  %2452 = vmatprep.subr.mxu0 0.0
  %2453 = vmatpush1.msra.mxu0 %v2408
  %2454 = vmatprep.subr.mxu0 0.0
  %2455 = vmatpush1.msra.mxu0 %v2409
  %2456 = vmatprep.subr.mxu0 0.0
  %2457 = vmatpush1.msra.mxu0 %v2410
  %2458 = vmatprep.subr.mxu0 0.0
  %2459 = vmatpush1.msra.mxu0 %v2411
  %2460 = vmatprep.subr.mxu0 0.0
  %2461 = vmatpush1.msra.mxu0 %v2412
  %2462 = vmatprep.subr.mxu0 0.0
  %2463 = vmatpush1.msra.mxu0 %v2413
  %2464 = vmatprep.subr.mxu0 0.0
  %2465 = vmatpush1.msra.mxu0 %v2414
  %2466 = vmatprep.subr.mxu0 0.0
  %2467 = vmatpush1.msra.mxu0 %v2415
  %2468 = vmatprep.subr.mxu0 0.0
  %2469 = vmatpush1.msra.mxu0 %v2416
  %2470 = vmatprep.subr.mxu0 0.0
  %2471 = vmatpush1.msra.mxu0 %v2417
  %2472 = vmatprep.subr.mxu0 0.0
  %2473 = vmatpush1.msra.mxu0 %v2418
  %2474 = vmatprep.subr.mxu0 0.0
  %2475 = vmatpush1.msra.mxu0 %v2419
  %2476 = vmatprep.subr.mxu0 0.0
  %2477 = vmatpush1.msra.mxu0 %v2420
  %2478 = vmatprep.subr.mxu0 0.0
  %2479 = vmatpush1.msra.mxu0 %v2421
  %2480 = vmatprep.subr.mxu0 0.0
  %2481 = vmatpush1.msra.mxu0 %v2422
  %2482 = vmatprep.subr.mxu0 0.0
  %2483 = vmatpush1.msra.mxu0 %v2423
  %2484 = vmatprep.subr.mxu0 0.0
  %2485 = vmatpush1.msra.mxu0 %v2424
  %2486 = vmatprep.subr.mxu0 0.0
  %2487 = vmatpush1.msra.mxu0 %v2425
  %2488 = vmatprep.subr.mxu0 0.0
  %2489 = vmatpush1.msra.mxu0 %v2426
  %2490 = vmatprep.subr.mxu0 0.0
  %2491 = vmatpush1.msra.mxu0 %v2427
  %2492 = vmatprep.mubr.f32.mxu0 %v2292
  %2493 = vmatmul.mubr.f32.gmra.mrb[0].mxu0 %v2291
  %v2494 = vpop.f32.mrb[0].mxu0
  %v2495 = vadd.f32 0.0, %v2494
  %v2496 = vpop.f32.mrb[0].mxu0
  %2497 = vmatprep.mubr.f32.mxu0 %v2294
  %2498 = vmatmul.mubr.f32.gmra.mrb[0].mxu0 %v2293
  %v2499 = vpop.f32.mrb[0].mxu0
  %v2500 = vadd.f32 0.0, %v2499
  %v2501 = vpop.f32.mrb[0].mxu0
  %2502 = vmatprep.mubr.f32.mxu0 %v2296
  %2503 = vmatmul.mubr.f32.gmra.mrb[0].mxu0 %v2295
  %v2504 = vpop.f32.mrb[0].mxu0
  %v2505 = vadd.f32 0.0, %v2504
  %v2506 = vpop.f32.mrb[0].mxu0
  %2507 = vmatprep.mubr.f32.mxu0 %v2298
  %2508 = vmatmul.mubr.f32.gmra.mrb[0].mxu0 %v2297
  %v2509 = vpop.f32.mrb[0].mxu0
  %v2510 = vadd.f32 0.0, %v2509
  %v2511 = vpop.f32.mrb[0].mxu0
  %2512 = vmatprep.mubr.f32.mxu0 %v2300
  %2513 = vmatmul.mubr.f32.gmra.mrb[0].mxu0 %v2299
  %v2514 = vpop.f32.mrb[0].mxu0
  %v2515 = vadd.f32 0.0, %v2514
  %v2516 = vpop.f32.mrb[0].mxu0
  %2517 = vmatprep.mubr.f32.mxu0 %v2302
  %2518 = vmatmul.mubr.f32.gmra.mrb[0].mxu0 %v2301
  %v2519 = vpop.f32.mrb[0].mxu0
  %v2520 = vadd.f32 0.0, %v2519
  %v2521 = vpop.f32.mrb[0].mxu0
  %2522 = vmatprep.mubr.f32.mxu0 %v2304
  %2523 = vmatmul.mubr.f32.gmra.mrb[0].mxu0 %v2303
  %v2524 = vpop.f32.mrb[0].mxu0
  %v2525 = vadd.f32 0.0, %v2524
  %v2526 = vpop.f32.mrb[0].mxu0
  %2527 = vmatprep.mubr.f32.mxu0 %v2306
  %2528 = vmatmul.mubr.f32.gmra.mrb[0].mxu0 %v2305
  %v2529 = vpop.f32.mrb[0].mxu0
  %v2530 = vadd.f32 0.0, %v2529
  %v2531 = vpop.f32.mrb[0].mxu0
  %2532 = vmatprep.mubr.f32.mxu0 %v2308
  %2533 = vmatmul.mubr.f32.gmra.mrb[0].mxu0 %v2307
  %v2534 = vpop.f32.mrb[0].mxu0
  %v2535 = vadd.f32 0.0, %v2534
  %v2536 = vpop.f32.mrb[0].mxu0
  %2537 = vmatprep.mubr.f32.mxu0 %v2310
  %2538 = vmatmul.mubr.f32.gmra.mrb[0].mxu0 %v2309
  %v2539 = vpop.f32.mrb[0].mxu0
  %v2540 = vadd.f32 0.0, %v2539
  %v2541 = vpop.f32.mrb[0].mxu0
  %2542 = vmatprep.mubr.f32.mxu0 %v2312
  %2543 = vmatmul.mubr.f32.gmra.mrb[0].mxu0 %v2311
  %v2544 = vpop.f32.mrb[0].mxu0
  %v2545 = vadd.f32 0.0, %v2544
  %v2546 = vpop.f32.mrb[0].mxu0
  %2547 = vmatprep.mubr.f32.mxu0 %v2314
  %2548 = vmatmul.mubr.f32.gmra.mrb[0].mxu0 %v2313
  %v2549 = vpop.f32.mrb[0].mxu0
  %v2550 = vadd.f32 0.0, %v2549
  %v2551 = vpop.f32.mrb[0].mxu0
  %2552 = vmatprep.mubr.f32.mxu0 %v2316
  %2553 = vmatmul.mubr.f32.gmra.mrb[0].mxu0 %v2315
  %v2554 = vpop.f32.mrb[0].mxu0
  %v2555 = vadd.f32 0.0, %v2554
  %v2556 = vpop.f32.mrb[0].mxu0
  %2557 = vmatprep.mubr.f32.mxu0 %v2318
  %2558 = vmatmul.mubr.f32.gmra.mrb[0].mxu0 %v2317
  %v2559 = vpop.f32.mrb[0].mxu0
  %v2560 = vadd.f32 0.0, %v2559
  %v2561 = vpop.f32.mrb[0].mxu0
  %2562 = vmatprep.mubr.f32.mxu0 %v2320
  %2563 = vmatmul.mubr.f32.gmra.mrb[0].mxu0 %v2319
  %v2564 = vpop.f32.mrb[0].mxu0
  %v2565 = vadd.f32 0.0, %v2564
  %v2566 = vpop.f32.mrb[0].mxu0
  %2567 = vmatprep.mubr.f32.mxu0 %v2322
  %2568 = vmatmul.mubr.f32.gmra.mrb[0].mxu0 %v2321
  %v2569 = vpop.f32.mrb[0].mxu0
  %v2570 = vadd.f32 0.0, %v2569
  %v2571 = vpop.f32.mrb[0].mxu0
  %2572 = vmatprep.mubr.f32.mxu0 %v2324
  %2573 = vmatmul.mubr.f32.gmra.mrb[0].mxu0 %v2323
  %v2574 = vpop.f32.mrb[0].mxu0
  %v2575 = vadd.f32 0.0, %v2574
  %v2576 = vpop.f32.mrb[0].mxu0
  %2577 = vmatprep.mubr.f32.mxu0 %v2326
  %2578 = vmatmul.mubr.f32.gmra.mrb[0].mxu0 %v2325
  %v2579 = vpop.f32.mrb[0].mxu0
  %v2580 = vadd.f32 0.0, %v2579
  %v2581 = vpop.f32.mrb[0].mxu0
  %2582 = vmatprep.mubr.f32.mxu0 %v2328
  %2583 = vmatmul.mubr.f32.gmra.mrb[0].mxu0 %v2327
  %v2584 = vpop.f32.mrb[0].mxu0
  %v2585 = vadd.f32 0.0, %v2584
  %v2586 = vpop.f32.mrb[0].mxu0
  %2587 = vmatprep.mubr.f32.mxu0 %v2330
  %2588 = vmatmul.mubr.f32.gmra.mrb[0].mxu0 %v2329
  %v2589 = vpop.f32.mrb[0].mxu0
  %v2590 = vadd.f32 0.0, %v2589
  %v2591 = vpop.f32.mrb[0].mxu0
  %2592 = vmatprep.mubr.f32.mxu0 %v2332
  %2593 = vmatmul.mubr.f32.gmra.mrb[0].mxu0 %v2331
  %v2594 = vpop.f32.mrb[0].mxu0
  %v2595 = vpop.f32.mrb[0].mxu0
  %2596 = vmatprep.mubr.f32.mxu0 %v2334
  %2597 = vmatmul.mubr.f32.gmra.mrb[0].mxu0 %v2333
  %v2598 = vpop.f32.mrb[0].mxu0
  %v2599 = vpop.f32.mrb[0].mxu0
  %2600 = vmatprep.mubr.f32.mxu0 %v2336
  %2601 = vmatmul.mubr.f32.gmra.mrb[0].mxu0 %v2335
  %v2602 = vpop.f32.mrb[0].mxu0
  %v2603 = vpop.f32.mrb[0].mxu0
  %2604 = vmatprep.mubr.f32.mxu0 %v2338
  %2605 = vmatmul.mubr.f32.gmra.mrb[0].mxu0 %v2337
  %v2606 = vpop.f32.mrb[0].mxu0
  %v2607 = vpop.f32.mrb[0].mxu0
  %2608 = vmatprep.mubr.f32.mxu0 %v2340
  %2609 = vmatmul.mubr.f32.gmra.mrb[0].mxu0 %v2339
  %v2610 = vpop.f32.mrb[0].mxu0
  %v2611 = vpop.f32.mrb[0].mxu0
  %2612 = vmatprep.mubr.f32.mxu0 %v2342
  %2613 = vmatmul.mubr.f32.gmra.mrb[0].mxu0 %v2341
  %v2614 = vpop.f32.mrb[0].mxu0
  %v2615 = vpop.f32.mrb[0].mxu0
  %2616 = vmatprep.mubr.f32.mxu0 %v2344
  %2617 = vmatmul.mubr.f32.gmra.mrb[0].mxu0 %v2343
  %v2618 = vpop.f32.mrb[0].mxu0
  %v2619 = vpop.f32.mrb[0].mxu0
  %2620 = vmatprep.mubr.f32.mxu0 %v2346
  %2621 = vmatmul.mubr.f32.gmra.mrb[0].mxu0 %v2345
  %v2622 = vpop.f32.mrb[0].mxu0
  %v2623 = vpop.f32.mrb[0].mxu0
  %2624 = vmatprep.mubr.f32.mxu0 %v2348
  %2625 = vmatmul.mubr.f32.gmra.mrb[0].mxu0 %v2347
  %v2626 = vpop.f32.mrb[0].mxu0
  %v2627 = vpop.f32.mrb[0].mxu0
  %2628 = vmatprep.mubr.f32.mxu0 %v2350
  %2629 = vmatmul.mubr.f32.gmra.mrb[0].mxu0 %v2349
  %v2630 = vpop.f32.mrb[0].mxu0
  %v2631 = vpop.f32.mrb[0].mxu0
  %2632 = vmatprep.mubr.f32.mxu0 %v2352
  %2633 = vmatmul.mubr.f32.gmra.mrb[0].mxu0 %v2351
  %v2634 = vpop.f32.mrb[0].mxu0
  %v2635 = vpop.f32.mrb[0].mxu0
  %2636 = vmatprep.mubr.f32.mxu0 %v2354
  %2637 = vmatmul.mubr.f32.gmra.mrb[0].mxu0 %v2353
  %v2638 = vpop.f32.mrb[0].mxu0
  %v2639 = vpop.f32.mrb[0].mxu0
  %2640 = vmatprep.mubr.f32.mxu0 %v2356
  %2641 = vmatmul.mubr.f32.gmra.mrb[0].mxu0 %v2355
  %v2642 = vpop.f32.mrb[0].mxu0
  %v2643 = vadd.f32 0.0, %v2642
  %v2644 = vpop.f32.mrb[0].mxu0
  %2645 = vmatprep.mubr.f32.mxu0 %v2358
  %2646 = vmatmul.mubr.f32.gmra.mrb[0].mxu0 %v2357
  %v2647 = vpop.f32.mrb[0].mxu0
  %v2648 = vadd.f32 0.0, %v2647
  %v2649 = vpop.f32.mrb[0].mxu0
  %2650 = vmatprep.mubr.f32.mxu0 %v2360
  %2651 = vmatmul.mubr.f32.gmra.mrb[0].mxu0 %v2359
  %v2652 = vpop.f32.mrb[0].mxu0
  %v2653 = vadd.f32 0.0, %v2652
  %v2654 = vpop.f32.mrb[0].mxu0
  %2655 = vmatprep.mubr.f32.mxu0 %v2362
  %2656 = vmatmul.mubr.f32.gmra.mrb[0].mxu0 %v2361
  %v2657 = vpop.f32.mrb[0].mxu0
  %v2658 = vadd.f32 0.0, %v2657
  %v2659 = vpop.f32.mrb[0].mxu0
  %2660 = vmatprep.mubr.f32.mxu0 %v2364
  %2661 = vmatmul.mubr.f32.gmra.mrb[0].mxu0 %v2363
  %v2662 = vpop.f32.mrb[0].mxu0
  %v2663 = vadd.f32 0.0, %v2662
  %v2664 = vpop.f32.mrb[0].mxu0
  %2665 = vmatprep.mubr.f32.mxu0 %v2366
  %2666 = vmatmul.mubr.f32.gmra.mrb[0].mxu0 %v2365
  %v2667 = vpop.f32.mrb[0].mxu0
  %v2668 = vadd.f32 0.0, %v2667
  %v2669 = vpop.f32.mrb[0].mxu0
  %2670 = vmatprep.mubr.f32.mxu0 %v2368
  %2671 = vmatmul.mubr.f32.gmra.mrb[0].mxu0 %v2367
  %v2672 = vpop.f32.mrb[0].mxu0
  %v2673 = vadd.f32 0.0, %v2672
  %v2674 = vpop.f32.mrb[0].mxu0
  %2675 = vmatprep.mubr.f32.mxu0 %v2370
  %2676 = vmatmul.mubr.f32.gmra.mrb[0].mxu0 %v2369
  %v2677 = vpop.f32.mrb[0].mxu0
  %v2678 = vadd.f32 0.0, %v2677
  %v2679 = vpop.f32.mrb[0].mxu0
  %2680 = vmatprep.mubr.f32.mxu0 %v2372
  %2681 = vmatmul.mubr.f32.gmra.mrb[0].mxu0 %v2371
  %v2682 = vpop.f32.mrb[0].mxu0
  %v2683 = vadd.f32 0.0, %v2682
  %v2684 = vpop.f32.mrb[0].mxu0
  %2685 = vmatprep.mubr.f32.mxu0 %v2374
  %2686 = vmatmul.mubr.f32.gmra.mrb[0].mxu0 %v2373
  %v2687 = vpop.f32.mrb[0].mxu0
  %v2688 = vadd.f32 0.0, %v2687
  %v2689 = vpop.f32.mrb[0].mxu0
  %2690 = vmatprep.mubr.f32.mxu0 %v2376
  %2691 = vmatmul.mubr.f32.gmra.mrb[0].mxu0 %v2375
  %v2692 = vpop.f32.mrb[0].mxu0
  %v2693 = vadd.f32 0.0, %v2692
  %v2694 = vpop.f32.mrb[0].mxu0
  %2695 = vmatprep.mubr.f32.mxu0 %v2378
  %2696 = vmatmul.mubr.f32.gmra.mrb[0].mxu0 %v2377
  %v2697 = vpop.f32.mrb[0].mxu0
  %v2698 = vadd.f32 0.0, %v2697
  %v2699 = vpop.f32.mrb[0].mxu0
  %2700 = vmatprep.mubr.f32.mxu0 %v2380
  %2701 = vmatmul.mubr.f32.gmra.mrb[0].mxu0 %v2379
  %v2702 = vpop.f32.mrb[0].mxu0
  %v2703 = vadd.f32 0.0, %v2702
  %v2704 = vpop.f32.mrb[0].mxu0
  %2705 = vmatprep.mubr.f32.mxu0 %v2382
  %2706 = vmatmul.mubr.f32.gmra.mrb[0].mxu0 %v2381
  %v2707 = vpop.f32.mrb[0].mxu0
  %v2708 = vadd.f32 0.0, %v2707
  %v2709 = vpop.f32.mrb[0].mxu0
  %2710 = vmatprep.mubr.f32.mxu0 %v2384
  %2711 = vmatmul.mubr.f32.gmra.mrb[0].mxu0 %v2383
  %v2712 = vpop.f32.mrb[0].mxu0
  %v2713 = vadd.f32 0.0, %v2712
  %v2714 = vpop.f32.mrb[0].mxu0
  %2715 = vmatprep.mubr.f32.mxu0 %v2386
  %2716 = vmatmul.mubr.f32.gmra.mrb[0].mxu0 %v2385
  %v2717 = vpop.f32.mrb[0].mxu0
  %v2718 = vadd.f32 0.0, %v2717
  %v2719 = vpop.f32.mrb[0].mxu0
  %2720 = vmatprep.mubr.f32.mxu0 %v2388
  %2721 = vmatmul.mubr.f32.gmra.mrb[0].mxu0 %v2387
  %v2722 = vpop.f32.mrb[0].mxu0
  %v2723 = vadd.f32 0.0, %v2722
  %v2724 = vpop.f32.mrb[0].mxu0
  %2725 = vmatprep.mubr.f32.mxu0 %v2390
  %2726 = vmatmul.mubr.f32.gmra.mrb[0].mxu0 %v2389
  %v2727 = vpop.f32.mrb[0].mxu0
  %v2728 = vadd.f32 0.0, %v2727
  %v2729 = vpop.f32.mrb[0].mxu0
  %2730 = vmatprep.mubr.f32.mxu0 %v2392
  %2731 = vmatmul.mubr.f32.gmra.mrb[0].mxu0 %v2391
  %v2732 = vpop.f32.mrb[0].mxu0
  %v2733 = vadd.f32 0.0, %v2732
  %v2734 = vpop.f32.mrb[0].mxu0
  %2735 = vmatprep.mubr.f32.mxu0 %v2394
  %2736 = vmatmul.mubr.f32.gmra.mrb[0].mxu0 %v2393
  %v2737 = vpop.f32.mrb[0].mxu0
  %v2738 = vadd.f32 0.0, %v2737
  %v2739 = vpop.f32.mrb[0].mxu0
  %2740 = vdwg.mxu0
  %v2741 = vadd.f32 %v2251, %v2495
  %v2742 = vadd.f32 %v2252, %v2500
  %v2743 = vadd.f32 %v2253, %v2505
  %v2744 = vadd.f32 %v2254, %v2510
  %v2745 = vadd.f32 %v2255, %v2515
  %v2746 = vadd.f32 %v2256, %v2520
  %v2747 = vadd.f32 %v2257, %v2525
  %v2748 = vadd.f32 %v2258, %v2530
  %v2749 = vadd.f32 %v2259, %v2535
  %v2750 = vadd.f32 %v2260, %v2540
  %v2751 = vadd.f32 %v2261, %v2545
  %v2752 = vadd.f32 %v2262, %v2550
  %v2753 = vadd.f32 %v2263, %v2555
  %v2754 = vadd.f32 %v2264, %v2560
  %v2755 = vadd.f32 %v2265, %v2565
  %v2756 = vadd.f32 %v2266, %v2570
  %v2757 = vadd.f32 %v2267, %v2575
  %v2758 = vadd.f32 %v2268, %v2580
  %v2759 = vadd.f32 %v2269, %v2585
  %v2760 = vadd.f32 %v2270, %v2590
  %v2761 = vadd.f32 %v2271, %v2643
  %v2762 = vadd.f32 %v2272, %v2648
  %v2763 = vadd.f32 %v2273, %v2653
  %v2764 = vadd.f32 %v2274, %v2658
  %v2765 = vadd.f32 %v2275, %v2663
  %v2766 = vadd.f32 %v2276, %v2668
  %v2767 = vadd.f32 %v2277, %v2673
  %v2768 = vadd.f32 %v2278, %v2678
  %v2769 = vadd.f32 %v2279, %v2683
  %v2770 = vadd.f32 %v2280, %v2688
  %v2771 = vadd.f32 %v2281, %v2693
  %v2772 = vadd.f32 %v2282, %v2698
  %v2773 = vadd.f32 %v2283, %v2703
  %v2774 = vadd.f32 %v2284, %v2708
  %v2775 = vadd.f32 %v2285, %v2713
  %v2776 = vadd.f32 %v2286, %v2718
  %v2777 = vadd.f32 %v2287, %v2723
  %v2778 = vadd.f32 %v2288, %v2728
  %v2779 = vadd.f32 %v2289, %v2733
  %v2780 = vadd.f32 %v2290, %v2738
  %v2781 = vld [vmem:[%s0 + $0xc0] sm:$0xff]
  %v2782 = vld [vmem:[%s0 + $0xc8] sm:$0xff]
  %v2783 = vld [vmem:[%s0 + $0xd0] sm:$0xff]
  %v2784 = vld [vmem:[%s0 + $0xd8] sm:$0xff]
  %v2785 = vld [vmem:[%s0 + $0xe0] sm:$0xff]
  %v2786 = vld [vmem:[%s0 + $0xe8] sm:$0xff]
  %v2787 = vld [vmem:[%s0 + $0xf0] sm:$0xff]
  %v2788 = vld [vmem:[%s0 + $0xf8] sm:$0xff]
  %v2789 = vld [vmem:[%s0 + $0x100] sm:$0xff]
  %v2790 = vld [vmem:[%s0 + $0x108] sm:$0xff]
  %v2791 = vld [vmem:[%s0 + $0x110] sm:$0xff]
  %v2792 = vld [vmem:[%s0 + $0x118] sm:$0xff]
  %v2793 = vld [vmem:[%s0 + $0x120] sm:$0xff]
  %v2794 = vld [vmem:[%s0 + $0x128] sm:$0xff]
  %v2795 = vld [vmem:[%s0 + $0x130] sm:$0xff]
  %v2796 = vld [vmem:[%s0 + $0x138] sm:$0xff]
  %v2797 = vld [vmem:[%s0 + $0x140] sm:$0xff]
  %v2798 = vld [vmem:[%s0 + $0x148] sm:$0xff]
  %v2799 = vld [vmem:[%s0 + $0x150] sm:$0xff]
  %v2800 = vld [vmem:[%s0 + $0x158] sm:$0xff]
  %v2801 = vld [vmem:[%s0 + $0x160] sm:$0xff]
  %v2802 = vld [vmem:[%s0 + $0x168] sm:$0xff]
  %v2803 = vld [vmem:[%s0 + $0x170] sm:$0xff]
  %v2804 = vld [vmem:[%s0 + $0x178] sm:$0xff]
  %v2805 = vld [vmem:[%s0 + $0x180] sm:$0xff]
  %v2806 = vld [vmem:[%s0 + $0x188] sm:$0xff]
  %v2807 = vld [vmem:[%s0 + $0x190] sm:$0xff]
  %v2808 = vld [vmem:[%s0 + $0x198] sm:$0xff]
  %v2809 = vld [vmem:[%s0 + $0x1a0] sm:$0xff]
  %v2810 = vld [vmem:[%s0 + $0x1a8] sm:$0xff]
  %v2811 = vld [vmem:[%s0 + $0x1b0] sm:$0xff]
  %v2812 = vld [vmem:[%s0 + $0x1b8] sm:$0xff]
  %v2813 = vld [vmem:[%s0 + $0x1c0] sm:$0xff]
  %v2814 = vld [vmem:[%s0 + $0x1c8] sm:$0xff]
  %v2815 = vld [vmem:[%s0 + $0x1d0] sm:$0xff]
  %v2816 = vld [vmem:[%s0 + $0x1d8] sm:$0xff]
  %v2817 = vld [vmem:[%s0 + $0x1e0] sm:$0xff]
  %v2818 = vld [vmem:[%s0 + $0x1e8] sm:$0xff]
  %v2819 = vld [vmem:[%s0 + $0x1f0] sm:$0xff]
  %v2820 = vld [vmem:[%s0 + $0x1f8] sm:$0xff]
  %v2821 = vld [vmem:[%s0 + $0x200] sm:$0xff]
  %v2822 = vld [vmem:[%s0 + $0x208] sm:$0xff]
  %v2823 = vld [vmem:[%s0 + $0x210] sm:$0xff]
  %v2824 = vld [vmem:[%s0 + $0x218] sm:$0xff]
  %v2825 = vld [vmem:[%s0 + $0x220] sm:$0xff]
  %v2826 = vld [vmem:[%s0 + $0x228] sm:$0xff]
  %v2827 = vld [vmem:[%s0 + $0x230] sm:$0xff]
  %v2828 = vld [vmem:[%s0 + $0x238] sm:$0xff]
  %v2829 = vld [vmem:[%s0 + $0x240] sm:$0xff]
  %v2830 = vld [vmem:[%s0 + $0x248] sm:$0xff]
  %v2831 = vld [vmem:[%s0 + $0x250] sm:$0xff]
  %v2832 = vld [vmem:[%s0 + $0x258] sm:$0xff]
  %v2833 = vld [vmem:[%s0 + $0x260] sm:$0xff]
  %v2834 = vld [vmem:[%s0 + $0x268] sm:$0xff]
  %v2835 = vld [vmem:[%s0 + $0x270] sm:$0xff]
  %v2836 = vld [vmem:[%s0 + $0x278] sm:$0xff]
  %v2837 = vld [vmem:[%s0 + $0x280] sm:$0xff]
  %v2838 = vld [vmem:[%s0 + $0x288] sm:$0xff]
  %v2839 = vld [vmem:[%s0 + $0x290] sm:$0xff]
  %v2840 = vld [vmem:[%s0 + $0x298] sm:$0xff]
  %v2841 = vld [vmem:[%s0 + $0x2a0] sm:$0xff]
  %v2842 = vld [vmem:[%s0 + $0x2a8] sm:$0xff]
  %v2843 = vld [vmem:[%s0 + $0x2b0] sm:$0xff]
  %v2844 = vld [vmem:[%s0 + $0x2b8] sm:$0xff]
  %v2845 = vld [vmem:[%s0 + $0x2c0] sm:$0xff]
  %v2846 = vld [vmem:[%s0 + $0x2c8] sm:$0xff]
  %v2847 = vld [vmem:[%s0 + $0x2d0] sm:$0xff]
  %v2848 = vld [vmem:[%s0 + $0x2d8] sm:$0xff]
  %v2849 = vld [vmem:[%s0 + $0x2e0] sm:$0xff]
  %v2850 = vld [vmem:[%s0 + $0x2e8] sm:$0xff]
  %v2851 = vld [vmem:[%s0 + $0x2f0] sm:$0xff]
  %v2852 = vld [vmem:[%s0 + $0x2f8] sm:$0xff]
  %v2853 = vld [vmem:[%s0 + $0x300] sm:$0xff]
  %v2854 = vld [vmem:[%s0 + $0x308] sm:$0xff]
  %v2855 = vld [vmem:[%s0 + $0x310] sm:$0xff]
  %v2856 = vld [vmem:[%s0 + $0x318] sm:$0xff]
  %v2857 = vld [vmem:[%s0 + $0x320] sm:$0xff]
  %v2858 = vld [vmem:[%s0 + $0x328] sm:$0xff]
  %v2859 = vld [vmem:[%s0 + $0x330] sm:$0xff]
  %v2860 = vld [vmem:[%s0 + $0x338] sm:$0xff]
  %v2861 = vld [vmem:[%s0 + $0x340] sm:$0xff]
  %v2862 = vld [vmem:[%s0 + $0x348] sm:$0xff]
  %v2863 = vld [vmem:[%s0 + $0x350] sm:$0xff]
  %v2864 = vld [vmem:[%s0 + $0x358] sm:$0xff]
  %v2865 = vld [vmem:[%s0 + $0x360] sm:$0xff]
  %v2866 = vld [vmem:[%s0 + $0x368] sm:$0xff]
  %v2867 = vld [vmem:[%s0 + $0x370] sm:$0xff]
  %v2868 = vld [vmem:[%s0 + $0x378] sm:$0xff]
  %v2869 = vld [vmem:[%s0 + $0x380] sm:$0xff]
  %v2870 = vld [vmem:[%s0 + $0x388] sm:$0xff]
  %v2871 = vld [vmem:[%s0 + $0x390] sm:$0xff]
  %v2872 = vld [vmem:[%s0 + $0x398] sm:$0xff]
  %v2873 = vld [vmem:[%s0 + $0x3a0] sm:$0xff]
  %v2874 = vld [vmem:[%s0 + $0x3a8] sm:$0xff]
  %v2875 = vld [vmem:[%s0 + $0x3b0] sm:$0xff]
  %v2876 = vld [vmem:[%s0 + $0x3b8] sm:$0xff]
  %v2877 = vld [vmem:[%s0 + $0x3c0] sm:$0xff]
  %v2878 = vld [vmem:[%s0 + $0x3c8] sm:$0xff]
  %v2879 = vld [vmem:[%s0 + $0x3d0] sm:$0xff]
  %v2880 = vld [vmem:[%s0 + $0x3d8] sm:$0xff]
  %v2881 = vld [vmem:[%s0 + $0x3e0] sm:$0xff]
  %v2882 = vld [vmem:[%s0 + $0x3e8] sm:$0xff]
  %v2883 = vld [vmem:[%s0 + $0x3f0] sm:$0x3]
  %v2884 = vld [vmem:[%s0 + $0x3f8] sm:$0x3]
  %s2885 = scalar_lea.vmem %s1, 1536
  %v2886 = vld [vmem:[%s2885] sm:$0xff]
  %v2887 = vld [vmem:[%s2885 + $0x8] sm:$0xff]
  %v2888 = vld [vmem:[%s2885 + $0x10] sm:$0xff]
  %v2889 = vld [vmem:[%s2885 + $0x18] sm:$0xff]
  %v2890 = vld [vmem:[%s2885 + $0x20] sm:$0xff]
  %v2891 = vld [vmem:[%s2885 + $0x28] sm:$0xff]
  %v2892 = vld [vmem:[%s2885 + $0x30] sm:$0xff]
  %v2893 = vld [vmem:[%s2885 + $0x38] sm:$0xff]
  %v2894 = vld [vmem:[%s2885 + $0x40] sm:$0xff]
  %v2895 = vld [vmem:[%s2885 + $0x48] sm:$0xff]
  %v2896 = vld [vmem:[%s2885 + $0x50] sm:$0xff]
  %v2897 = vld [vmem:[%s2885 + $0x58] sm:$0xff]
  %v2898 = vld [vmem:[%s2885 + $0x60] sm:$0xff]
  %v2899 = vld [vmem:[%s2885 + $0x68] sm:$0xff]
  %v2900 = vld [vmem:[%s2885 + $0x70] sm:$0xff]
  %v2901 = vld [vmem:[%s2885 + $0x78] sm:$0xff]
  %v2902 = vld [vmem:[%s2885 + $0x80] sm:$0xff]
  %v2903 = vld [vmem:[%s2885 + $0x88] sm:$0xff]
  %v2904 = vld [vmem:[%s2885 + $0x90] sm:$0xff]
  %v2905 = vld [vmem:[%s2885 + $0x98] sm:$0xff]
  %v2906 = vld [vmem:[%s2885 + $0xa0] sm:$0xff]
  %v2907 = vld [vmem:[%s2885 + $0xa8] sm:$0xff]
  %v2908 = vld [vmem:[%s2885 + $0xb0] sm:$0xff]
  %v2909 = vld [vmem:[%s2885 + $0xb8] sm:$0xff]
  %v2910 = vld [vmem:[%s2885 + $0xc0] sm:$0xff]
  %v2911 = vld [vmem:[%s2885 + $0xc8] sm:$0xff]
  %v2912 = vld [vmem:[%s2885 + $0xd0] sm:$0xff]
  %v2913 = vld [vmem:[%s2885 + $0xd8] sm:$0xff]
  %v2914 = vld [vmem:[%s2885 + $0xe0] sm:$0xff]
  %v2915 = vld [vmem:[%s2885 + $0xe8] sm:$0xff]
  %v2916 = vld [vmem:[%s2885 + $0xf0] sm:$0xff]
  %v2917 = vld [vmem:[%s2885 + $0xf8] sm:$0xff]
  %2918 = vmatprep.subr.mxu0 0.0
  %2919 = vmatpush1.msra.mxu0 %v2886
  %2920 = vmatprep.subr.mxu0 0.0
  %2921 = vmatpush1.msra.mxu0 %v2887
  %2922 = vmatprep.subr.mxu0 0.0
  %2923 = vmatpush1.msra.mxu0 %v2888
  %2924 = vmatprep.subr.mxu0 0.0
  %2925 = vmatpush1.msra.mxu0 %v2889
  %2926 = vmatprep.subr.mxu0 0.0
  %2927 = vmatpush1.msra.mxu0 %v2890
  %2928 = vmatprep.subr.mxu0 0.0
  %2929 = vmatpush1.msra.mxu0 %v2891
  %2930 = vmatprep.subr.mxu0 0.0
  %2931 = vmatpush1.msra.mxu0 %v2892
  %2932 = vmatprep.subr.mxu0 0.0
  %2933 = vmatpush1.msra.mxu0 %v2893
  %2934 = vmatprep.subr.mxu0 0.0
  %2935 = vmatpush1.msra.mxu0 %v2894
  %2936 = vmatprep.subr.mxu0 0.0
  %2937 = vmatpush1.msra.mxu0 %v2895
  %2938 = vmatprep.subr.mxu0 0.0
  %2939 = vmatpush1.msra.mxu0 %v2896
  %2940 = vmatprep.subr.mxu0 0.0
  %2941 = vmatpush1.msra.mxu0 %v2897
  %2942 = vmatprep.subr.mxu0 0.0
  %2943 = vmatpush1.msra.mxu0 %v2898
  %2944 = vmatprep.subr.mxu0 0.0
  %2945 = vmatpush1.msra.mxu0 %v2899
  %2946 = vmatprep.subr.mxu0 0.0
  %2947 = vmatpush1.msra.mxu0 %v2900
  %2948 = vmatprep.subr.mxu0 0.0
  %2949 = vmatpush1.msra.mxu0 %v2901
  %2950 = vmatprep.subr.mxu0 0.0
  %2951 = vmatpush1.msra.mxu0 %v2902
  %2952 = vmatprep.subr.mxu0 0.0
  %2953 = vmatpush1.msra.mxu0 %v2903
  %2954 = vmatprep.subr.mxu0 0.0
  %2955 = vmatpush1.msra.mxu0 %v2904
  %2956 = vmatprep.subr.mxu0 0.0
  %2957 = vmatpush1.msra.mxu0 %v2905
  %2958 = vmatprep.subr.mxu0 0.0
  %2959 = vmatpush1.msra.mxu0 %v2906
  %2960 = vmatprep.subr.mxu0 0.0
  %2961 = vmatpush1.msra.mxu0 %v2907
  %2962 = vmatprep.subr.mxu0 0.0
  %2963 = vmatpush1.msra.mxu0 %v2908
  %2964 = vmatprep.subr.mxu0 0.0
  %2965 = vmatpush1.msra.mxu0 %v2909
  %2966 = vmatprep.subr.mxu0 0.0
  %2967 = vmatpush1.msra.mxu0 %v2910
  %2968 = vmatprep.subr.mxu0 0.0
  %2969 = vmatpush1.msra.mxu0 %v2911
  %2970 = vmatprep.subr.mxu0 0.0
  %2971 = vmatpush1.msra.mxu0 %v2912
  %2972 = vmatprep.subr.mxu0 0.0
  %2973 = vmatpush1.msra.mxu0 %v2913
  %2974 = vmatprep.subr.mxu0 0.0
  %2975 = vmatpush1.msra.mxu0 %v2914
  %2976 = vmatprep.subr.mxu0 0.0
  %2977 = vmatpush1.msra.mxu0 %v2915
  %2978 = vmatprep.subr.mxu0 0.0
  %2979 = vmatpush1.msra.mxu0 %v2916
  %2980 = vmatprep.subr.mxu0 0.0
  %2981 = vmatpush1.msra.mxu0 %v2917
  %2982 = vmatprep.mubr.f32.mxu0 %v2782
  %2983 = vmatmul.mubr.f32.gmra.mrb[0].mxu0 %v2781
  %v2984 = vpop.f32.mrb[0].mxu0
  %v2985 = vadd.f32 0.0, %v2984
  %v2986 = vpop.f32.mrb[0].mxu0
  %2987 = vmatprep.mubr.f32.mxu0 %v2784
  %2988 = vmatmul.mubr.f32.gmra.mrb[0].mxu0 %v2783
  %v2989 = vpop.f32.mrb[0].mxu0
  %v2990 = vadd.f32 0.0, %v2989
  %v2991 = vpop.f32.mrb[0].mxu0
  %2992 = vmatprep.mubr.f32.mxu0 %v2786
  %2993 = vmatmul.mubr.f32.gmra.mrb[0].mxu0 %v2785
  %v2994 = vpop.f32.mrb[0].mxu0
  %v2995 = vadd.f32 0.0, %v2994
  %v2996 = vpop.f32.mrb[0].mxu0
  %2997 = vmatprep.mubr.f32.mxu0 %v2788
  %2998 = vmatmul.mubr.f32.gmra.mrb[0].mxu0 %v2787
  %v2999 = vpop.f32.mrb[0].mxu0
  %v3000 = vadd.f32 0.0, %v2999
  %v3001 = vpop.f32.mrb[0].mxu0
  %3002 = vmatprep.mubr.f32.mxu0 %v2790
  %3003 = vmatmul.mubr.f32.gmra.mrb[0].mxu0 %v2789
  %v3004 = vpop.f32.mrb[0].mxu0
  %v3005 = vadd.f32 0.0, %v3004
  %v3006 = vpop.f32.mrb[0].mxu0
  %3007 = vmatprep.mubr.f32.mxu0 %v2792
  %3008 = vmatmul.mubr.f32.gmra.mrb[0].mxu0 %v2791
  %v3009 = vpop.f32.mrb[0].mxu0
  %v3010 = vadd.f32 0.0, %v3009
  %v3011 = vpop.f32.mrb[0].mxu0
  %3012 = vmatprep.mubr.f32.mxu0 %v2794
  %3013 = vmatmul.mubr.f32.gmra.mrb[0].mxu0 %v2793
  %v3014 = vpop.f32.mrb[0].mxu0
  %v3015 = vadd.f32 0.0, %v3014
  %v3016 = vpop.f32.mrb[0].mxu0
  %3017 = vmatprep.mubr.f32.mxu0 %v2796
  %3018 = vmatmul.mubr.f32.gmra.mrb[0].mxu0 %v2795
  %v3019 = vpop.f32.mrb[0].mxu0
  %v3020 = vadd.f32 0.0, %v3019
  %v3021 = vpop.f32.mrb[0].mxu0
  %3022 = vmatprep.mubr.f32.mxu0 %v2798
  %3023 = vmatmul.mubr.f32.gmra.mrb[0].mxu0 %v2797
  %v3024 = vpop.f32.mrb[0].mxu0
  %v3025 = vadd.f32 0.0, %v3024
  %v3026 = vpop.f32.mrb[0].mxu0
  %3027 = vmatprep.mubr.f32.mxu0 %v2800
  %3028 = vmatmul.mubr.f32.gmra.mrb[0].mxu0 %v2799
  %v3029 = vpop.f32.mrb[0].mxu0
  %v3030 = vadd.f32 0.0, %v3029
  %v3031 = vpop.f32.mrb[0].mxu0
  %3032 = vmatprep.mubr.f32.mxu0 %v2802
  %3033 = vmatmul.mubr.f32.gmra.mrb[0].mxu0 %v2801
  %v3034 = vpop.f32.mrb[0].mxu0
  %v3035 = vadd.f32 0.0, %v3034
  %v3036 = vpop.f32.mrb[0].mxu0
  %3037 = vmatprep.mubr.f32.mxu0 %v2804
  %3038 = vmatmul.mubr.f32.gmra.mrb[0].mxu0 %v2803
  %v3039 = vpop.f32.mrb[0].mxu0
  %v3040 = vadd.f32 0.0, %v3039
  %v3041 = vpop.f32.mrb[0].mxu0
  %3042 = vmatprep.mubr.f32.mxu0 %v2806
  %3043 = vmatmul.mubr.f32.gmra.mrb[0].mxu0 %v2805
  %v3044 = vpop.f32.mrb[0].mxu0
  %v3045 = vadd.f32 0.0, %v3044
  %v3046 = vpop.f32.mrb[0].mxu0
  %3047 = vmatprep.mubr.f32.mxu0 %v2808
  %3048 = vmatmul.mubr.f32.gmra.mrb[0].mxu0 %v2807
  %v3049 = vpop.f32.mrb[0].mxu0
  %v3050 = vadd.f32 0.0, %v3049
  %v3051 = vpop.f32.mrb[0].mxu0
  %3052 = vmatprep.mubr.f32.mxu0 %v2810
  %3053 = vmatmul.mubr.f32.gmra.mrb[0].mxu0 %v2809
  %v3054 = vpop.f32.mrb[0].mxu0
  %v3055 = vadd.f32 0.0, %v3054
  %v3056 = vpop.f32.mrb[0].mxu0
  %3057 = vmatprep.mubr.f32.mxu0 %v2812
  %3058 = vmatmul.mubr.f32.gmra.mrb[0].mxu0 %v2811
  %v3059 = vpop.f32.mrb[0].mxu0
  %v3060 = vadd.f32 0.0, %v3059
  %v3061 = vpop.f32.mrb[0].mxu0
  %3062 = vmatprep.mubr.f32.mxu0 %v2814
  %3063 = vmatmul.mubr.f32.gmra.mrb[0].mxu0 %v2813
  %v3064 = vpop.f32.mrb[0].mxu0
  %v3065 = vadd.f32 0.0, %v3064
  %v3066 = vpop.f32.mrb[0].mxu0
  %3067 = vmatprep.mubr.f32.mxu0 %v2816
  %3068 = vmatmul.mubr.f32.gmra.mrb[0].mxu0 %v2815
  %v3069 = vpop.f32.mrb[0].mxu0
  %v3070 = vadd.f32 0.0, %v3069
  %v3071 = vpop.f32.mrb[0].mxu0
  %3072 = vmatprep.mubr.f32.mxu0 %v2818
  %3073 = vmatmul.mubr.f32.gmra.mrb[0].mxu0 %v2817
  %v3074 = vpop.f32.mrb[0].mxu0
  %v3075 = vadd.f32 0.0, %v3074
  %v3076 = vpop.f32.mrb[0].mxu0
  %3077 = vmatprep.mubr.f32.mxu0 %v2820
  %3078 = vmatmul.mubr.f32.gmra.mrb[0].mxu0 %v2819
  %v3079 = vpop.f32.mrb[0].mxu0
  %v3080 = vadd.f32 0.0, %v3079
  %v3081 = vpop.f32.mrb[0].mxu0
  %3082 = vmatprep.mubr.f32.mxu0 %v2822
  %3083 = vmatmul.mubr.f32.gmra.mrb[0].mxu0 %v2821
  %v3084 = vpop.f32.mrb[0].mxu0
  %v3085 = vpop.f32.mrb[0].mxu0
  %3086 = vmatprep.mubr.f32.mxu0 %v2824
  %3087 = vmatmul.mubr.f32.gmra.mrb[0].mxu0 %v2823
  %v3088 = vpop.f32.mrb[0].mxu0
  %v3089 = vpop.f32.mrb[0].mxu0
  %3090 = vmatprep.mubr.f32.mxu0 %v2826
  %3091 = vmatmul.mubr.f32.gmra.mrb[0].mxu0 %v2825
  %v3092 = vpop.f32.mrb[0].mxu0
  %v3093 = vpop.f32.mrb[0].mxu0
  %3094 = vmatprep.mubr.f32.mxu0 %v2828
  %3095 = vmatmul.mubr.f32.gmra.mrb[0].mxu0 %v2827
  %v3096 = vpop.f32.mrb[0].mxu0
  %v3097 = vpop.f32.mrb[0].mxu0
  %3098 = vmatprep.mubr.f32.mxu0 %v2830
  %3099 = vmatmul.mubr.f32.gmra.mrb[0].mxu0 %v2829
  %v3100 = vpop.f32.mrb[0].mxu0
  %v3101 = vpop.f32.mrb[0].mxu0
  %3102 = vmatprep.mubr.f32.mxu0 %v2832
  %3103 = vmatmul.mubr.f32.gmra.mrb[0].mxu0 %v2831
  %v3104 = vpop.f32.mrb[0].mxu0
  %v3105 = vpop.f32.mrb[0].mxu0
  %3106 = vmatprep.mubr.f32.mxu0 %v2834
  %3107 = vmatmul.mubr.f32.gmra.mrb[0].mxu0 %v2833
  %v3108 = vpop.f32.mrb[0].mxu0
  %v3109 = vpop.f32.mrb[0].mxu0
  %3110 = vmatprep.mubr.f32.mxu0 %v2836
  %3111 = vmatmul.mubr.f32.gmra.mrb[0].mxu0 %v2835
  %v3112 = vpop.f32.mrb[0].mxu0
  %v3113 = vpop.f32.mrb[0].mxu0
  %3114 = vmatprep.mubr.f32.mxu0 %v2838
  %3115 = vmatmul.mubr.f32.gmra.mrb[0].mxu0 %v2837
  %v3116 = vpop.f32.mrb[0].mxu0
  %v3117 = vpop.f32.mrb[0].mxu0
  %3118 = vmatprep.mubr.f32.mxu0 %v2840
  %3119 = vmatmul.mubr.f32.gmra.mrb[0].mxu0 %v2839
  %v3120 = vpop.f32.mrb[0].mxu0
  %v3121 = vpop.f32.mrb[0].mxu0
  %3122 = vmatprep.mubr.f32.mxu0 %v2842
  %3123 = vmatmul.mubr.f32.gmra.mrb[0].mxu0 %v2841
  %v3124 = vpop.f32.mrb[0].mxu0
  %v3125 = vpop.f32.mrb[0].mxu0
  %3126 = vmatprep.mubr.f32.mxu0 %v2844
  %3127 = vmatmul.mubr.f32.gmra.mrb[0].mxu0 %v2843
  %v3128 = vpop.f32.mrb[0].mxu0
  %v3129 = vpop.f32.mrb[0].mxu0
  %3130 = vmatprep.mubr.f32.mxu0 %v2846
  %3131 = vmatmul.mubr.f32.gmra.mrb[0].mxu0 %v2845
  %v3132 = vpop.f32.mrb[0].mxu0
  %v3133 = vadd.f32 0.0, %v3132
  %v3134 = vpop.f32.mrb[0].mxu0
  %3135 = vmatprep.mubr.f32.mxu0 %v2848
  %3136 = vmatmul.mubr.f32.gmra.mrb[0].mxu0 %v2847
  %v3137 = vpop.f32.mrb[0].mxu0
  %v3138 = vadd.f32 0.0, %v3137
  %v3139 = vpop.f32.mrb[0].mxu0
  %3140 = vmatprep.mubr.f32.mxu0 %v2850
  %3141 = vmatmul.mubr.f32.gmra.mrb[0].mxu0 %v2849
  %v3142 = vpop.f32.mrb[0].mxu0
  %v3143 = vadd.f32 0.0, %v3142
  %v3144 = vpop.f32.mrb[0].mxu0
  %3145 = vmatprep.mubr.f32.mxu0 %v2852
  %3146 = vmatmul.mubr.f32.gmra.mrb[0].mxu0 %v2851
  %v3147 = vpop.f32.mrb[0].mxu0
  %v3148 = vadd.f32 0.0, %v3147
  %v3149 = vpop.f32.mrb[0].mxu0
  %3150 = vmatprep.mubr.f32.mxu0 %v2854
  %3151 = vmatmul.mubr.f32.gmra.mrb[0].mxu0 %v2853
  %v3152 = vpop.f32.mrb[0].mxu0
  %v3153 = vadd.f32 0.0, %v3152
  %v3154 = vpop.f32.mrb[0].mxu0
  %3155 = vmatprep.mubr.f32.mxu0 %v2856
  %3156 = vmatmul.mubr.f32.gmra.mrb[0].mxu0 %v2855
  %v3157 = vpop.f32.mrb[0].mxu0
  %v3158 = vadd.f32 0.0, %v3157
  %v3159 = vpop.f32.mrb[0].mxu0
  %3160 = vmatprep.mubr.f32.mxu0 %v2858
  %3161 = vmatmul.mubr.f32.gmra.mrb[0].mxu0 %v2857
  %v3162 = vpop.f32.mrb[0].mxu0
  %v3163 = vadd.f32 0.0, %v3162
  %v3164 = vpop.f32.mrb[0].mxu0
  %3165 = vmatprep.mubr.f32.mxu0 %v2860
  %3166 = vmatmul.mubr.f32.gmra.mrb[0].mxu0 %v2859
  %v3167 = vpop.f32.mrb[0].mxu0
  %v3168 = vadd.f32 0.0, %v3167
  %v3169 = vpop.f32.mrb[0].mxu0
  %3170 = vmatprep.mubr.f32.mxu0 %v2862
  %3171 = vmatmul.mubr.f32.gmra.mrb[0].mxu0 %v2861
  %v3172 = vpop.f32.mrb[0].mxu0
  %v3173 = vadd.f32 0.0, %v3172
  %v3174 = vpop.f32.mrb[0].mxu0
  %3175 = vmatprep.mubr.f32.mxu0 %v2864
  %3176 = vmatmul.mubr.f32.gmra.mrb[0].mxu0 %v2863
  %v3177 = vpop.f32.mrb[0].mxu0
  %v3178 = vadd.f32 0.0, %v3177
  %v3179 = vpop.f32.mrb[0].mxu0
  %3180 = vmatprep.mubr.f32.mxu0 %v2866
  %3181 = vmatmul.mubr.f32.gmra.mrb[0].mxu0 %v2865
  %v3182 = vpop.f32.mrb[0].mxu0
  %v3183 = vadd.f32 0.0, %v3182
  %v3184 = vpop.f32.mrb[0].mxu0
  %3185 = vmatprep.mubr.f32.mxu0 %v2868
  %3186 = vmatmul.mubr.f32.gmra.mrb[0].mxu0 %v2867
  %v3187 = vpop.f32.mrb[0].mxu0
  %v3188 = vadd.f32 0.0, %v3187
  %v3189 = vpop.f32.mrb[0].mxu0
  %3190 = vmatprep.mubr.f32.mxu0 %v2870
  %3191 = vmatmul.mubr.f32.gmra.mrb[0].mxu0 %v2869
  %v3192 = vpop.f32.mrb[0].mxu0
  %v3193 = vadd.f32 0.0, %v3192
  %v3194 = vpop.f32.mrb[0].mxu0
  %3195 = vmatprep.mubr.f32.mxu0 %v2872
  %3196 = vmatmul.mubr.f32.gmra.mrb[0].mxu0 %v2871
  %v3197 = vpop.f32.mrb[0].mxu0
  %v3198 = vadd.f32 0.0, %v3197
  %v3199 = vpop.f32.mrb[0].mxu0
  %3200 = vmatprep.mubr.f32.mxu0 %v2874
  %3201 = vmatmul.mubr.f32.gmra.mrb[0].mxu0 %v2873
  %v3202 = vpop.f32.mrb[0].mxu0
  %v3203 = vadd.f32 0.0, %v3202
  %v3204 = vpop.f32.mrb[0].mxu0
  %3205 = vmatprep.mubr.f32.mxu0 %v2876
  %3206 = vmatmul.mubr.f32.gmra.mrb[0].mxu0 %v2875
  %v3207 = vpop.f32.mrb[0].mxu0
  %v3208 = vadd.f32 0.0, %v3207
  %v3209 = vpop.f32.mrb[0].mxu0
  %3210 = vmatprep.mubr.f32.mxu0 %v2878
  %3211 = vmatmul.mubr.f32.gmra.mrb[0].mxu0 %v2877
  %v3212 = vpop.f32.mrb[0].mxu0
  %v3213 = vadd.f32 0.0, %v3212
  %v3214 = vpop.f32.mrb[0].mxu0
  %3215 = vmatprep.mubr.f32.mxu0 %v2880
  %3216 = vmatmul.mubr.f32.gmra.mrb[0].mxu0 %v2879
  %v3217 = vpop.f32.mrb[0].mxu0
  %v3218 = vadd.f32 0.0, %v3217
  %v3219 = vpop.f32.mrb[0].mxu0
  %3220 = vmatprep.mubr.f32.mxu0 %v2882
  %3221 = vmatmul.mubr.f32.gmra.mrb[0].mxu0 %v2881
  %v3222 = vpop.f32.mrb[0].mxu0
  %v3223 = vadd.f32 0.0, %v3222
  %v3224 = vpop.f32.mrb[0].mxu0
  %3225 = vmatprep.mubr.f32.mxu0 %v2884
  %3226 = vmatmul.mubr.f32.gmra.mrb[0].mxu0 %v2883
  %v3227 = vpop.f32.mrb[0].mxu0
  %v3228 = vadd.f32 0.0, %v3227
  %v3229 = vpop.f32.mrb[0].mxu0
  %3230 = vdwg.mxu0
  %v3231 = vadd.f32 %v2741, %v2985
  %v3232 = vadd.f32 %v2742, %v2990
  %v3233 = vadd.f32 %v2743, %v2995
  %v3234 = vadd.f32 %v2744, %v3000
  %v3235 = vadd.f32 %v2745, %v3005
  %v3236 = vadd.f32 %v2746, %v3010
  %v3237 = vadd.f32 %v2747, %v3015
  %v3238 = vadd.f32 %v2748, %v3020
  %v3239 = vadd.f32 %v2749, %v3025
  %v3240 = vadd.f32 %v2750, %v3030
  %v3241 = vadd.f32 %v2751, %v3035
  %v3242 = vadd.f32 %v2752, %v3040
  %v3243 = vadd.f32 %v2753, %v3045
  %v3244 = vadd.f32 %v2754, %v3050
  %v3245 = vadd.f32 %v2755, %v3055
  %v3246 = vadd.f32 %v2756, %v3060
  %v3247 = vadd.f32 %v2757, %v3065
  %v3248 = vadd.f32 %v2758, %v3070
  %v3249 = vadd.f32 %v2759, %v3075
  %v3250 = vadd.f32 %v2760, %v3080
  %v3251 = vadd.f32 %v2761, %v3133
  %v3252 = vadd.f32 %v2762, %v3138
  %v3253 = vadd.f32 %v2763, %v3143
  %v3254 = vadd.f32 %v2764, %v3148
  %v3255 = vadd.f32 %v2765, %v3153
  %v3256 = vadd.f32 %v2766, %v3158
  %v3257 = vadd.f32 %v2767, %v3163
  %v3258 = vadd.f32 %v2768, %v3168
  %v3259 = vadd.f32 %v2769, %v3173
  %v3260 = vadd.f32 %v2770, %v3178
  %v3261 = vadd.f32 %v2771, %v3183
  %v3262 = vadd.f32 %v2772, %v3188
  %v3263 = vadd.f32 %v2773, %v3193
  %v3264 = vadd.f32 %v2774, %v3198
  %v3265 = vadd.f32 %v2775, %v3203
  %v3266 = vadd.f32 %v2776, %v3208
  %v3267 = vadd.f32 %v2777, %v3213
  %v3268 = vadd.f32 %v2778, %v3218
  %v3269 = vadd.f32 %v2779, %v3223
  %v3270 = vadd.f32 %v2780, %v3228
  %v3271 = vld [vmem:[%s2] sm:$0x1]
  %v3273 = vlaneseq
  %v3274 = vshrl.u32 %v3273, 7
  %v3275 = vsub.s32 0, %v3274
  %v3276 = vrot.slane %v3271, %v3275
  %v3278 = vadd.f32 %v3231, %v3276
  %v3279 = vadd.f32 %v3232, %v3276
  %v3280 = vadd.f32 %v3233, %v3276
  %v3281 = vadd.f32 %v3234, %v3276
  %v3282 = vadd.f32 %v3235, %v3276
  %v3283 = vadd.f32 %v3236, %v3276
  %v3284 = vadd.f32 %v3237, %v3276
  %v3285 = vadd.f32 %v3238, %v3276
  %v3286 = vadd.f32 %v3239, %v3276
  %v3287 = vadd.f32 %v3240, %v3276
  %v3288 = vadd.f32 %v3241, %v3276
  %v3289 = vadd.f32 %v3242, %v3276
  %v3290 = vadd.f32 %v3243, %v3276
  %v3291 = vadd.f32 %v3244, %v3276
  %v3292 = vadd.f32 %v3245, %v3276
  %v3293 = vadd.f32 %v3246, %v3276
  %v3294 = vadd.f32 %v3247, %v3276
  %v3295 = vadd.f32 %v3248, %v3276
  %v3296 = vadd.f32 %v3249, %v3276
  %v3297 = vadd.f32 %v3250, %v3276
  %v3298 = vadd.f32 %v3251, %v3276
  %v3299 = vadd.f32 %v3252, %v3276
  %v3300 = vadd.f32 %v3253, %v3276
  %v3301 = vadd.f32 %v3254, %v3276
  %v3302 = vadd.f32 %v3255, %v3276
  %v3303 = vadd.f32 %v3256, %v3276
  %v3304 = vadd.f32 %v3257, %v3276
  %v3305 = vadd.f32 %v3258, %v3276
  %v3306 = vadd.f32 %v3259, %v3276
  %v3307 = vadd.f32 %v3260, %v3276
  %v3308 = vadd.f32 %v3261, %v3276
  %v3309 = vadd.f32 %v3262, %v3276
  %v3310 = vadd.f32 %v3263, %v3276
  %v3311 = vadd.f32 %v3264, %v3276
  %v3312 = vadd.f32 %v3265, %v3276
  %v3313 = vadd.f32 %v3266, %v3276
  %v3314 = vadd.f32 %v3267, %v3276
  %v3315 = vadd.f32 %v3268, %v3276
  %v3316 = vadd.f32 %v3269, %v3276
  %v3317 = vadd.f32 %v3270, %v3276
  %v3318 = vld [vmem:[%s3] sm:$0xff]
  %v3319 = vld [vmem:[%s3 + $0x8] sm:$0xff]
  %v3320 = vld [vmem:[%s3 + $0x10] sm:$0xff]
  %v3321 = vld [vmem:[%s3 + $0x18] sm:$0xff]
  %v3322 = vld [vmem:[%s3 + $0x20] sm:$0xff]
  %v3323 = vld [vmem:[%s3 + $0x28] sm:$0xff]
  %v3324 = vld [vmem:[%s3 + $0x30] sm:$0xff]
  %v3325 = vld [vmem:[%s3 + $0x38] sm:$0xff]
  %v3326 = vld [vmem:[%s3 + $0x40] sm:$0xff]
  %v3327 = vld [vmem:[%s3 + $0x48] sm:$0xff]
  %v3328 = vld [vmem:[%s3 + $0x50] sm:$0xff]
  %v3329 = vld [vmem:[%s3 + $0x58] sm:$0xff]
  %v3330 = vld [vmem:[%s3 + $0x60] sm:$0xff]
  %v3331 = vld [vmem:[%s3 + $0x68] sm:$0xff]
  %v3332 = vld [vmem:[%s3 + $0x70] sm:$0xff]
  %v3333 = vld [vmem:[%s3 + $0x78] sm:$0xff]
  %v3334 = vld [vmem:[%s3 + $0x80] sm:$0xff]
  %v3335 = vld [vmem:[%s3 + $0x88] sm:$0xff]
  %v3336 = vld [vmem:[%s3 + $0x90] sm:$0xff]
  %v3337 = vld [vmem:[%s3 + $0x98] sm:$0x3]
  %v3338 = vld [vmem:[%s4] sm:$0xff]
  %v3339 = vmul.f32 %v3278, 10.0
  %v3340 = vmul.f32 %v3279, 10.0
  %v3341 = vmul.f32 %v3280, 10.0
  %v3342 = vmul.f32 %v3281, 10.0
  %v3343 = vmul.f32 %v3282, 10.0
  %v3344 = vmul.f32 %v3283, 10.0
  %v3345 = vmul.f32 %v3284, 10.0
  %v3346 = vmul.f32 %v3285, 10.0
  %v3347 = vmul.f32 %v3286, 10.0
  %v3348 = vmul.f32 %v3287, 10.0
  %v3349 = vmul.f32 %v3288, 10.0
  %v3350 = vmul.f32 %v3289, 10.0
  %v3351 = vmul.f32 %v3290, 10.0
  %v3352 = vmul.f32 %v3291, 10.0
  %v3353 = vmul.f32 %v3292, 10.0
  %v3354 = vmul.f32 %v3293, 10.0
  %v3355 = vmul.f32 %v3294, 10.0
  %v3356 = vmul.f32 %v3295, 10.0
  %v3357 = vmul.f32 %v3296, 10.0
  %v3358 = vmul.f32 %v3297, 10.0
  %v3359 = vadd.f32 %v3339, %v3318
  %v3360 = vadd.f32 %v3340, %v3319
  %v3361 = vadd.f32 %v3341, %v3320
  %v3362 = vadd.f32 %v3342, %v3321
  %v3363 = vadd.f32 %v3343, %v3322
  %v3364 = vadd.f32 %v3344, %v3323
  %v3365 = vadd.f32 %v3345, %v3324
  %v3366 = vadd.f32 %v3346, %v3325
  %v3367 = vadd.f32 %v3347, %v3326
  %v3368 = vadd.f32 %v3348, %v3327
  %v3369 = vadd.f32 %v3349, %v3328
  %v3370 = vadd.f32 %v3350, %v3329
  %v3371 = vadd.f32 %v3351, %v3330
  %v3372 = vadd.f32 %v3352, %v3331
  %v3373 = vadd.f32 %v3353, %v3332
  %v3374 = vadd.f32 %v3354, %v3333
  %v3375 = vadd.f32 %v3355, %v3334
  %v3376 = vadd.f32 %v3356, %v3335
  %v3377 = vadd.f32 %v3357, %v3336
  %v3378 = vadd.f32 %v3358, %v3337
  %vm3379 = vcmask 64512
  %v3380 = vsel %vm3379, %v3359, -inf
  %v3381 = vsel %vm3379, %v3360, -inf
  %v3382 = vsel %vm3379, %v3361, -inf
  %v3383 = vsel %vm3379, %v3362, -inf
  %v3384 = vsel %vm3379, %v3363, -inf
  %v3385 = vmax.f32 %v3380, %v3384
  %v3386 = vsel %vm3379, %v3364, -inf
  %v3387 = vmax.f32 %v3381, %v3386
  %v3388 = vsel %vm3379, %v3365, -inf
  %v3389 = vmax.f32 %v3382, %v3388
  %v3390 = vsel %vm3379, %v3366, -inf
  %v3391 = vmax.f32 %v3383, %v3390
  %v3392 = vsel %vm3379, %v3367, -inf
  %v3393 = vmax.f32 %v3385, %v3392
  %v3394 = vsel %vm3379, %v3368, -inf
  %v3395 = vmax.f32 %v3387, %v3394
  %v3396 = vsel %vm3379, %v3369, -inf
  %v3397 = vmax.f32 %v3389, %v3396
  %v3398 = vsel %vm3379, %v3370, -inf
  %v3399 = vmax.f32 %v3391, %v3398
  %v3400 = vsel %vm3379, %v3371, -inf
  %v3401 = vmax.f32 %v3393, %v3400
  %v3402 = vsel %vm3379, %v3372, -inf
  %v3403 = vmax.f32 %v3395, %v3402
  %v3404 = vsel %vm3379, %v3373, -inf
  %v3405 = vmax.f32 %v3397, %v3404
  %v3406 = vsel %vm3379, %v3374, -inf
  %v3407 = vmax.f32 %v3399, %v3406
  %v3408 = vsel %vm3379, %v3375, -inf
  %v3409 = vmax.f32 %v3401, %v3408
  %v3410 = vsel %vm3379, %v3376, -inf
  %v3411 = vmax.f32 %v3403, %v3410
  %v3412 = vsel %vm3379, %v3377, -inf
  %v3413 = vmax.f32 %v3405, %v3412
  %vm3414 = vcmask 58368
  %v3415 = vsel %vm3414, %v3378, -inf
  %v3416 = vmax.f32 %v3407, %v3415
  %v3417 = vmax.f32 %v3409, %v3411
  %v3418 = vmax.f32 %v3413, %v3416
  %v3419 = vmax.f32 %v3417, %v3418
  %v3420 = vrot.slane %v3419, 4
  %v3421 = vmax.f32 %v3419, %v3420
  %v3422 = vrot.slane %v3421, 2
  %v3423 = vmax.f32 %v3421, %v3422
  %v3424 = vrot.slane %v3423, 1
  %v3425 = vmax.f32 %v3423, %v3424
  %v3426 = vsub.f32 %v3359, %v3425
  %v3427 = vsub.f32 %v3360, %v3425
  %v3428 = vsub.f32 %v3361, %v3425
  %v3429 = vsub.f32 %v3362, %v3425
  %v3430 = vsub.f32 %v3363, %v3425
  %v3431 = vsub.f32 %v3364, %v3425
  %v3432 = vsub.f32 %v3365, %v3425
  %v3433 = vsub.f32 %v3366, %v3425
  %v3434 = vsub.f32 %v3367, %v3425
  %v3435 = vsub.f32 %v3368, %v3425
  %v3436 = vsub.f32 %v3369, %v3425
  %v3437 = vsub.f32 %v3370, %v3425
  %v3438 = vsub.f32 %v3371, %v3425
  %v3439 = vsub.f32 %v3372, %v3425
  %v3440 = vsub.f32 %v3373, %v3425
  %v3441 = vsub.f32 %v3374, %v3425
  %v3442 = vsub.f32 %v3375, %v3425
  %v3443 = vsub.f32 %v3376, %v3425
  %v3444 = vsub.f32 %v3377, %v3425
  %v3445 = vsub.f32 %v3378, %v3425
  %v3446 = vmul.f32 %v3426, 1.442695
  %v3447 = vpow.pop %v3446
  %v3448 = vmul.f32 %v3427, 1.442695
  %v3449 = vpow.pop %v3448
  %v3450 = vmul.f32 %v3428, 1.442695
  %v3451 = vpow.pop %v3450
  %v3452 = vmul.f32 %v3429, 1.442695
  %v3453 = vpow.pop %v3452
  %v3454 = vmul.f32 %v3430, 1.442695
  %v3455 = vpow.pop %v3454
  %v3456 = vmul.f32 %v3431, 1.442695
  %v3457 = vpow.pop %v3456
  %v3458 = vmul.f32 %v3432, 1.442695
  %v3459 = vpow.pop %v3458
  %v3460 = vmul.f32 %v3433, 1.442695
  %v3461 = vpow.pop %v3460
  %v3462 = vmul.f32 %v3434, 1.442695
  %v3463 = vpow.pop %v3462
  %v3464 = vmul.f32 %v3435, 1.442695
  %v3465 = vpow.pop %v3464
  %v3466 = vmul.f32 %v3436, 1.442695
  %v3467 = vpow.pop %v3466
  %v3468 = vmul.f32 %v3437, 1.442695
  %v3469 = vpow.pop %v3468
  %v3470 = vmul.f32 %v3438, 1.442695
  %v3471 = vpow.pop %v3470
  %v3472 = vmul.f32 %v3439, 1.442695
  %v3473 = vpow.pop %v3472
  %v3474 = vmul.f32 %v3440, 1.442695
  %v3475 = vpow.pop %v3474
  %v3476 = vmul.f32 %v3441, 1.442695
  %v3477 = vpow.pop %v3476
  %v3478 = vmul.f32 %v3442, 1.442695
  %v3479 = vpow.pop %v3478
  %v3480 = vmul.f32 %v3443, 1.442695
  %v3481 = vpow.pop %v3480
  %v3482 = vmul.f32 %v3444, 1.442695
  %v3483 = vpow.pop %v3482
  %v3484 = vmul.f32 %v3445, 1.442695
  %v3485 = vpow.pop %v3484
  %v3486 = vadd.f32 %v3278, %v3318
  %v3487 = vadd.f32 %v3279, %v3319
  %v3488 = vadd.f32 %v3280, %v3320
  %v3489 = vadd.f32 %v3281, %v3321
  %v3490 = vadd.f32 %v3282, %v3322
  %v3491 = vadd.f32 %v3283, %v3323
  %v3492 = vadd.f32 %v3284, %v3324
  %v3493 = vadd.f32 %v3285, %v3325
  %v3494 = vadd.f32 %v3286, %v3326
  %v3495 = vadd.f32 %v3287, %v3327
  %v3496 = vadd.f32 %v3288, %v3328
  %v3497 = vadd.f32 %v3289, %v3329
  %v3498 = vadd.f32 %v3290, %v3330
  %v3499 = vadd.f32 %v3291, %v3331
  %v3500 = vadd.f32 %v3292, %v3332
  %v3501 = vadd.f32 %v3293, %v3333
  %v3502 = vadd.f32 %v3294, %v3334
  %v3503 = vadd.f32 %v3295, %v3335
  %v3504 = vadd.f32 %v3296, %v3336
  %v3505 = vadd.f32 %v3297, %v3337
  %3506 = vxpose.xlu0.b32.start [1/16] %v3447, 128
  %3507 = vxpose.xlu0.b32.cont [2/16] %v3449, 128
  %3508 = vxpose.xlu0.b32.cont [3/16] %v3451, 128
  %3509 = vxpose.xlu0.b32.cont [4/16] %v3453, 128
  %3510 = vxpose.xlu0.b32.cont [5/16] %v3455, 128
  %3511 = vxpose.xlu0.b32.cont [6/16] %v3457, 128
  %3512 = vxpose.xlu0.b32.cont [7/16] %v3459, 128
  %3513 = vxpose.xlu0.b32.cont [8/16] %v3461, 128
  %3514 = vxpose.xlu0.b32.cont [9/16] %v3463, 128
  %3515 = vxpose.xlu0.b32.cont [10/16] %v3465, 128
  %3516 = vxpose.xlu0.b32.cont [11/16] %v3467, 128
  %3517 = vxpose.xlu0.b32.cont [12/16] %v3469, 128
  %3518 = vxpose.xlu0.b32.cont [13/16] %v3471, 128
  %3519 = vxpose.xlu0.b32.cont [14/16] %v3473, 128
  %3520 = vxpose.xlu0.b32.cont [15/16] %v3475, 128
  %3521 = vxpose.xlu0.b32.end [16/16] %v3477, 128
  %v3522 = vpop.trf.xlu0
  %v3523 = vpop.trf.xlu0
  %v3524 = vpop.trf.xlu0
  %v3525 = vpop.trf.xlu0
  %v3526 = vpop.trf.xlu0
  %v3527 = vpop.trf.xlu0
  %v3528 = vpop.trf.xlu0
  %v3529 = vpop.trf.xlu0
  %v3530 = vpop.trf.xlu0
  %v3531 = vpop.trf.xlu0
  %v3532 = vpop.trf.xlu0
  %v3533 = vpop.trf.xlu0
  %v3534 = vpop.trf.xlu0
  %v3535 = vpop.trf.xlu0
  %v3536 = vpop.trf.xlu0
  %v3537 = vpop.trf.xlu0
  %3538 = vxpose.xlu0.b32.start [1/16] %v3479, 128
  %3539 = vxpose.xlu0.b32.cont [2/16] %v3481, 128
  %3540 = vxpose.xlu0.b32.cont [3/16] %v3483, 128
  %3541 = vxpose.xlu0.b32.cont [4/16] %v3485, 128
  %3542 = vxpose.xlu0.b32.cont [5/16] 0.0, 128
  %3543 = vxpose.xlu0.b32.cont [6/16] 0.0, 128
  %3544 = vxpose.xlu0.b32.cont [7/16] 0.0, 128
  %3545 = vxpose.xlu0.b32.cont [8/16] 0.0, 128
  %3546 = vxpose.xlu0.b32.cont [9/16] 0.0, 128
  %3547 = vxpose.xlu0.b32.cont [10/16] 0.0, 128
  %3548 = vxpose.xlu0.b32.cont [11/16] 0.0, 128
  %3549 = vxpose.xlu0.b32.cont [12/16] 0.0, 128
  %3550 = vxpose.xlu0.b32.cont [13/16] 0.0, 128
  %3551 = vxpose.xlu0.b32.cont [14/16] 0.0, 128
  %3552 = vxpose.xlu0.b32.cont [15/16] 0.0, 128
  %3553 = vxpose.xlu0.b32.end [16/16] 0.0, 128
  %v3554 = vpop.trf.xlu0
  %v3555 = vpop.trf.xlu0
  %v3556 = vpop.trf.xlu0
  %v3557 = vpop.trf.xlu0
  %v3558 = vpop.trf.xlu0
  %v3559 = vpop.trf.xlu0
  %v3560 = vpop.trf.xlu0
  %v3561 = vpop.trf.xlu0
  %v3562 = vpop.trf.xlu0
  %v3563 = vpop.trf.xlu0
  %v3564 = vpop.trf.xlu0
  %v3565 = vpop.trf.xlu0
  %v3566 = vpop.trf.xlu0
  %v3567 = vpop.trf.xlu0
  %v3568 = vpop.trf.xlu0
  %v3569 = vpop.trf.xlu0
  %vm3570 = vcmask 211968
  %v3572 = vsel %vm3570, %v3554, 0
  %vm3574 = vcmask 1041408
  %v3576 = vsel %vm3574, %v3505, 0
  %3578 = vmatprep.subr.mxu0 0.0
  %3579 = vmatpush1.msra.mxu0 %v3486
  %3580 = vmatprep.subr.mxu0 0.0
  %3581 = vmatpush1.msra.mxu0 %v3487
  %3582 = vmatprep.subr.mxu0 0.0
  %3583 = vmatpush1.msra.mxu0 %v3488
  %3584 = vmatprep.subr.mxu0 0.0
  %3585 = vmatpush1.msra.mxu0 %v3489
  %3586 = vmatprep.subr.mxu0 0.0
  %3587 = vmatpush1.msra.mxu0 %v3490
  %3588 = vmatprep.subr.mxu0 0.0
  %3589 = vmatpush1.msra.mxu0 %v3491
  %3590 = vmatprep.subr.mxu0 0.0
  %3591 = vmatpush1.msra.mxu0 %v3492
  %3592 = vmatprep.subr.mxu0 0.0
  %3593 = vmatpush1.msra.mxu0 %v3493
  %3594 = vmatprep.subr.mxu0 0.0
  %3595 = vmatpush1.msra.mxu0 %v3494
  %3596 = vmatprep.subr.mxu0 0.0
  %3597 = vmatpush1.msra.mxu0 %v3495
  %3598 = vmatprep.subr.mxu0 0.0
  %3599 = vmatpush1.msra.mxu0 %v3496
  %3600 = vmatprep.subr.mxu0 0.0
  %3601 = vmatpush1.msra.mxu0 %v3497
  %3602 = vmatprep.subr.mxu0 0.0
  %3603 = vmatpush1.msra.mxu0 %v3498
  %3604 = vmatprep.subr.mxu0 0.0
  %3605 = vmatpush1.msra.mxu0 %v3499
  %3606 = vmatprep.subr.mxu0 0.0
  %3607 = vmatpush1.msra.mxu0 %v3500
  %3608 = vmatprep.subr.mxu0 0.0
  %3609 = vmatpush1.msra.mxu0 %v3501
  %3610 = vmatprep.subr.mxu0 0.0
  %3611 = vmatpush1.msra.mxu0 %v3502
  %3612 = vmatprep.subr.mxu0 0.0
  %3613 = vmatpush1.msra.mxu0 %v3503
  %3614 = vmatprep.subr.mxu0 0.0
  %3615 = vmatpush1.msra.mxu0 %v3504
  %3616 = vmatprep.subr.mxu0 0.0
  %3617 = vmatpush1.msra.mxu0 %v3576
  %3618 = vmatprep.subr.mxu0 0.0
  %3619 = vmatpush1.msra.mxu0 0.0
  %3620 = vmatprep.subr.mxu0 0.0
  %3621 = vmatpush1.msra.mxu0 0.0
  %3622 = vmatprep.subr.mxu0 0.0
  %3623 = vmatpush1.msra.mxu0 0.0
  %3624 = vmatprep.subr.mxu0 0.0
  %3625 = vmatpush1.msra.mxu0 0.0
  %3626 = vmatprep.subr.mxu0 0.0
  %3627 = vmatpush1.msra.mxu0 0.0
  %3628 = vmatprep.subr.mxu0 0.0
  %3629 = vmatpush1.msra.mxu0 0.0
  %3630 = vmatprep.subr.mxu0 0.0
  %3631 = vmatpush1.msra.mxu0 0.0
  %3632 = vmatprep.subr.mxu0 0.0
  %3633 = vmatpush1.msra.mxu0 0.0
  %3634 = vmatprep.subr.mxu0 0.0
  %3635 = vmatpush1.msra.mxu0 0.0
  %3636 = vmatprep.subr.mxu0 0.0
  %3637 = vmatpush1.msra.mxu0 0.0
  %3638 = vmatprep.subr.mxu0 0.0
  %3639 = vmatpush1.msra.mxu0 0.0
  %3640 = vmatprep.subr.mxu0 0.0
  %3641 = vmatpush1.msra.mxu0 0.0
  %3642 = vmatprep.mubr.f32.mxu0 %v3572
  %3643 = vmatmul.mubr.f32.gmra.mrb[0].mxu0 %v3522
  %v3644 = vpop.f32.mrb[0].mxu0
  %v3645 = vadd.f32 0.0, %v3644
  %v3646 = vpop.f32.mrb[0].mxu0
  %3647 = vdwg.mxu0
  %v3648 = vmul.f32 %v3338, %v3645
  %v3649 = vrot.slane %v3648, 4
  %v3650 = vadd.f32 %v3648, %v3649
  %v3651 = vrot.slane %v3650, 2
  %v3652 = vadd.f32 %v3650, %v3651
  %v3653 = vrot.slane %v3652, 1
  %v3654 = vadd.f32 %v3652, %v3653
  %3655 = vst [vmem:[%s5] sm:$0x1] %v3654
  %v3656 = vmul.f32 %v3298, 10.0
  %v3657 = vmul.f32 %v3299, 10.0
  %v3658 = vmul.f32 %v3300, 10.0
  %v3659 = vmul.f32 %v3301, 10.0
  %v3660 = vmul.f32 %v3302, 10.0
  %v3661 = vmul.f32 %v3303, 10.0
  %v3662 = vmul.f32 %v3304, 10.0
  %v3663 = vmul.f32 %v3305, 10.0
  %v3664 = vmul.f32 %v3306, 10.0
  %v3665 = vmul.f32 %v3307, 10.0
  %v3666 = vmul.f32 %v3308, 10.0
  %v3667 = vmul.f32 %v3309, 10.0
  %v3668 = vmul.f32 %v3310, 10.0
  %v3669 = vmul.f32 %v3311, 10.0
  %v3670 = vmul.f32 %v3312, 10.0
  %v3671 = vmul.f32 %v3313, 10.0
  %v3672 = vmul.f32 %v3314, 10.0
  %v3673 = vmul.f32 %v3315, 10.0
  %v3674 = vmul.f32 %v3316, 10.0
  %v3675 = vmul.f32 %v3317, 10.0
  %v3676 = vadd.f32 %v3656, %v3318
  %v3677 = vadd.f32 %v3657, %v3319
  %v3678 = vadd.f32 %v3658, %v3320
  %v3679 = vadd.f32 %v3659, %v3321
  %v3680 = vadd.f32 %v3660, %v3322
  %v3681 = vadd.f32 %v3661, %v3323
  %v3682 = vadd.f32 %v3662, %v3324
  %v3683 = vadd.f32 %v3663, %v3325
  %v3684 = vadd.f32 %v3664, %v3326
  %v3685 = vadd.f32 %v3665, %v3327
  %v3686 = vadd.f32 %v3666, %v3328
  %v3687 = vadd.f32 %v3667, %v3329
  %v3688 = vadd.f32 %v3668, %v3330
  %v3689 = vadd.f32 %v3669, %v3331
  %v3690 = vadd.f32 %v3670, %v3332
  %v3691 = vadd.f32 %v3671, %v3333
  %v3692 = vadd.f32 %v3672, %v3334
  %v3693 = vadd.f32 %v3673, %v3335
  %v3694 = vadd.f32 %v3674, %v3336
  %v3695 = vadd.f32 %v3675, %v3337
  %v3696 = vsel %vm3379, %v3676, -inf
  %v3697 = vsel %vm3379, %v3677, -inf
  %v3698 = vsel %vm3379, %v3678, -inf
  %v3699 = vsel %vm3379, %v3679, -inf
  %v3700 = vsel %vm3379, %v3680, -inf
  %v3701 = vmax.f32 %v3696, %v3700
  %v3702 = vsel %vm3379, %v3681, -inf
  %v3703 = vmax.f32 %v3697, %v3702
  %v3704 = vsel %vm3379, %v3682, -inf
  %v3705 = vmax.f32 %v3698, %v3704
  %v3706 = vsel %vm3379, %v3683, -inf
  %v3707 = vmax.f32 %v3699, %v3706
  %v3708 = vsel %vm3379, %v3684, -inf
  %v3709 = vmax.f32 %v3701, %v3708
  %v3710 = vsel %vm3379, %v3685, -inf
  %v3711 = vmax.f32 %v3703, %v3710
  %v3712 = vsel %vm3379, %v3686, -inf
  %v3713 = vmax.f32 %v3705, %v3712
  %v3714 = vsel %vm3379, %v3687, -inf
  %v3715 = vmax.f32 %v3707, %v3714
  %v3716 = vsel %vm3379, %v3688, -inf
  %v3717 = vmax.f32 %v3709, %v3716
  %v3718 = vsel %vm3379, %v3689, -inf
  %v3719 = vmax.f32 %v3711, %v3718
  %v3720 = vsel %vm3379, %v3690, -inf
  %v3721 = vmax.f32 %v3713, %v3720
  %v3722 = vsel %vm3379, %v3691, -inf
  %v3723 = vmax.f32 %v3715, %v3722
  %v3724 = vsel %vm3379, %v3692, -inf
  %v3725 = vmax.f32 %v3717, %v3724
  %v3726 = vsel %vm3379, %v3693, -inf
  %v3727 = vmax.f32 %v3719, %v3726
  %v3728 = vsel %vm3379, %v3694, -inf
  %v3729 = vmax.f32 %v3721, %v3728
  %v3730 = vsel %vm3414, %v3695, -inf
  %v3731 = vmax.f32 %v3723, %v3730
  %v3732 = vmax.f32 %v3725, %v3727
  %v3733 = vmax.f32 %v3729, %v3731
  %v3734 = vmax.f32 %v3732, %v3733
  %v3735 = vrot.slane %v3734, 4
  %v3736 = vmax.f32 %v3734, %v3735
  %v3737 = vrot.slane %v3736, 2
  %v3738 = vmax.f32 %v3736, %v3737
  %v3739 = vrot.slane %v3738, 1
  %v3740 = vmax.f32 %v3738, %v3739
  %v3741 = vsub.f32 %v3676, %v3740
  %v3742 = vsub.f32 %v3677, %v3740
  %v3743 = vsub.f32 %v3678, %v3740
  %v3744 = vsub.f32 %v3679, %v3740
  %v3745 = vsub.f32 %v3680, %v3740
  %v3746 = vsub.f32 %v3681, %v3740
  %v3747 = vsub.f32 %v3682, %v3740
  %v3748 = vsub.f32 %v3683, %v3740
  %v3749 = vsub.f32 %v3684, %v3740
  %v3750 = vsub.f32 %v3685, %v3740
  %v3751 = vsub.f32 %v3686, %v3740
  %v3752 = vsub.f32 %v3687, %v3740
  %v3753 = vsub.f32 %v3688, %v3740
  %v3754 = vsub.f32 %v3689, %v3740
  %v3755 = vsub.f32 %v3690, %v3740
  %v3756 = vsub.f32 %v3691, %v3740
  %v3757 = vsub.f32 %v3692, %v3740
  %v3758 = vsub.f32 %v3693, %v3740
  %v3759 = vsub.f32 %v3694, %v3740
  %v3760 = vsub.f32 %v3695, %v3740
  %v3761 = vmul.f32 %v3741, 1.442695
  %v3762 = vpow.pop %v3761
  %v3763 = vmul.f32 %v3742, 1.442695
  %v3764 = vpow.pop %v3763
  %v3765 = vmul.f32 %v3743, 1.442695
  %v3766 = vpow.pop %v3765
  %v3767 = vmul.f32 %v3744, 1.442695
  %v3768 = vpow.pop %v3767
  %v3769 = vmul.f32 %v3745, 1.442695
  %v3770 = vpow.pop %v3769
  %v3771 = vmul.f32 %v3746, 1.442695
  %v3772 = vpow.pop %v3771
  %v3773 = vmul.f32 %v3747, 1.442695
  %v3774 = vpow.pop %v3773
  %v3775 = vmul.f32 %v3748, 1.442695
  %v3776 = vpow.pop %v3775
  %v3777 = vmul.f32 %v3749, 1.442695
  %v3778 = vpow.pop %v3777
  %v3779 = vmul.f32 %v3750, 1.442695
  %v3780 = vpow.pop %v3779
  %v3781 = vmul.f32 %v3751, 1.442695
  %v3782 = vpow.pop %v3781
  %v3783 = vmul.f32 %v3752, 1.442695
  %v3784 = vpow.pop %v3783
  %v3785 = vmul.f32 %v3753, 1.442695
  %v3786 = vpow.pop %v3785
  %v3787 = vmul.f32 %v3754, 1.442695
  %v3788 = vpow.pop %v3787
  %v3789 = vmul.f32 %v3755, 1.442695
  %v3790 = vpow.pop %v3789
  %v3791 = vmul.f32 %v3756, 1.442695
  %v3792 = vpow.pop %v3791
  %v3793 = vmul.f32 %v3757, 1.442695
  %v3794 = vpow.pop %v3793
  %v3795 = vmul.f32 %v3758, 1.442695
  %v3796 = vpow.pop %v3795
  %v3797 = vmul.f32 %v3759, 1.442695
  %v3798 = vpow.pop %v3797
  %v3799 = vmul.f32 %v3760, 1.442695
  %v3800 = vpow.pop %v3799
  %v3801 = vadd.f32 %v3298, %v3318
  %v3802 = vadd.f32 %v3299, %v3319
  %v3803 = vadd.f32 %v3300, %v3320
  %v3804 = vadd.f32 %v3301, %v3321
  %v3805 = vadd.f32 %v3302, %v3322
  %v3806 = vadd.f32 %v3303, %v3323
  %v3807 = vadd.f32 %v3304, %v3324
  %v3808 = vadd.f32 %v3305, %v3325
  %v3809 = vadd.f32 %v3306, %v3326
  %v3810 = vadd.f32 %v3307, %v3327
  %v3811 = vadd.f32 %v3308, %v3328
  %v3812 = vadd.f32 %v3309, %v3329
  %v3813 = vadd.f32 %v3310, %v3330
  %v3814 = vadd.f32 %v3311, %v3331
  %v3815 = vadd.f32 %v3312, %v3332
  %v3816 = vadd.f32 %v3313, %v3333
  %v3817 = vadd.f32 %v3314, %v3334
  %v3818 = vadd.f32 %v3315, %v3335
  %v3819 = vadd.f32 %v3316, %v3336
  %v3820 = vadd.f32 %v3317, %v3337
  %3821 = vxpose.xlu0.b32.start [1/16] %v3762, 128
  %3822 = vxpose.xlu0.b32.cont [2/16] %v3764, 128
  %3823 = vxpose.xlu0.b32.cont [3/16] %v3766, 128
  %3824 = vxpose.xlu0.b32.cont [4/16] %v3768, 128
  %3825 = vxpose.xlu0.b32.cont [5/16] %v3770, 128
  %3826 = vxpose.xlu0.b32.cont [6/16] %v3772, 128
  %3827 = vxpose.xlu0.b32.cont [7/16] %v3774, 128
  %3828 = vxpose.xlu0.b32.cont [8/16] %v3776, 128
  %3829 = vxpose.xlu0.b32.cont [9/16] %v3778, 128
  %3830 = vxpose.xlu0.b32.cont [10/16] %v3780, 128
  %3831 = vxpose.xlu0.b32.cont [11/16] %v3782, 128
  %3832 = vxpose.xlu0.b32.cont [12/16] %v3784, 128
  %3833 = vxpose.xlu0.b32.cont [13/16] %v3786, 128
  %3834 = vxpose.xlu0.b32.cont [14/16] %v3788, 128
  %3835 = vxpose.xlu0.b32.cont [15/16] %v3790, 128
  %3836 = vxpose.xlu0.b32.end [16/16] %v3792, 128
  %v3837 = vpop.trf.xlu0
  %v3838 = vpop.trf.xlu0
  %v3839 = vpop.trf.xlu0
  %v3840 = vpop.trf.xlu0
  %v3841 = vpop.trf.xlu0
  %v3842 = vpop.trf.xlu0
  %v3843 = vpop.trf.xlu0
  %v3844 = vpop.trf.xlu0
  %v3845 = vpop.trf.xlu0
  %v3846 = vpop.trf.xlu0
  %v3847 = vpop.trf.xlu0
  %v3848 = vpop.trf.xlu0
  %v3849 = vpop.trf.xlu0
  %v3850 = vpop.trf.xlu0
  %v3851 = vpop.trf.xlu0
  %v3852 = vpop.trf.xlu0
  %3853 = vxpose.xlu0.b32.start [1/16] %v3794, 128
  %3854 = vxpose.xlu0.b32.cont [2/16] %v3796, 128
  %3855 = vxpose.xlu0.b32.cont [3/16] %v3798, 128
  %3856 = vxpose.xlu0.b32.cont [4/16] %v3800, 128
  %3857 = vxpose.xlu0.b32.cont [5/16] 0.0, 128
  %3858 = vxpose.xlu0.b32.cont [6/16] 0.0, 128
  %3859 = vxpose.xlu0.b32.cont [7/16] 0.0, 128
  %3860 = vxpose.xlu0.b32.cont [8/16] 0.0, 128
  %3861 = vxpose.xlu0.b32.cont [9/16] 0.0, 128
  %3862 = vxpose.xlu0.b32.cont [10/16] 0.0, 128
  %3863 = vxpose.xlu0.b32.cont [11/16] 0.0, 128
  %3864 = vxpose.xlu0.b32.cont [12/16] 0.0, 128
  %3865 = vxpose.xlu0.b32.cont [13/16] 0.0, 128
  %3866 = vxpose.xlu0.b32.cont [14/16] 0.0, 128
  %3867 = vxpose.xlu0.b32.cont [15/16] 0.0, 128
  %3868 = vxpose.xlu0.b32.end [16/16] 0.0, 128
  %v3869 = vpop.trf.xlu0
  %v3870 = vpop.trf.xlu0
  %v3871 = vpop.trf.xlu0
  %v3872 = vpop.trf.xlu0
  %v3873 = vpop.trf.xlu0
  %v3874 = vpop.trf.xlu0
  %v3875 = vpop.trf.xlu0
  %v3876 = vpop.trf.xlu0
  %v3877 = vpop.trf.xlu0
  %v3878 = vpop.trf.xlu0
  %v3879 = vpop.trf.xlu0
  %v3880 = vpop.trf.xlu0
  %v3881 = vpop.trf.xlu0
  %v3882 = vpop.trf.xlu0
  %v3883 = vpop.trf.xlu0
  %v3884 = vpop.trf.xlu0
  %v3886 = vsel %vm3570, %v3869, 0
  %v3889 = vsel %vm3574, %v3820, 0
  %3891 = vmatprep.subr.mxu0 0.0
  %3892 = vmatpush1.msra.mxu0 %v3801
  %3893 = vmatprep.subr.mxu0 0.0
  %3894 = vmatpush1.msra.mxu0 %v3802
  %3895 = vmatprep.subr.mxu0 0.0
  %3896 = vmatpush1.msra.mxu0 %v3803
  %3897 = vmatprep.subr.mxu0 0.0
  %3898 = vmatpush1.msra.mxu0 %v3804
  %3899 = vmatprep.subr.mxu0 0.0
  %3900 = vmatpush1.msra.mxu0 %v3805
  %3901 = vmatprep.subr.mxu0 0.0
  %3902 = vmatpush1.msra.mxu0 %v3806
  %3903 = vmatprep.subr.mxu0 0.0
  %3904 = vmatpush1.msra.mxu0 %v3807
  %3905 = vmatprep.subr.mxu0 0.0
  %3906 = vmatpush1.msra.mxu0 %v3808
  %3907 = vmatprep.subr.mxu0 0.0
  %3908 = vmatpush1.msra.mxu0 %v3809
  %3909 = vmatprep.subr.mxu0 0.0
  %3910 = vmatpush1.msra.mxu0 %v3810
  %3911 = vmatprep.subr.mxu0 0.0
  %3912 = vmatpush1.msra.mxu0 %v3811
  %3913 = vmatprep.subr.mxu0 0.0
  %3914 = vmatpush1.msra.mxu0 %v3812
  %3915 = vmatprep.subr.mxu0 0.0
  %3916 = vmatpush1.msra.mxu0 %v3813
  %3917 = vmatprep.subr.mxu0 0.0
  %3918 = vmatpush1.msra.mxu0 %v3814
  %3919 = vmatprep.subr.mxu0 0.0
  %3920 = vmatpush1.msra.mxu0 %v3815
  %3921 = vmatprep.subr.mxu0 0.0
  %3922 = vmatpush1.msra.mxu0 %v3816
  %3923 = vmatprep.subr.mxu0 0.0
  %3924 = vmatpush1.msra.mxu0 %v3817
  %3925 = vmatprep.subr.mxu0 0.0
  %3926 = vmatpush1.msra.mxu0 %v3818
  %3927 = vmatprep.subr.mxu0 0.0
  %3928 = vmatpush1.msra.mxu0 %v3819
  %3929 = vmatprep.subr.mxu0 0.0
  %3930 = vmatpush1.msra.mxu0 %v3889
  %3931 = vmatprep.subr.mxu0 0.0
  %3932 = vmatpush1.msra.mxu0 0.0
  %3933 = vmatprep.subr.mxu0 0.0
  %3934 = vmatpush1.msra.mxu0 0.0
  %3935 = vmatprep.subr.mxu0 0.0
  %3936 = vmatpush1.msra.mxu0 0.0
  %3937 = vmatprep.subr.mxu0 0.0
  %3938 = vmatpush1.msra.mxu0 0.0
  %3939 = vmatprep.subr.mxu0 0.0
  %3940 = vmatpush1.msra.mxu0 0.0
  %3941 = vmatprep.subr.mxu0 0.0
  %3942 = vmatpush1.msra.mxu0 0.0
  %3943 = vmatprep.subr.mxu0 0.0
  %3944 = vmatpush1.msra.mxu0 0.0
  %3945 = vmatprep.subr.mxu0 0.0
  %3946 = vmatpush1.msra.mxu0 0.0
  %3947 = vmatprep.subr.mxu0 0.0
  %3948 = vmatpush1.msra.mxu0 0.0
  %3949 = vmatprep.subr.mxu0 0.0
  %3950 = vmatpush1.msra.mxu0 0.0
  %3951 = vmatprep.subr.mxu0 0.0
  %3952 = vmatpush1.msra.mxu0 0.0
  %3953 = vmatprep.subr.mxu0 0.0
  %3954 = vmatpush1.msra.mxu0 0.0
  %3955 = vmatprep.mubr.f32.mxu0 %v3886
  %3956 = vmatmul.mubr.f32.gmra.mrb[0].mxu0 %v3837
  %v3957 = vpop.f32.mrb[0].mxu0
  %v3958 = vadd.f32 0.0, %v3957
  %v3959 = vpop.f32.mrb[0].mxu0
  %3960 = vdwg.mxu0
  %v3961 = vmul.f32 %v3338, %v3958
  %v3962 = vrot.slane %v3961, 4
  %v3963 = vadd.f32 %v3961, %v3962
  %v3964 = vrot.slane %v3963, 2
  %v3965 = vadd.f32 %v3963, %v3964
  %v3966 = vrot.slane %v3965, 1
  %v3967 = vadd.f32 %v3965, %v3966
  %s3968 = scalar_lea.vmem %s5, 1
  %3969 = vst [vmem:[%s3968] sm:$0x1] %v3967
  // Predicated region
  $region22: #{second_order_kp_forward.1} parent=0 // pred_check
    _
  $region23: #{second_order_kp_forward.1} parent=0 // pred_check_branch
    %3971 = sbr.rel (0) target = $region25
  $region24: #{second_order_kp_forward.1} parent=0 // pred_region
    _
  $region25: #{second_order_kp_forward.1} parent=0 // pred_fallthru
    _
  // Predicated region
  $region26: #{second_order_kp_forward.1} parent=0 // pred_check
    _
  $region27: #{second_order_kp_forward.1} parent=0 // pred_check_branch
    %3973 = sbr.rel (0) target = $region29
  $region28: #{second_order_kp_forward.1} parent=0 // pred_region
    _
  $region29: #{second_order_kp_forward.1} parent=0 // pred_fallthru
    _

</llo_original>
